<compile_context>
chip_gen: v7x
topology: tpu7x:2x2x1
jax: 0.10.0
libtpu: 0.0.40
codegen_flags: <defaults>
</compile_context>

<pallas_src>
import jax
import jax.numpy as jnp
from jax import lax
from jax.experimental import pallas as pl
from jax.experimental.pallas import tpu as pltpu


def _ceil_to(v, m):
    return ((v + m - 1) // m) * m


def _make_conv_kernel(C_in, C_out, K, stride, n_strips, OWp):
    """Conv kernel: one batch element per grid step, 8-row output strips inside."""
    CKK = C_in * K * K

    def kernel(w_ref, b_ref, x_ref, o_ref):
        # w_ref: (C_out*C_in*K*K,) f32 SMEM
        # b_ref: (C_out,)          f32 SMEM
        # x_ref: (1, C_in, H_tot, W_tot) f32 VMEM  (upsampled + zero-padded image)
        # o_ref: (1, C_out, OHp, OWp)    f32 VMEM  (sublane/lane padded output)

        # Hoist all scalar parameter reads out of the strip loop.
        wv = [w_ref[i] for i in range(C_out * CKK)]
        bv = [b_ref[i] for i in range(C_out)]

        # Static unrolled loop over 8-row output strips.  n_strips is small for
        # this module's image sizes; each strip's accumulators are flushed to
        # o_ref before the next strip, bounding vreg pressure.
        # TODO(synk): switch to lax.fori_loop for very tall images (n_strips >> 16).
        for t in range(n_strips):
            r0 = t * 8
            accs = [jnp.zeros((8, OWp), jnp.float32) + bv[co] for co in range(C_out)]
            for c in range(C_in):
                for kh in range(K):
                    row0 = r0 * stride + kh
                    if stride == 1:
                        rsel = pl.ds(row0, 8)
                    else:
                        rsel = pl.ds(row0, 8, stride=stride)
                    for kw in range(K):
                        if stride == 1:
                            csel = pl.ds(kw, OWp)
                        else:
                            # TODO(synk): stride>1 lane decimation is untested on
                            # this path; pre-split W in the wrapper if it binds.
                            csel = pl.ds(kw, OWp, stride=stride)
                        sl = x_ref[0, c, rsel, csel]          # (8, OWp) f32
                        base = (c * K + kh) * K + kw
                        for co in range(C_out):
                            accs[co] = accs[co] + wv[co * CKK + base] * sl
            for co in range(C_out):
                # Fully dense (8, OWp) unmasked store.
                o_ref[0, co, pl.ds(r0, 8), :] = accs[co]

    return kernel


def upsample_conv2d_forward(x, weight, bias, *, scale=1, stride=1, padding=0):
    """nearest-upsample(scale) -> PyTorch-Conv2d(K, stride, padding) forward."""
    if x.ndim == 3:
        x = x[None]
    N, C_in, H, W = x.shape
    C_out, C_in_w, K, K2 = weight.shape
    assert C_in_w == C_in and K2 == K

    s = int(scale)
    Hu, Wu = H * s, W * s
    OH = (Hu + 2 * padding - K) // stride + 1
    OW = (Wu + 2 * padding - K) // stride + 1
    assert OH >= 1 and OW >= 1, "output spatial dims must be positive"

    OHp = _ceil_to(OH, 8)        # sublane-dense strips
    OWp = _ceil_to(OW, 128)      # lane-dense output rows (unmasked vst)
    n_strips = OHp // 8

    # Upsampled-image rows/cols touched by the padded output grid.
    H_need = (OHp - 1) * stride + K
    W_need = (OWp - 1) * stride + K
    H_tot = max(H_need, Hu + 2 * padding)
    W_tot = max(W_need, Wu + 2 * padding)

    # Single HBM materialization of the upsampled + zero-padded (+halo) image:
    # XLA fuses repeat+pad into one fusion, so only one copy exists in HBM.
    x32 = x.astype(jnp.float32)
    x_up = jnp.repeat(jnp.repeat(x32, s, axis=2), s, axis=3) if s > 1 else x32
    x_ext = jnp.pad(
        x_up,
        ((0, 0), (0, 0),
         (padding, H_tot - Hu - padding),
         (padding, W_tot - Wu - padding)),
    )

    w_flat = weight.reshape(-1).astype(jnp.float32)
    b = bias.astype(jnp.float32)

    kernel = _make_conv_kernel(C_in, C_out, K, stride, n_strips, OWp)

    # VMEM budget from the actual (double-buffered) block sizes + slack,
    # capped for v7x's 64 MiB.  TODO(synk): for images that do not fit, fall
    # back to row-blocked manual DMA (memory_space=pl.ANY + make_async_copy).
    in_block = 4 * C_in * H_tot * W_tot
    out_block = 4 * C_out * OHp * OWp
    vmem_limit = int(min(2 * (in_block + out_block) + (8 << 20), 48 << 20))

    flops = int(2 * N * C_out * C_in * K * K * OHp * OWp)
    bytes_accessed = int(4 * (N * C_in * H_tot * W_tot + w_flat.size + b.size
                              + N * C_out * OHp * OWp))

    out = pl.pallas_call(
        kernel,
        out_shape=jax.ShapeDtypeStruct((N, C_out, OHp, OWp), jnp.float32),
        grid_spec=pltpu.PrefetchScalarGridSpec(
            num_scalar_prefetch=0,
            grid=(N,),
            in_specs=[
                pl.BlockSpec(memory_space=pltpu.MemorySpace.SMEM),   # flattened weights
                pl.BlockSpec(memory_space=pltpu.MemorySpace.SMEM),   # bias
                # Whole (upsampled, padded) image of batch n; changes every grid
                # step, so default double-buffering prefetches the next batch.
                pl.BlockSpec((1, C_in, H_tot, W_tot), lambda n: (n, 0, 0, 0)),
            ],
            out_specs=pl.BlockSpec((1, C_out, OHp, OWp), lambda n: (n, 0, 0, 0)),
        ),
        compiler_params=pltpu.CompilerParams(
            dimension_semantics=("parallel",),
            vmem_limit_bytes=vmem_limit,
        ),
        cost_estimate=pl.CostEstimate(
            flops=flops, transcendentals=0, bytes_accessed=bytes_accessed),
    )(w_flat, b, x_ext)

    # Trim the sublane/lane padding (layout plumbing only).
    return out[:, :, :OH, :OW]


class Module:
    def forward(self, *inputs):
        raise NotImplementedError

    def __call__(self, *inputs):
        return self.forward(*inputs)

    def param(self):
        return []


class Conv2d(Module):
    """Forward-only JAX/Pallas re-implementation of the PyTorch Conv2d module."""

    def __init__(self, in_channels=3, out_channels=3, kernel_size=2, stride=1,
                 padding=0, key=None):
        self.in_channels = in_channels
        self.out_channels = out_channels
        self.kernel_size = kernel_size
        self.stride = stride
        self.pad = padding
        if key is None:
            key = jax.random.PRNGKey(0)
        self.init_weights(key)

    def init_weights(self, key):
        std = (2.0 / (self.kernel_size ** 2 * self.in_channels + self.out_channels)) ** 0.5
        kw_, kb_ = jax.random.split(key)
        self.weight = std * jax.random.normal(
            kw_,
            (self.out_channels, self.in_channels, self.kernel_size, self.kernel_size),
            dtype=jnp.float32,
        )
        self.bias = std * jax.random.normal(kb_, (self.out_channels,), dtype=jnp.float32)

    def forward(self, x):
        return upsample_conv2d_forward(x, self.weight, self.bias, scale=1,
                                       stride=self.stride, padding=self.pad)

    def param(self):
        return [self.weight, self.bias]


class NearestUpsampling(Module):
    """Nearest-neighbour upsampling by an integer factor (pure data movement)."""

    def __init__(self, upsampling_dim_power=2):
        self.dim_mult = upsampling_dim_power

    def forward(self, x):
        if x.ndim == 3:
            x = x[None]
        s = self.dim_mult
        return jnp.repeat(jnp.repeat(x, s, axis=2), s, axis=3)


class TransposeConv2d(Module):
    """NearestUpsampling followed by Conv2d — matches the PyTorch TransposeConv2d forward."""

    def __init__(self, in_channels=3, out_channels=3, kernel_size=2, scale_factor=2,
                 stride=1, padding=0, key=None):
        self.up = NearestUpsampling(scale_factor)
        self.conv2d = Conv2d(in_channels, out_channels, kernel_size, stride, padding, key=key)

    def forward(self, x):
        # Fused path: the nearest-upsample is folded into the conv wrapper
        # (single HBM materialization) instead of running up() then conv2d().
        return upsample_conv2d_forward(
            x, self.conv2d.weight, self.conv2d.bias,
            scale=self.up.dim_mult, stride=self.conv2d.stride, padding=self.conv2d.pad)

    def param(self):
        return self.conv2d.param()


if __name__ == "__main__":
    key = jax.random.PRNGKey(0)
    k_in, k_param = jax.random.split(key)

    # Small deterministic example: batch=2, channels=4, spatial=16.
    x = jax.random.normal(k_in, (2, 4, 16, 16), dtype=jnp.float32)

    tconv = TransposeConv2d(in_channels=4, out_channels=3, kernel_size=2,
                            scale_factor=2, stride=1, padding=0, key=k_param)

    y = jax.block_until_ready(tconv(x))

    # upsample x2 -> 32x32, conv K=2 stride=1 pad=0 -> 31x31
    assert y.shape == (2, 3, 31, 31), y.shape

    # Numerical reference: nearest upsample + standard cross-correlation + bias.
    x_up = jnp.repeat(jnp.repeat(x, 2, axis=2), 2, axis=3)
    y_ref = lax.conv_general_dilated(
        x_up, tconv.conv2d.weight, window_strides=(1, 1), padding=[(0, 0), (0, 0)],
        dimension_numbers=("NCHW", "OIHW", "NCHW"),
        precision=jax.lax.Precision.HIGHEST,
    ) + tconv.conv2d.bias[None, :, None, None]
    max_err = float(jnp.max(jnp.abs(y - y_ref)))
    assert jnp.allclose(y, y_ref, atol=1e-4, rtol=1e-4), max_err

    print("KERNEL_OK")
</pallas_src>

<mosaic_0001>
module attributes {stable_mosaic.version = 11 : i64} {
  func.func @kernel(%arg0: i32, %arg1: memref<48xf32, #tpu.memory_space<smem>>, %arg2: memref<3xf32, #tpu.memory_space<smem>>, %arg3: memref<1x4x33x129xf32, #tpu.memory_space<vmem>>, %arg4: memref<1x3x32x128xf32, #tpu.memory_space<vmem>>) attributes {dimension_semantics = [#tpu.dimension_semantics<parallel>], iteration_bounds = array<i64: 2>, scalar_prefetch = 0 : i64, scratch_operands = 0 : i64, tpu.core_type = #tpu.core_type<tc>, window_params = [{transform_indices = @transform_0, window_bounds = array<i64: 48>}, {transform_indices = @transform_1, window_bounds = array<i64: 3>}, {transform_indices = @transform_2, window_bounds = array<i64: 1, 4, 33, 129>}, {transform_indices = @transform_3, window_bounds = array<i64: 1, 3, 32, 128>}]} {
    %c0 = arith.constant 0 : index
    %0 = memref.load %arg1[%c0] : memref<48xf32, #tpu.memory_space<smem>>
    %c1 = arith.constant 1 : index
    %1 = memref.load %arg1[%c1] : memref<48xf32, #tpu.memory_space<smem>>
    %c2 = arith.constant 2 : index
    %2 = memref.load %arg1[%c2] : memref<48xf32, #tpu.memory_space<smem>>
    %c3 = arith.constant 3 : index
    %3 = memref.load %arg1[%c3] : memref<48xf32, #tpu.memory_space<smem>>
    %c4 = arith.constant 4 : index
    %4 = memref.load %arg1[%c4] : memref<48xf32, #tpu.memory_space<smem>>
    %c5 = arith.constant 5 : index
    %5 = memref.load %arg1[%c5] : memref<48xf32, #tpu.memory_space<smem>>
    %c6 = arith.constant 6 : index
    %6 = memref.load %arg1[%c6] : memref<48xf32, #tpu.memory_space<smem>>
    %c7 = arith.constant 7 : index
    %7 = memref.load %arg1[%c7] : memref<48xf32, #tpu.memory_space<smem>>
    %c8 = arith.constant 8 : index
    %8 = memref.load %arg1[%c8] : memref<48xf32, #tpu.memory_space<smem>>
    %c9 = arith.constant 9 : index
    %9 = memref.load %arg1[%c9] : memref<48xf32, #tpu.memory_space<smem>>
    %c10 = arith.constant 10 : index
    %10 = memref.load %arg1[%c10] : memref<48xf32, #tpu.memory_space<smem>>
    %c11 = arith.constant 11 : index
    %11 = memref.load %arg1[%c11] : memref<48xf32, #tpu.memory_space<smem>>
    %c12 = arith.constant 12 : index
    %12 = memref.load %arg1[%c12] : memref<48xf32, #tpu.memory_space<smem>>
    %c13 = arith.constant 13 : index
    %13 = memref.load %arg1[%c13] : memref<48xf32, #tpu.memory_space<smem>>
    %c14 = arith.constant 14 : index
    %14 = memref.load %arg1[%c14] : memref<48xf32, #tpu.memory_space<smem>>
    %c15 = arith.constant 15 : index
    %15 = memref.load %arg1[%c15] : memref<48xf32, #tpu.memory_space<smem>>
    %c16 = arith.constant 16 : index
    %16 = memref.load %arg1[%c16] : memref<48xf32, #tpu.memory_space<smem>>
    %c17 = arith.constant 17 : index
    %17 = memref.load %arg1[%c17] : memref<48xf32, #tpu.memory_space<smem>>
    %c18 = arith.constant 18 : index
    %18 = memref.load %arg1[%c18] : memref<48xf32, #tpu.memory_space<smem>>
    %c19 = arith.constant 19 : index
    %19 = memref.load %arg1[%c19] : memref<48xf32, #tpu.memory_space<smem>>
    %c20 = arith.constant 20 : index
    %20 = memref.load %arg1[%c20] : memref<48xf32, #tpu.memory_space<smem>>
    %c21 = arith.constant 21 : index
    %21 = memref.load %arg1[%c21] : memref<48xf32, #tpu.memory_space<smem>>
    %c22 = arith.constant 22 : index
    %22 = memref.load %arg1[%c22] : memref<48xf32, #tpu.memory_space<smem>>
    %c23 = arith.constant 23 : index
    %23 = memref.load %arg1[%c23] : memref<48xf32, #tpu.memory_space<smem>>
    %c24 = arith.constant 24 : index
    %24 = memref.load %arg1[%c24] : memref<48xf32, #tpu.memory_space<smem>>
    %c25 = arith.constant 25 : index
    %25 = memref.load %arg1[%c25] : memref<48xf32, #tpu.memory_space<smem>>
    %c26 = arith.constant 26 : index
    %26 = memref.load %arg1[%c26] : memref<48xf32, #tpu.memory_space<smem>>
    %c27 = arith.constant 27 : index
    %27 = memref.load %arg1[%c27] : memref<48xf32, #tpu.memory_space<smem>>
    %c28 = arith.constant 28 : index
    %28 = memref.load %arg1[%c28] : memref<48xf32, #tpu.memory_space<smem>>
    %c29 = arith.constant 29 : index
    %29 = memref.load %arg1[%c29] : memref<48xf32, #tpu.memory_space<smem>>
    %c30 = arith.constant 30 : index
    %30 = memref.load %arg1[%c30] : memref<48xf32, #tpu.memory_space<smem>>
    %c31 = arith.constant 31 : index
    %31 = memref.load %arg1[%c31] : memref<48xf32, #tpu.memory_space<smem>>
    %c32 = arith.constant 32 : index
    %32 = memref.load %arg1[%c32] : memref<48xf32, #tpu.memory_space<smem>>
    %c33 = arith.constant 33 : index
    %33 = memref.load %arg1[%c33] : memref<48xf32, #tpu.memory_space<smem>>
    %c34 = arith.constant 34 : index
    %34 = memref.load %arg1[%c34] : memref<48xf32, #tpu.memory_space<smem>>
    %c35 = arith.constant 35 : index
    %35 = memref.load %arg1[%c35] : memref<48xf32, #tpu.memory_space<smem>>
    %c36 = arith.constant 36 : index
    %36 = memref.load %arg1[%c36] : memref<48xf32, #tpu.memory_space<smem>>
    %c37 = arith.constant 37 : index
    %37 = memref.load %arg1[%c37] : memref<48xf32, #tpu.memory_space<smem>>
    %c38 = arith.constant 38 : index
    %38 = memref.load %arg1[%c38] : memref<48xf32, #tpu.memory_space<smem>>
    %c39 = arith.constant 39 : index
    %39 = memref.load %arg1[%c39] : memref<48xf32, #tpu.memory_space<smem>>
    %c40 = arith.constant 40 : index
    %40 = memref.load %arg1[%c40] : memref<48xf32, #tpu.memory_space<smem>>
    %c41 = arith.constant 41 : index
    %41 = memref.load %arg1[%c41] : memref<48xf32, #tpu.memory_space<smem>>
    %c42 = arith.constant 42 : index
    %42 = memref.load %arg1[%c42] : memref<48xf32, #tpu.memory_space<smem>>
    %c43 = arith.constant 43 : index
    %43 = memref.load %arg1[%c43] : memref<48xf32, #tpu.memory_space<smem>>
    %c44 = arith.constant 44 : index
    %44 = memref.load %arg1[%c44] : memref<48xf32, #tpu.memory_space<smem>>
    %c45 = arith.constant 45 : index
    %45 = memref.load %arg1[%c45] : memref<48xf32, #tpu.memory_space<smem>>
    %c46 = arith.constant 46 : index
    %46 = memref.load %arg1[%c46] : memref<48xf32, #tpu.memory_space<smem>>
    %c47 = arith.constant 47 : index
    %47 = memref.load %arg1[%c47] : memref<48xf32, #tpu.memory_space<smem>>
    %c0_0 = arith.constant 0 : index
    %48 = memref.load %arg2[%c0_0] : memref<3xf32, #tpu.memory_space<smem>>
    %c1_1 = arith.constant 1 : index
    %49 = memref.load %arg2[%c1_1] : memref<3xf32, #tpu.memory_space<smem>>
    %c2_2 = arith.constant 2 : index
    %50 = memref.load %arg2[%c2_2] : memref<3xf32, #tpu.memory_space<smem>>
    %cst = arith.constant 0.000000e+00 : f32
    %51 = vector.broadcast %cst : f32 to vector<8x128xf32>
    %52 = vector.broadcast %48 : f32 to vector<8x128xf32>
    %53 = arith.addf %51, %52 : vector<8x128xf32>
    %cst_3 = arith.constant 0.000000e+00 : f32
    %54 = vector.broadcast %cst_3 : f32 to vector<8x128xf32>
    %55 = vector.broadcast %49 : f32 to vector<8x128xf32>
    %56 = arith.addf %54, %55 : vector<8x128xf32>
    %cst_4 = arith.constant 0.000000e+00 : f32
    %57 = vector.broadcast %cst_4 : f32 to vector<8x128xf32>
    %58 = vector.broadcast %50 : f32 to vector<8x128xf32>
    %59 = arith.addf %57, %58 : vector<8x128xf32>
    %c0_5 = arith.constant 0 : index
    %c0_6 = arith.constant 0 : index
    %c0_7 = arith.constant 0 : index
    %c0_8 = arith.constant 0 : index
    %60 = vector.load %arg3[%c0_5, %c0_6, %c0_7, %c0_8] : memref<1x4x33x129xf32, #tpu.memory_space<vmem>>, vector<1x1x8x128xf32>
    %61 = vector.shape_cast %60 : vector<1x1x8x128xf32> to vector<8x128xf32>
    %62 = vector.broadcast %0 : f32 to vector<8x128xf32>
    %63 = arith.mulf %62, %61 : vector<8x128xf32>
    %64 = arith.addf %53, %63 : vector<8x128xf32>
    %65 = vector.broadcast %16 : f32 to vector<8x128xf32>
    %66 = arith.mulf %65, %61 : vector<8x128xf32>
    %67 = arith.addf %56, %66 : vector<8x128xf32>
    %68 = vector.broadcast %32 : f32 to vector<8x128xf32>
    %69 = arith.mulf %68, %61 : vector<8x128xf32>
    %70 = arith.addf %59, %69 : vector<8x128xf32>
    %c0_9 = arith.constant 0 : index
    %c0_10 = arith.constant 0 : index
    %c0_11 = arith.constant 0 : index
    %c1_12 = arith.constant 1 : index
    %71 = vector.load %arg3[%c0_9, %c0_10, %c0_11, %c1_12] : memref<1x4x33x129xf32, #tpu.memory_space<vmem>>, vector<1x1x8x128xf32>
    %72 = vector.shape_cast %71 : vector<1x1x8x128xf32> to vector<8x128xf32>
    %73 = vector.broadcast %1 : f32 to vector<8x128xf32>
    %74 = arith.mulf %73, %72 : vector<8x128xf32>
    %75 = arith.addf %64, %74 : vector<8x128xf32>
    %76 = vector.broadcast %17 : f32 to vector<8x128xf32>
    %77 = arith.mulf %76, %72 : vector<8x128xf32>
    %78 = arith.addf %67, %77 : vector<8x128xf32>
    %79 = vector.broadcast %33 : f32 to vector<8x128xf32>
    %80 = arith.mulf %79, %72 : vector<8x128xf32>
    %81 = arith.addf %70, %80 : vector<8x128xf32>
    %c0_13 = arith.constant 0 : index
    %c0_14 = arith.constant 0 : index
    %c1_15 = arith.constant 1 : index
    %c0_16 = arith.constant 0 : index
    %82 = vector.load %arg3[%c0_13, %c0_14, %c1_15, %c0_16] : memref<1x4x33x129xf32, #tpu.memory_space<vmem>>, vector<1x1x8x128xf32>
    %83 = vector.shape_cast %82 : vector<1x1x8x128xf32> to vector<8x128xf32>
    %84 = vector.broadcast %2 : f32 to vector<8x128xf32>
    %85 = arith.mulf %84, %83 : vector<8x128xf32>
    %86 = arith.addf %75, %85 : vector<8x128xf32>
    %87 = vector.broadcast %18 : f32 to vector<8x128xf32>
    %88 = arith.mulf %87, %83 : vector<8x128xf32>
    %89 = arith.addf %78, %88 : vector<8x128xf32>
    %90 = vector.broadcast %34 : f32 to vector<8x128xf32>
    %91 = arith.mulf %90, %83 : vector<8x128xf32>
    %92 = arith.addf %81, %91 : vector<8x128xf32>
    %c0_17 = arith.constant 0 : index
    %c0_18 = arith.constant 0 : index
    %c1_19 = arith.constant 1 : index
    %c1_20 = arith.constant 1 : index
    %93 = vector.load %arg3[%c0_17, %c0_18, %c1_19, %c1_20] : memref<1x4x33x129xf32, #tpu.memory_space<vmem>>, vector<1x1x8x128xf32>
    %94 = vector.shape_cast %93 : vector<1x1x8x128xf32> to vector<8x128xf32>
    %95 = vector.broadcast %3 : f32 to vector<8x128xf32>
    %96 = arith.mulf %95, %94 : vector<8x128xf32>
    %97 = arith.addf %86, %96 : vector<8x128xf32>
    %98 = vector.broadcast %19 : f32 to vector<8x128xf32>
    %99 = arith.mulf %98, %94 : vector<8x128xf32>
    %100 = arith.addf %89, %99 : vector<8x128xf32>
    %101 = vector.broadcast %35 : f32 to vector<8x128xf32>
    %102 = arith.mulf %101, %94 : vector<8x128xf32>
    %103 = arith.addf %92, %102 : vector<8x128xf32>
    %c0_21 = arith.constant 0 : index
    %c1_22 = arith.constant 1 : index
    %c0_23 = arith.constant 0 : index
    %c0_24 = arith.constant 0 : index
    %104 = vector.load %arg3[%c0_21, %c1_22, %c0_23, %c0_24] : memref<1x4x33x129xf32, #tpu.memory_space<vmem>>, vector<1x1x8x128xf32>
    %105 = vector.shape_cast %104 : vector<1x1x8x128xf32> to vector<8x128xf32>
    %106 = vector.broadcast %4 : f32 to vector<8x128xf32>
    %107 = arith.mulf %106, %105 : vector<8x128xf32>
    %108 = arith.addf %97, %107 : vector<8x128xf32>
    %109 = vector.broadcast %20 : f32 to vector<8x128xf32>
    %110 = arith.mulf %109, %105 : vector<8x128xf32>
    %111 = arith.addf %100, %110 : vector<8x128xf32>
    %112 = vector.broadcast %36 : f32 to vector<8x128xf32>
    %113 = arith.mulf %112, %105 : vector<8x128xf32>
    %114 = arith.addf %103, %113 : vector<8x128xf32>
    %c0_25 = arith.constant 0 : index
    %c1_26 = arith.constant 1 : index
    %c0_27 = arith.constant 0 : index
    %c1_28 = arith.constant 1 : index
    %115 = vector.load %arg3[%c0_25, %c1_26, %c0_27, %c1_28] : memref<1x4x33x129xf32, #tpu.memory_space<vmem>>, vector<1x1x8x128xf32>
    %116 = vector.shape_cast %115 : vector<1x1x8x128xf32> to vector<8x128xf32>
    %117 = vector.broadcast %5 : f32 to vector<8x128xf32>
    %118 = arith.mulf %117, %116 : vector<8x128xf32>
    %119 = arith.addf %108, %118 : vector<8x128xf32>
    %120 = vector.broadcast %21 : f32 to vector<8x128xf32>
    %121 = arith.mulf %120, %116 : vector<8x128xf32>
    %122 = arith.addf %111, %121 : vector<8x128xf32>
    %123 = vector.broadcast %37 : f32 to vector<8x128xf32>
    %124 = arith.mulf %123, %116 : vector<8x128xf32>
    %125 = arith.addf %114, %124 : vector<8x128xf32>
    %c0_29 = arith.constant 0 : index
    %c1_30 = arith.constant 1 : index
    %c1_31 = arith.constant 1 : index
    %c0_32 = arith.constant 0 : index
    %126 = vector.load %arg3[%c0_29, %c1_30, %c1_31, %c0_32] : memref<1x4x33x129xf32, #tpu.memory_space<vmem>>, vector<1x1x8x128xf32>
    %127 = vector.shape_cast %126 : vector<1x1x8x128xf32> to vector<8x128xf32>
    %128 = vector.broadcast %6 : f32 to vector<8x128xf32>
    %129 = arith.mulf %128, %127 : vector<8x128xf32>
    %130 = arith.addf %119, %129 : vector<8x128xf32>
    %131 = vector.broadcast %22 : f32 to vector<8x128xf32>
    %132 = arith.mulf %131, %127 : vector<8x128xf32>
    %133 = arith.addf %122, %132 : vector<8x128xf32>
    %134 = vector.broadcast %38 : f32 to vector<8x128xf32>
    %135 = arith.mulf %134, %127 : vector<8x128xf32>
    %136 = arith.addf %125, %135 : vector<8x128xf32>
    %c0_33 = arith.constant 0 : index
    %c1_34 = arith.constant 1 : index
    %c1_35 = arith.constant 1 : index
    %c1_36 = arith.constant 1 : index
    %137 = vector.load %arg3[%c0_33, %c1_34, %c1_35, %c1_36] : memref<1x4x33x129xf32, #tpu.memory_space<vmem>>, vector<1x1x8x128xf32>
    %138 = vector.shape_cast %137 : vector<1x1x8x128xf32> to vector<8x128xf32>
    %139 = vector.broadcast %7 : f32 to vector<8x128xf32>
    %140 = arith.mulf %139, %138 : vector<8x128xf32>
    %141 = arith.addf %130, %140 : vector<8x128xf32>
    %142 = vector.broadcast %23 : f32 to vector<8x128xf32>
    %143 = arith.mulf %142, %138 : vector<8x128xf32>
    %144 = arith.addf %133, %143 : vector<8x128xf32>
    %145 = vector.broadcast %39 : f32 to vector<8x128xf32>
    %146 = arith.mulf %145, %138 : vector<8x128xf32>
    %147 = arith.addf %136, %146 : vector<8x128xf32>
    %c0_37 = arith.constant 0 : index
    %c2_38 = arith.constant 2 : index
    %c0_39 = arith.constant 0 : index
    %c0_40 = arith.constant 0 : index
    %148 = vector.load %arg3[%c0_37, %c2_38, %c0_39, %c0_40] : memref<1x4x33x129xf32, #tpu.memory_space<vmem>>, vector<1x1x8x128xf32>
    %149 = vector.shape_cast %148 : vector<1x1x8x128xf32> to vector<8x128xf32>
    %150 = vector.broadcast %8 : f32 to vector<8x128xf32>
    %151 = arith.mulf %150, %149 : vector<8x128xf32>
    %152 = arith.addf %141, %151 : vector<8x128xf32>
    %153 = vector.broadcast %24 : f32 to vector<8x128xf32>
    %154 = arith.mulf %153, %149 : vector<8x128xf32>
    %155 = arith.addf %144, %154 : vector<8x128xf32>
    %156 = vector.broadcast %40 : f32 to vector<8x128xf32>
    %157 = arith.mulf %156, %149 : vector<8x128xf32>
    %158 = arith.addf %147, %157 : vector<8x128xf32>
    %c0_41 = arith.constant 0 : index
    %c2_42 = arith.constant 2 : index
    %c0_43 = arith.constant 0 : index
    %c1_44 = arith.constant 1 : index
    %159 = vector.load %arg3[%c0_41, %c2_42, %c0_43, %c1_44] : memref<1x4x33x129xf32, #tpu.memory_space<vmem>>, vector<1x1x8x128xf32>
    %160 = vector.shape_cast %159 : vector<1x1x8x128xf32> to vector<8x128xf32>
    %161 = vector.broadcast %9 : f32 to vector<8x128xf32>
    %162 = arith.mulf %161, %160 : vector<8x128xf32>
    %163 = arith.addf %152, %162 : vector<8x128xf32>
    %164 = vector.broadcast %25 : f32 to vector<8x128xf32>
    %165 = arith.mulf %164, %160 : vector<8x128xf32>
    %166 = arith.addf %155, %165 : vector<8x128xf32>
    %167 = vector.broadcast %41 : f32 to vector<8x128xf32>
    %168 = arith.mulf %167, %160 : vector<8x128xf32>
    %169 = arith.addf %158, %168 : vector<8x128xf32>
    %c0_45 = arith.constant 0 : index
    %c2_46 = arith.constant 2 : index
    %c1_47 = arith.constant 1 : index
    %c0_48 = arith.constant 0 : index
    %170 = vector.load %arg3[%c0_45, %c2_46, %c1_47, %c0_48] : memref<1x4x33x129xf32, #tpu.memory_space<vmem>>, vector<1x1x8x128xf32>
    %171 = vector.shape_cast %170 : vector<1x1x8x128xf32> to vector<8x128xf32>
    %172 = vector.broadcast %10 : f32 to vector<8x128xf32>
    %173 = arith.mulf %172, %171 : vector<8x128xf32>
    %174 = arith.addf %163, %173 : vector<8x128xf32>
    %175 = vector.broadcast %26 : f32 to vector<8x128xf32>
    %176 = arith.mulf %175, %171 : vector<8x128xf32>
    %177 = arith.addf %166, %176 : vector<8x128xf32>
    %178 = vector.broadcast %42 : f32 to vector<8x128xf32>
    %179 = arith.mulf %178, %171 : vector<8x128xf32>
    %180 = arith.addf %169, %179 : vector<8x128xf32>
    %c0_49 = arith.constant 0 : index
    %c2_50 = arith.constant 2 : index
    %c1_51 = arith.constant 1 : index
    %c1_52 = arith.constant 1 : index
    %181 = vector.load %arg3[%c0_49, %c2_50, %c1_51, %c1_52] : memref<1x4x33x129xf32, #tpu.memory_space<vmem>>, vector<1x1x8x128xf32>
    %182 = vector.shape_cast %181 : vector<1x1x8x128xf32> to vector<8x128xf32>
    %183 = vector.broadcast %11 : f32 to vector<8x128xf32>
    %184 = arith.mulf %183, %182 : vector<8x128xf32>
    %185 = arith.addf %174, %184 : vector<8x128xf32>
    %186 = vector.broadcast %27 : f32 to vector<8x128xf32>
    %187 = arith.mulf %186, %182 : vector<8x128xf32>
    %188 = arith.addf %177, %187 : vector<8x128xf32>
    %189 = vector.broadcast %43 : f32 to vector<8x128xf32>
    %190 = arith.mulf %189, %182 : vector<8x128xf32>
    %191 = arith.addf %180, %190 : vector<8x128xf32>
    %c0_53 = arith.constant 0 : index
    %c3_54 = arith.constant 3 : index
    %c0_55 = arith.constant 0 : index
    %c0_56 = arith.constant 0 : index
    %192 = vector.load %arg3[%c0_53, %c3_54, %c0_55, %c0_56] : memref<1x4x33x129xf32, #tpu.memory_space<vmem>>, vector<1x1x8x128xf32>
    %193 = vector.shape_cast %192 : vector<1x1x8x128xf32> to vector<8x128xf32>
    %194 = vector.broadcast %12 : f32 to vector<8x128xf32>
    %195 = arith.mulf %194, %193 : vector<8x128xf32>
    %196 = arith.addf %185, %195 : vector<8x128xf32>
    %197 = vector.broadcast %28 : f32 to vector<8x128xf32>
    %198 = arith.mulf %197, %193 : vector<8x128xf32>
    %199 = arith.addf %188, %198 : vector<8x128xf32>
    %200 = vector.broadcast %44 : f32 to vector<8x128xf32>
    %201 = arith.mulf %200, %193 : vector<8x128xf32>
    %202 = arith.addf %191, %201 : vector<8x128xf32>
    %c0_57 = arith.constant 0 : index
    %c3_58 = arith.constant 3 : index
    %c0_59 = arith.constant 0 : index
    %c1_60 = arith.constant 1 : index
    %203 = vector.load %arg3[%c0_57, %c3_58, %c0_59, %c1_60] : memref<1x4x33x129xf32, #tpu.memory_space<vmem>>, vector<1x1x8x128xf32>
    %204 = vector.shape_cast %203 : vector<1x1x8x128xf32> to vector<8x128xf32>
    %205 = vector.broadcast %13 : f32 to vector<8x128xf32>
    %206 = arith.mulf %205, %204 : vector<8x128xf32>
    %207 = arith.addf %196, %206 : vector<8x128xf32>
    %208 = vector.broadcast %29 : f32 to vector<8x128xf32>
    %209 = arith.mulf %208, %204 : vector<8x128xf32>
    %210 = arith.addf %199, %209 : vector<8x128xf32>
    %211 = vector.broadcast %45 : f32 to vector<8x128xf32>
    %212 = arith.mulf %211, %204 : vector<8x128xf32>
    %213 = arith.addf %202, %212 : vector<8x128xf32>
    %c0_61 = arith.constant 0 : index
    %c3_62 = arith.constant 3 : index
    %c1_63 = arith.constant 1 : index
    %c0_64 = arith.constant 0 : index
    %214 = vector.load %arg3[%c0_61, %c3_62, %c1_63, %c0_64] : memref<1x4x33x129xf32, #tpu.memory_space<vmem>>, vector<1x1x8x128xf32>
    %215 = vector.shape_cast %214 : vector<1x1x8x128xf32> to vector<8x128xf32>
    %216 = vector.broadcast %14 : f32 to vector<8x128xf32>
    %217 = arith.mulf %216, %215 : vector<8x128xf32>
    %218 = arith.addf %207, %217 : vector<8x128xf32>
    %219 = vector.broadcast %30 : f32 to vector<8x128xf32>
    %220 = arith.mulf %219, %215 : vector<8x128xf32>
    %221 = arith.addf %210, %220 : vector<8x128xf32>
    %222 = vector.broadcast %46 : f32 to vector<8x128xf32>
    %223 = arith.mulf %222, %215 : vector<8x128xf32>
    %224 = arith.addf %213, %223 : vector<8x128xf32>
    %c0_65 = arith.constant 0 : index
    %c3_66 = arith.constant 3 : index
    %c1_67 = arith.constant 1 : index
    %c1_68 = arith.constant 1 : index
    %225 = vector.load %arg3[%c0_65, %c3_66, %c1_67, %c1_68] : memref<1x4x33x129xf32, #tpu.memory_space<vmem>>, vector<1x1x8x128xf32>
    %226 = vector.shape_cast %225 : vector<1x1x8x128xf32> to vector<8x128xf32>
    %227 = vector.broadcast %15 : f32 to vector<8x128xf32>
    %228 = arith.mulf %227, %226 : vector<8x128xf32>
    %229 = arith.addf %218, %228 : vector<8x128xf32>
    %230 = vector.broadcast %31 : f32 to vector<8x128xf32>
    %231 = arith.mulf %230, %226 : vector<8x128xf32>
    %232 = arith.addf %221, %231 : vector<8x128xf32>
    %233 = vector.broadcast %47 : f32 to vector<8x128xf32>
    %234 = arith.mulf %233, %226 : vector<8x128xf32>
    %235 = arith.addf %224, %234 : vector<8x128xf32>
    %c0_69 = arith.constant 0 : index
    %c0_70 = arith.constant 0 : index
    %c0_71 = arith.constant 0 : index
    %c0_72 = arith.constant 0 : index
    %236 = vector.load %arg4[%c0_69, %c0_70, %c0_71, %c0_72] : memref<1x3x32x128xf32, #tpu.memory_space<vmem>>, vector<1x1x8x128xf32>
    %237 = vector.shape_cast %236 : vector<1x1x8x128xf32> to vector<8x128xf32>
    %238 = vector.shape_cast %229 : vector<8x128xf32> to vector<1x1x8x128xf32>
    tpu.vector_store %arg4[%c0_69, %c0_70, %c0_71, %c0_72], %238 {strides = array<i32>} : memref<1x3x32x128xf32, #tpu.memory_space<vmem>>, vector<1x1x8x128xf32>,
    %c0_73 = arith.constant 0 : index
    %c1_74 = arith.constant 1 : index
    %c0_75 = arith.constant 0 : index
    %c0_76 = arith.constant 0 : index
    %239 = vector.load %arg4[%c0_73, %c1_74, %c0_75, %c0_76] : memref<1x3x32x128xf32, #tpu.memory_space<vmem>>, vector<1x1x8x128xf32>
    %240 = vector.shape_cast %239 : vector<1x1x8x128xf32> to vector<8x128xf32>
    %241 = vector.shape_cast %232 : vector<8x128xf32> to vector<1x1x8x128xf32>
    tpu.vector_store %arg4[%c0_73, %c1_74, %c0_75, %c0_76], %241 {strides = array<i32>} : memref<1x3x32x128xf32, #tpu.memory_space<vmem>>, vector<1x1x8x128xf32>,
    %c0_77 = arith.constant 0 : index
    %c2_78 = arith.constant 2 : index
    %c0_79 = arith.constant 0 : index
    %c0_80 = arith.constant 0 : index
    %242 = vector.load %arg4[%c0_77, %c2_78, %c0_79, %c0_80] : memref<1x3x32x128xf32, #tpu.memory_space<vmem>>, vector<1x1x8x128xf32>
    %243 = vector.shape_cast %242 : vector<1x1x8x128xf32> to vector<8x128xf32>
    %244 = vector.shape_cast %235 : vector<8x128xf32> to vector<1x1x8x128xf32>
    tpu.vector_store %arg4[%c0_77, %c2_78, %c0_79, %c0_80], %244 {strides = array<i32>} : memref<1x3x32x128xf32, #tpu.memory_space<vmem>>, vector<1x1x8x128xf32>,
    %cst_81 = arith.constant 0.000000e+00 : f32
    %245 = vector.broadcast %cst_81 : f32 to vector<8x128xf32>
    %246 = vector.broadcast %48 : f32 to vector<8x128xf32>
    %247 = arith.addf %245, %246 : vector<8x128xf32>
    %cst_82 = arith.constant 0.000000e+00 : f32
    %248 = vector.broadcast %cst_82 : f32 to vector<8x128xf32>
    %249 = vector.broadcast %49 : f32 to vector<8x128xf32>
    %250 = arith.addf %248, %249 : vector<8x128xf32>
    %cst_83 = arith.constant 0.000000e+00 : f32
    %251 = vector.broadcast %cst_83 : f32 to vector<8x128xf32>
    %252 = vector.broadcast %50 : f32 to vector<8x128xf32>
    %253 = arith.addf %251, %252 : vector<8x128xf32>
    %c0_84 = arith.constant 0 : index
    %c0_85 = arith.constant 0 : index
    %c8_86 = arith.constant 8 : index
    %c0_87 = arith.constant 0 : index
    %254 = vector.load %arg3[%c0_84, %c0_85, %c8_86, %c0_87] : memref<1x4x33x129xf32, #tpu.memory_space<vmem>>, vector<1x1x8x128xf32>
    %255 = vector.shape_cast %254 : vector<1x1x8x128xf32> to vector<8x128xf32>
    %256 = vector.broadcast %0 : f32 to vector<8x128xf32>
    %257 = arith.mulf %256, %255 : vector<8x128xf32>
    %258 = arith.addf %247, %257 : vector<8x128xf32>
    %259 = vector.broadcast %16 : f32 to vector<8x128xf32>
    %260 = arith.mulf %259, %255 : vector<8x128xf32>
    %261 = arith.addf %250, %260 : vector<8x128xf32>
    %262 = vector.broadcast %32 : f32 to vector<8x128xf32>
    %263 = arith.mulf %262, %255 : vector<8x128xf32>
    %264 = arith.addf %253, %263 : vector<8x128xf32>
    %c0_88 = arith.constant 0 : index
    %c0_89 = arith.constant 0 : index
    %c8_90 = arith.constant 8 : index
    %c1_91 = arith.constant 1 : index
    %265 = vector.load %arg3[%c0_88, %c0_89, %c8_90, %c1_91] : memref<1x4x33x129xf32, #tpu.memory_space<vmem>>, vector<1x1x8x128xf32>
    %266 = vector.shape_cast %265 : vector<1x1x8x128xf32> to vector<8x128xf32>
    %267 = vector.broadcast %1 : f32 to vector<8x128xf32>
    %268 = arith.mulf %267, %266 : vector<8x128xf32>
    %269 = arith.addf %258, %268 : vector<8x128xf32>
    %270 = vector.broadcast %17 : f32 to vector<8x128xf32>
    %271 = arith.mulf %270, %266 : vector<8x128xf32>
    %272 = arith.addf %261, %271 : vector<8x128xf32>
    %273 = vector.broadcast %33 : f32 to vector<8x128xf32>
    %274 = arith.mulf %273, %266 : vector<8x128xf32>
    %275 = arith.addf %264, %274 : vector<8x128xf32>
    %c0_92 = arith.constant 0 : index
    %c0_93 = arith.constant 0 : index
    %c9_94 = arith.constant 9 : index
    %c0_95 = arith.constant 0 : index
    %276 = vector.load %arg3[%c0_92, %c0_93, %c9_94, %c0_95] : memref<1x4x33x129xf32, #tpu.memory_space<vmem>>, vector<1x1x8x128xf32>
    %277 = vector.shape_cast %276 : vector<1x1x8x128xf32> to vector<8x128xf32>
    %278 = vector.broadcast %2 : f32 to vector<8x128xf32>
    %279 = arith.mulf %278, %277 : vector<8x128xf32>
    %280 = arith.addf %269, %279 : vector<8x128xf32>
    %281 = vector.broadcast %18 : f32 to vector<8x128xf32>
    %282 = arith.mulf %281, %277 : vector<8x128xf32>
    %283 = arith.addf %272, %282 : vector<8x128xf32>
    %284 = vector.broadcast %34 : f32 to vector<8x128xf32>
    %285 = arith.mulf %284, %277 : vector<8x128xf32>
    %286 = arith.addf %275, %285 : vector<8x128xf32>
    %c0_96 = arith.constant 0 : index
    %c0_97 = arith.constant 0 : index
    %c9_98 = arith.constant 9 : index
    %c1_99 = arith.constant 1 : index
    %287 = vector.load %arg3[%c0_96, %c0_97, %c9_98, %c1_99] : memref<1x4x33x129xf32, #tpu.memory_space<vmem>>, vector<1x1x8x128xf32>
    %288 = vector.shape_cast %287 : vector<1x1x8x128xf32> to vector<8x128xf32>
    %289 = vector.broadcast %3 : f32 to vector<8x128xf32>
    %290 = arith.mulf %289, %288 : vector<8x128xf32>
    %291 = arith.addf %280, %290 : vector<8x128xf32>
    %292 = vector.broadcast %19 : f32 to vector<8x128xf32>
    %293 = arith.mulf %292, %288 : vector<8x128xf32>
    %294 = arith.addf %283, %293 : vector<8x128xf32>
    %295 = vector.broadcast %35 : f32 to vector<8x128xf32>
    %296 = arith.mulf %295, %288 : vector<8x128xf32>
    %297 = arith.addf %286, %296 : vector<8x128xf32>
    %c0_100 = arith.constant 0 : index
    %c1_101 = arith.constant 1 : index
    %c8_102 = arith.constant 8 : index
    %c0_103 = arith.constant 0 : index
    %298 = vector.load %arg3[%c0_100, %c1_101, %c8_102, %c0_103] : memref<1x4x33x129xf32, #tpu.memory_space<vmem>>, vector<1x1x8x128xf32>
    %299 = vector.shape_cast %298 : vector<1x1x8x128xf32> to vector<8x128xf32>
    %300 = vector.broadcast %4 : f32 to vector<8x128xf32>
    %301 = arith.mulf %300, %299 : vector<8x128xf32>
    %302 = arith.addf %291, %301 : vector<8x128xf32>
    %303 = vector.broadcast %20 : f32 to vector<8x128xf32>
    %304 = arith.mulf %303, %299 : vector<8x128xf32>
    %305 = arith.addf %294, %304 : vector<8x128xf32>
    %306 = vector.broadcast %36 : f32 to vector<8x128xf32>
    %307 = arith.mulf %306, %299 : vector<8x128xf32>
    %308 = arith.addf %297, %307 : vector<8x128xf32>
    %c0_104 = arith.constant 0 : index
    %c1_105 = arith.constant 1 : index
    %c8_106 = arith.constant 8 : index
    %c1_107 = arith.constant 1 : index
    %309 = vector.load %arg3[%c0_104, %c1_105, %c8_106, %c1_107] : memref<1x4x33x129xf32, #tpu.memory_space<vmem>>, vector<1x1x8x128xf32>
    %310 = vector.shape_cast %309 : vector<1x1x8x128xf32> to vector<8x128xf32>
    %311 = vector.broadcast %5 : f32 to vector<8x128xf32>
    %312 = arith.mulf %311, %310 : vector<8x128xf32>
    %313 = arith.addf %302, %312 : vector<8x128xf32>
    %314 = vector.broadcast %21 : f32 to vector<8x128xf32>
    %315 = arith.mulf %314, %310 : vector<8x128xf32>
    %316 = arith.addf %305, %315 : vector<8x128xf32>
    %317 = vector.broadcast %37 : f32 to vector<8x128xf32>
    %318 = arith.mulf %317, %310 : vector<8x128xf32>
    %319 = arith.addf %308, %318 : vector<8x128xf32>
    %c0_108 = arith.constant 0 : index
    %c1_109 = arith.constant 1 : index
    %c9_110 = arith.constant 9 : index
    %c0_111 = arith.constant 0 : index
    %320 = vector.load %arg3[%c0_108, %c1_109, %c9_110, %c0_111] : memref<1x4x33x129xf32, #tpu.memory_space<vmem>>, vector<1x1x8x128xf32>
    %321 = vector.shape_cast %320 : vector<1x1x8x128xf32> to vector<8x128xf32>
    %322 = vector.broadcast %6 : f32 to vector<8x128xf32>
    %323 = arith.mulf %322, %321 : vector<8x128xf32>
    %324 = arith.addf %313, %323 : vector<8x128xf32>
    %325 = vector.broadcast %22 : f32 to vector<8x128xf32>
    %326 = arith.mulf %325, %321 : vector<8x128xf32>
    %327 = arith.addf %316, %326 : vector<8x128xf32>
    %328 = vector.broadcast %38 : f32 to vector<8x128xf32>
    %329 = arith.mulf %328, %321 : vector<8x128xf32>
    %330 = arith.addf %319, %329 : vector<8x128xf32>
    %c0_112 = arith.constant 0 : index
    %c1_113 = arith.constant 1 : index
    %c9_114 = arith.constant 9 : index
    %c1_115 = arith.constant 1 : index
    %331 = vector.load %arg3[%c0_112, %c1_113, %c9_114, %c1_115] : memref<1x4x33x129xf32, #tpu.memory_space<vmem>>, vector<1x1x8x128xf32>
    %332 = vector.shape_cast %331 : vector<1x1x8x128xf32> to vector<8x128xf32>
    %333 = vector.broadcast %7 : f32 to vector<8x128xf32>
    %334 = arith.mulf %333, %332 : vector<8x128xf32>
    %335 = arith.addf %324, %334 : vector<8x128xf32>
    %336 = vector.broadcast %23 : f32 to vector<8x128xf32>
    %337 = arith.mulf %336, %332 : vector<8x128xf32>
    %338 = arith.addf %327, %337 : vector<8x128xf32>
    %339 = vector.broadcast %39 : f32 to vector<8x128xf32>
    %340 = arith.mulf %339, %332 : vector<8x128xf32>
    %341 = arith.addf %330, %340 : vector<8x128xf32>
    %c0_116 = arith.constant 0 : index
    %c2_117 = arith.constant 2 : index
    %c8_118 = arith.constant 8 : index
    %c0_119 = arith.constant 0 : index
    %342 = vector.load %arg3[%c0_116, %c2_117, %c8_118, %c0_119] : memref<1x4x33x129xf32, #tpu.memory_space<vmem>>, vector<1x1x8x128xf32>
    %343 = vector.shape_cast %342 : vector<1x1x8x128xf32> to vector<8x128xf32>
    %344 = vector.broadcast %8 : f32 to vector<8x128xf32>
    %345 = arith.mulf %344, %343 : vector<8x128xf32>
    %346 = arith.addf %335, %345 : vector<8x128xf32>
    %347 = vector.broadcast %24 : f32 to vector<8x128xf32>
    %348 = arith.mulf %347, %343 : vector<8x128xf32>
    %349 = arith.addf %338, %348 : vector<8x128xf32>
    %350 = vector.broadcast %40 : f32 to vector<8x128xf32>
    %351 = arith.mulf %350, %343 : vector<8x128xf32>
    %352 = arith.addf %341, %351 : vector<8x128xf32>
    %c0_120 = arith.constant 0 : index
    %c2_121 = arith.constant 2 : index
    %c8_122 = arith.constant 8 : index
    %c1_123 = arith.constant 1 : index
    %353 = vector.load %arg3[%c0_120, %c2_121, %c8_122, %c1_123] : memref<1x4x33x129xf32, #tpu.memory_space<vmem>>, vector<1x1x8x128xf32>
    %354 = vector.shape_cast %353 : vector<1x1x8x128xf32> to vector<8x128xf32>
    %355 = vector.broadcast %9 : f32 to vector<8x128xf32>
    %356 = arith.mulf %355, %354 : vector<8x128xf32>
    %357 = arith.addf %346, %356 : vector<8x128xf32>
    %358 = vector.broadcast %25 : f32 to vector<8x128xf32>
    %359 = arith.mulf %358, %354 : vector<8x128xf32>
    %360 = arith.addf %349, %359 : vector<8x128xf32>
    %361 = vector.broadcast %41 : f32 to vector<8x128xf32>
    %362 = arith.mulf %361, %354 : vector<8x128xf32>
    %363 = arith.addf %352, %362 : vector<8x128xf32>
    %c0_124 = arith.constant 0 : index
    %c2_125 = arith.constant 2 : index
    %c9_126 = arith.constant 9 : index
    %c0_127 = arith.constant 0 : index
    %364 = vector.load %arg3[%c0_124, %c2_125, %c9_126, %c0_127] : memref<1x4x33x129xf32, #tpu.memory_space<vmem>>, vector<1x1x8x128xf32>
    %365 = vector.shape_cast %364 : vector<1x1x8x128xf32> to vector<8x128xf32>
    %366 = vector.broadcast %10 : f32 to vector<8x128xf32>
    %367 = arith.mulf %366, %365 : vector<8x128xf32>
    %368 = arith.addf %357, %367 : vector<8x128xf32>
    %369 = vector.broadcast %26 : f32 to vector<8x128xf32>
    %370 = arith.mulf %369, %365 : vector<8x128xf32>
    %371 = arith.addf %360, %370 : vector<8x128xf32>
    %372 = vector.broadcast %42 : f32 to vector<8x128xf32>
    %373 = arith.mulf %372, %365 : vector<8x128xf32>
    %374 = arith.addf %363, %373 : vector<8x128xf32>
    %c0_128 = arith.constant 0 : index
    %c2_129 = arith.constant 2 : index
    %c9_130 = arith.constant 9 : index
    %c1_131 = arith.constant 1 : index
    %375 = vector.load %arg3[%c0_128, %c2_129, %c9_130, %c1_131] : memref<1x4x33x129xf32, #tpu.memory_space<vmem>>, vector<1x1x8x128xf32>
    %376 = vector.shape_cast %375 : vector<1x1x8x128xf32> to vector<8x128xf32>
    %377 = vector.broadcast %11 : f32 to vector<8x128xf32>
    %378 = arith.mulf %377, %376 : vector<8x128xf32>
    %379 = arith.addf %368, %378 : vector<8x128xf32>
    %380 = vector.broadcast %27 : f32 to vector<8x128xf32>
    %381 = arith.mulf %380, %376 : vector<8x128xf32>
    %382 = arith.addf %371, %381 : vector<8x128xf32>
    %383 = vector.broadcast %43 : f32 to vector<8x128xf32>
    %384 = arith.mulf %383, %376 : vector<8x128xf32>
    %385 = arith.addf %374, %384 : vector<8x128xf32>
    %c0_132 = arith.constant 0 : index
    %c3_133 = arith.constant 3 : index
    %c8_134 = arith.constant 8 : index
    %c0_135 = arith.constant 0 : index
    %386 = vector.load %arg3[%c0_132, %c3_133, %c8_134, %c0_135] : memref<1x4x33x129xf32, #tpu.memory_space<vmem>>, vector<1x1x8x128xf32>
    %387 = vector.shape_cast %386 : vector<1x1x8x128xf32> to vector<8x128xf32>
    %388 = vector.broadcast %12 : f32 to vector<8x128xf32>
    %389 = arith.mulf %388, %387 : vector<8x128xf32>
    %390 = arith.addf %379, %389 : vector<8x128xf32>
    %391 = vector.broadcast %28 : f32 to vector<8x128xf32>
    %392 = arith.mulf %391, %387 : vector<8x128xf32>
    %393 = arith.addf %382, %392 : vector<8x128xf32>
    %394 = vector.broadcast %44 : f32 to vector<8x128xf32>
    %395 = arith.mulf %394, %387 : vector<8x128xf32>
    %396 = arith.addf %385, %395 : vector<8x128xf32>
    %c0_136 = arith.constant 0 : index
    %c3_137 = arith.constant 3 : index
    %c8_138 = arith.constant 8 : index
    %c1_139 = arith.constant 1 : index
    %397 = vector.load %arg3[%c0_136, %c3_137, %c8_138, %c1_139] : memref<1x4x33x129xf32, #tpu.memory_space<vmem>>, vector<1x1x8x128xf32>
    %398 = vector.shape_cast %397 : vector<1x1x8x128xf32> to vector<8x128xf32>
    %399 = vector.broadcast %13 : f32 to vector<8x128xf32>
    %400 = arith.mulf %399, %398 : vector<8x128xf32>
    %401 = arith.addf %390, %400 : vector<8x128xf32>
    %402 = vector.broadcast %29 : f32 to vector<8x128xf32>
    %403 = arith.mulf %402, %398 : vector<8x128xf32>
    %404 = arith.addf %393, %403 : vector<8x128xf32>
    %405 = vector.broadcast %45 : f32 to vector<8x128xf32>
    %406 = arith.mulf %405, %398 : vector<8x128xf32>
    %407 = arith.addf %396, %406 : vector<8x128xf32>
    %c0_140 = arith.constant 0 : index
    %c3_141 = arith.constant 3 : index
    %c9_142 = arith.constant 9 : index
    %c0_143 = arith.constant 0 : index
    %408 = vector.load %arg3[%c0_140, %c3_141, %c9_142, %c0_143] : memref<1x4x33x129xf32, #tpu.memory_space<vmem>>, vector<1x1x8x128xf32>
    %409 = vector.shape_cast %408 : vector<1x1x8x128xf32> to vector<8x128xf32>
    %410 = vector.broadcast %14 : f32 to vector<8x128xf32>
    %411 = arith.mulf %410, %409 : vector<8x128xf32>
    %412 = arith.addf %401, %411 : vector<8x128xf32>
    %413 = vector.broadcast %30 : f32 to vector<8x128xf32>
    %414 = arith.mulf %413, %409 : vector<8x128xf32>
    %415 = arith.addf %404, %414 : vector<8x128xf32>
    %416 = vector.broadcast %46 : f32 to vector<8x128xf32>
    %417 = arith.mulf %416, %409 : vector<8x128xf32>
    %418 = arith.addf %407, %417 : vector<8x128xf32>
    %c0_144 = arith.constant 0 : index
    %c3_145 = arith.constant 3 : index
    %c9_146 = arith.constant 9 : index
    %c1_147 = arith.constant 1 : index
    %419 = vector.load %arg3[%c0_144, %c3_145, %c9_146, %c1_147] : memref<1x4x33x129xf32, #tpu.memory_space<vmem>>, vector<1x1x8x128xf32>
    %420 = vector.shape_cast %419 : vector<1x1x8x128xf32> to vector<8x128xf32>
    %421 = vector.broadcast %15 : f32 to vector<8x128xf32>
    %422 = arith.mulf %421, %420 : vector<8x128xf32>
    %423 = arith.addf %412, %422 : vector<8x128xf32>
    %424 = vector.broadcast %31 : f32 to vector<8x128xf32>
    %425 = arith.mulf %424, %420 : vector<8x128xf32>
    %426 = arith.addf %415, %425 : vector<8x128xf32>
    %427 = vector.broadcast %47 : f32 to vector<8x128xf32>
    %428 = arith.mulf %427, %420 : vector<8x128xf32>
    %429 = arith.addf %418, %428 : vector<8x128xf32>
    %c0_148 = arith.constant 0 : index
    %c0_149 = arith.constant 0 : index
    %c8_150 = arith.constant 8 : index
    %c0_151 = arith.constant 0 : index
    %430 = vector.load %arg4[%c0_148, %c0_149, %c8_150, %c0_151] : memref<1x3x32x128xf32, #tpu.memory_space<vmem>>, vector<1x1x8x128xf32>
    %431 = vector.shape_cast %430 : vector<1x1x8x128xf32> to vector<8x128xf32>
    %432 = vector.shape_cast %423 : vector<8x128xf32> to vector<1x1x8x128xf32>
    tpu.vector_store %arg4[%c0_148, %c0_149, %c8_150, %c0_151], %432 {strides = array<i32>} : memref<1x3x32x128xf32, #tpu.memory_space<vmem>>, vector<1x1x8x128xf32>,
    %c0_152 = arith.constant 0 : index
    %c1_153 = arith.constant 1 : index
    %c8_154 = arith.constant 8 : index
    %c0_155 = arith.constant 0 : index
    %433 = vector.load %arg4[%c0_152, %c1_153, %c8_154, %c0_155] : memref<1x3x32x128xf32, #tpu.memory_space<vmem>>, vector<1x1x8x128xf32>
    %434 = vector.shape_cast %433 : vector<1x1x8x128xf32> to vector<8x128xf32>
    %435 = vector.shape_cast %426 : vector<8x128xf32> to vector<1x1x8x128xf32>
    tpu.vector_store %arg4[%c0_152, %c1_153, %c8_154, %c0_155], %435 {strides = array<i32>} : memref<1x3x32x128xf32, #tpu.memory_space<vmem>>, vector<1x1x8x128xf32>,
    %c0_156 = arith.constant 0 : index
    %c2_157 = arith.constant 2 : index
    %c8_158 = arith.constant 8 : index
    %c0_159 = arith.constant 0 : index
    %436 = vector.load %arg4[%c0_156, %c2_157, %c8_158, %c0_159] : memref<1x3x32x128xf32, #tpu.memory_space<vmem>>, vector<1x1x8x128xf32>
    %437 = vector.shape_cast %436 : vector<1x1x8x128xf32> to vector<8x128xf32>
    %438 = vector.shape_cast %429 : vector<8x128xf32> to vector<1x1x8x128xf32>
    tpu.vector_store %arg4[%c0_156, %c2_157, %c8_158, %c0_159], %438 {strides = array<i32>} : memref<1x3x32x128xf32, #tpu.memory_space<vmem>>, vector<1x1x8x128xf32>,
    %cst_160 = arith.constant 0.000000e+00 : f32
    %439 = vector.broadcast %cst_160 : f32 to vector<8x128xf32>
    %440 = vector.broadcast %48 : f32 to vector<8x128xf32>
    %441 = arith.addf %439, %440 : vector<8x128xf32>
    %cst_161 = arith.constant 0.000000e+00 : f32
    %442 = vector.broadcast %cst_161 : f32 to vector<8x128xf32>
    %443 = vector.broadcast %49 : f32 to vector<8x128xf32>
    %444 = arith.addf %442, %443 : vector<8x128xf32>
    %cst_162 = arith.constant 0.000000e+00 : f32
    %445 = vector.broadcast %cst_162 : f32 to vector<8x128xf32>
    %446 = vector.broadcast %50 : f32 to vector<8x128xf32>
    %447 = arith.addf %445, %446 : vector<8x128xf32>
    %c0_163 = arith.constant 0 : index
    %c0_164 = arith.constant 0 : index
    %c16_165 = arith.constant 16 : index
    %c0_166 = arith.constant 0 : index
    %448 = vector.load %arg3[%c0_163, %c0_164, %c16_165, %c0_166] : memref<1x4x33x129xf32, #tpu.memory_space<vmem>>, vector<1x1x8x128xf32>
    %449 = vector.shape_cast %448 : vector<1x1x8x128xf32> to vector<8x128xf32>
    %450 = vector.broadcast %0 : f32 to vector<8x128xf32>
    %451 = arith.mulf %450, %449 : vector<8x128xf32>
    %452 = arith.addf %441, %451 : vector<8x128xf32>
    %453 = vector.broadcast %16 : f32 to vector<8x128xf32>
    %454 = arith.mulf %453, %449 : vector<8x128xf32>
    %455 = arith.addf %444, %454 : vector<8x128xf32>
    %456 = vector.broadcast %32 : f32 to vector<8x128xf32>
    %457 = arith.mulf %456, %449 : vector<8x128xf32>
    %458 = arith.addf %447, %457 : vector<8x128xf32>
    %c0_167 = arith.constant 0 : index
    %c0_168 = arith.constant 0 : index
    %c16_169 = arith.constant 16 : index
    %c1_170 = arith.constant 1 : index
    %459 = vector.load %arg3[%c0_167, %c0_168, %c16_169, %c1_170] : memref<1x4x33x129xf32, #tpu.memory_space<vmem>>, vector<1x1x8x128xf32>
    %460 = vector.shape_cast %459 : vector<1x1x8x128xf32> to vector<8x128xf32>
    %461 = vector.broadcast %1 : f32 to vector<8x128xf32>
    %462 = arith.mulf %461, %460 : vector<8x128xf32>
    %463 = arith.addf %452, %462 : vector<8x128xf32>
    %464 = vector.broadcast %17 : f32 to vector<8x128xf32>
    %465 = arith.mulf %464, %460 : vector<8x128xf32>
    %466 = arith.addf %455, %465 : vector<8x128xf32>
    %467 = vector.broadcast %33 : f32 to vector<8x128xf32>
    %468 = arith.mulf %467, %460 : vector<8x128xf32>
    %469 = arith.addf %458, %468 : vector<8x128xf32>
    %c0_171 = arith.constant 0 : index
    %c0_172 = arith.constant 0 : index
    %c17_173 = arith.constant 17 : index
    %c0_174 = arith.constant 0 : index
    %470 = vector.load %arg3[%c0_171, %c0_172, %c17_173, %c0_174] : memref<1x4x33x129xf32, #tpu.memory_space<vmem>>, vector<1x1x8x128xf32>
    %471 = vector.shape_cast %470 : vector<1x1x8x128xf32> to vector<8x128xf32>
    %472 = vector.broadcast %2 : f32 to vector<8x128xf32>
    %473 = arith.mulf %472, %471 : vector<8x128xf32>
    %474 = arith.addf %463, %473 : vector<8x128xf32>
    %475 = vector.broadcast %18 : f32 to vector<8x128xf32>
    %476 = arith.mulf %475, %471 : vector<8x128xf32>
    %477 = arith.addf %466, %476 : vector<8x128xf32>
    %478 = vector.broadcast %34 : f32 to vector<8x128xf32>
    %479 = arith.mulf %478, %471 : vector<8x128xf32>
    %480 = arith.addf %469, %479 : vector<8x128xf32>
    %c0_175 = arith.constant 0 : index
    %c0_176 = arith.constant 0 : index
    %c17_177 = arith.constant 17 : index
    %c1_178 = arith.constant 1 : index
    %481 = vector.load %arg3[%c0_175, %c0_176, %c17_177, %c1_178] : memref<1x4x33x129xf32, #tpu.memory_space<vmem>>, vector<1x1x8x128xf32>
    %482 = vector.shape_cast %481 : vector<1x1x8x128xf32> to vector<8x128xf32>
    %483 = vector.broadcast %3 : f32 to vector<8x128xf32>
    %484 = arith.mulf %483, %482 : vector<8x128xf32>
    %485 = arith.addf %474, %484 : vector<8x128xf32>
    %486 = vector.broadcast %19 : f32 to vector<8x128xf32>
    %487 = arith.mulf %486, %482 : vector<8x128xf32>
    %488 = arith.addf %477, %487 : vector<8x128xf32>
    %489 = vector.broadcast %35 : f32 to vector<8x128xf32>
    %490 = arith.mulf %489, %482 : vector<8x128xf32>
    %491 = arith.addf %480, %490 : vector<8x128xf32>
    %c0_179 = arith.constant 0 : index
    %c1_180 = arith.constant 1 : index
    %c16_181 = arith.constant 16 : index
    %c0_182 = arith.constant 0 : index
    %492 = vector.load %arg3[%c0_179, %c1_180, %c16_181, %c0_182] : memref<1x4x33x129xf32, #tpu.memory_space<vmem>>, vector<1x1x8x128xf32>
    %493 = vector.shape_cast %492 : vector<1x1x8x128xf32> to vector<8x128xf32>
    %494 = vector.broadcast %4 : f32 to vector<8x128xf32>
    %495 = arith.mulf %494, %493 : vector<8x128xf32>
    %496 = arith.addf %485, %495 : vector<8x128xf32>
    %497 = vector.broadcast %20 : f32 to vector<8x128xf32>
    %498 = arith.mulf %497, %493 : vector<8x128xf32>
    %499 = arith.addf %488, %498 : vector<8x128xf32>
    %500 = vector.broadcast %36 : f32 to vector<8x128xf32>
    %501 = arith.mulf %500, %493 : vector<8x128xf32>
    %502 = arith.addf %491, %501 : vector<8x128xf32>
    %c0_183 = arith.constant 0 : index
    %c1_184 = arith.constant 1 : index
    %c16_185 = arith.constant 16 : index
    %c1_186 = arith.constant 1 : index
    %503 = vector.load %arg3[%c0_183, %c1_184, %c16_185, %c1_186] : memref<1x4x33x129xf32, #tpu.memory_space<vmem>>, vector<1x1x8x128xf32>
    %504 = vector.shape_cast %503 : vector<1x1x8x128xf32> to vector<8x128xf32>
    %505 = vector.broadcast %5 : f32 to vector<8x128xf32>
    %506 = arith.mulf %505, %504 : vector<8x128xf32>
    %507 = arith.addf %496, %506 : vector<8x128xf32>
    %508 = vector.broadcast %21 : f32 to vector<8x128xf32>
    %509 = arith.mulf %508, %504 : vector<8x128xf32>
    %510 = arith.addf %499, %509 : vector<8x128xf32>
    %511 = vector.broadcast %37 : f32 to vector<8x128xf32>
    %512 = arith.mulf %511, %504 : vector<8x128xf32>
    %513 = arith.addf %502, %512 : vector<8x128xf32>
    %c0_187 = arith.constant 0 : index
    %c1_188 = arith.constant 1 : index
    %c17_189 = arith.constant 17 : index
    %c0_190 = arith.constant 0 : index
    %514 = vector.load %arg3[%c0_187, %c1_188, %c17_189, %c0_190] : memref<1x4x33x129xf32, #tpu.memory_space<vmem>>, vector<1x1x8x128xf32>
    %515 = vector.shape_cast %514 : vector<1x1x8x128xf32> to vector<8x128xf32>
    %516 = vector.broadcast %6 : f32 to vector<8x128xf32>
    %517 = arith.mulf %516, %515 : vector<8x128xf32>
    %518 = arith.addf %507, %517 : vector<8x128xf32>
    %519 = vector.broadcast %22 : f32 to vector<8x128xf32>
    %520 = arith.mulf %519, %515 : vector<8x128xf32>
    %521 = arith.addf %510, %520 : vector<8x128xf32>
    %522 = vector.broadcast %38 : f32 to vector<8x128xf32>
    %523 = arith.mulf %522, %515 : vector<8x128xf32>
    %524 = arith.addf %513, %523 : vector<8x128xf32>
    %c0_191 = arith.constant 0 : index
    %c1_192 = arith.constant 1 : index
    %c17_193 = arith.constant 17 : index
    %c1_194 = arith.constant 1 : index
    %525 = vector.load %arg3[%c0_191, %c1_192, %c17_193, %c1_194] : memref<1x4x33x129xf32, #tpu.memory_space<vmem>>, vector<1x1x8x128xf32>
    %526 = vector.shape_cast %525 : vector<1x1x8x128xf32> to vector<8x128xf32>
    %527 = vector.broadcast %7 : f32 to vector<8x128xf32>
    %528 = arith.mulf %527, %526 : vector<8x128xf32>
    %529 = arith.addf %518, %528 : vector<8x128xf32>
    %530 = vector.broadcast %23 : f32 to vector<8x128xf32>
    %531 = arith.mulf %530, %526 : vector<8x128xf32>
    %532 = arith.addf %521, %531 : vector<8x128xf32>
    %533 = vector.broadcast %39 : f32 to vector<8x128xf32>
    %534 = arith.mulf %533, %526 : vector<8x128xf32>
    %535 = arith.addf %524, %534 : vector<8x128xf32>
    %c0_195 = arith.constant 0 : index
    %c2_196 = arith.constant 2 : index
    %c16_197 = arith.constant 16 : index
    %c0_198 = arith.constant 0 : index
    %536 = vector.load %arg3[%c0_195, %c2_196, %c16_197, %c0_198] : memref<1x4x33x129xf32, #tpu.memory_space<vmem>>, vector<1x1x8x128xf32>
    %537 = vector.shape_cast %536 : vector<1x1x8x128xf32> to vector<8x128xf32>
    %538 = vector.broadcast %8 : f32 to vector<8x128xf32>
    %539 = arith.mulf %538, %537 : vector<8x128xf32>
    %540 = arith.addf %529, %539 : vector<8x128xf32>
    %541 = vector.broadcast %24 : f32 to vector<8x128xf32>
    %542 = arith.mulf %541, %537 : vector<8x128xf32>
    %543 = arith.addf %532, %542 : vector<8x128xf32>
    %544 = vector.broadcast %40 : f32 to vector<8x128xf32>
    %545 = arith.mulf %544, %537 : vector<8x128xf32>
    %546 = arith.addf %535, %545 : vector<8x128xf32>
    %c0_199 = arith.constant 0 : index
    %c2_200 = arith.constant 2 : index
    %c16_201 = arith.constant 16 : index
    %c1_202 = arith.constant 1 : index
    %547 = vector.load %arg3[%c0_199, %c2_200, %c16_201, %c1_202] : memref<1x4x33x129xf32, #tpu.memory_space<vmem>>, vector<1x1x8x128xf32>
    %548 = vector.shape_cast %547 : vector<1x1x8x128xf32> to vector<8x128xf32>
    %549 = vector.broadcast %9 : f32 to vector<8x128xf32>
    %550 = arith.mulf %549, %548 : vector<8x128xf32>
    %551 = arith.addf %540, %550 : vector<8x128xf32>
    %552 = vector.broadcast %25 : f32 to vector<8x128xf32>
    %553 = arith.mulf %552, %548 : vector<8x128xf32>
    %554 = arith.addf %543, %553 : vector<8x128xf32>
    %555 = vector.broadcast %41 : f32 to vector<8x128xf32>
    %556 = arith.mulf %555, %548 : vector<8x128xf32>
    %557 = arith.addf %546, %556 : vector<8x128xf32>
    %c0_203 = arith.constant 0 : index
    %c2_204 = arith.constant 2 : index
    %c17_205 = arith.constant 17 : index
    %c0_206 = arith.constant 0 : index
    %558 = vector.load %arg3[%c0_203, %c2_204, %c17_205, %c0_206] : memref<1x4x33x129xf32, #tpu.memory_space<vmem>>, vector<1x1x8x128xf32>
    %559 = vector.shape_cast %558 : vector<1x1x8x128xf32> to vector<8x128xf32>
    %560 = vector.broadcast %10 : f32 to vector<8x128xf32>
    %561 = arith.mulf %560, %559 : vector<8x128xf32>
    %562 = arith.addf %551, %561 : vector<8x128xf32>
    %563 = vector.broadcast %26 : f32 to vector<8x128xf32>
    %564 = arith.mulf %563, %559 : vector<8x128xf32>
    %565 = arith.addf %554, %564 : vector<8x128xf32>
    %566 = vector.broadcast %42 : f32 to vector<8x128xf32>
    %567 = arith.mulf %566, %559 : vector<8x128xf32>
    %568 = arith.addf %557, %567 : vector<8x128xf32>
    %c0_207 = arith.constant 0 : index
    %c2_208 = arith.constant 2 : index
    %c17_209 = arith.constant 17 : index
    %c1_210 = arith.constant 1 : index
    %569 = vector.load %arg3[%c0_207, %c2_208, %c17_209, %c1_210] : memref<1x4x33x129xf32, #tpu.memory_space<vmem>>, vector<1x1x8x128xf32>
    %570 = vector.shape_cast %569 : vector<1x1x8x128xf32> to vector<8x128xf32>
    %571 = vector.broadcast %11 : f32 to vector<8x128xf32>
    %572 = arith.mulf %571, %570 : vector<8x128xf32>
    %573 = arith.addf %562, %572 : vector<8x128xf32>
    %574 = vector.broadcast %27 : f32 to vector<8x128xf32>
    %575 = arith.mulf %574, %570 : vector<8x128xf32>
    %576 = arith.addf %565, %575 : vector<8x128xf32>
    %577 = vector.broadcast %43 : f32 to vector<8x128xf32>
    %578 = arith.mulf %577, %570 : vector<8x128xf32>
    %579 = arith.addf %568, %578 : vector<8x128xf32>
    %c0_211 = arith.constant 0 : index
    %c3_212 = arith.constant 3 : index
    %c16_213 = arith.constant 16 : index
    %c0_214 = arith.constant 0 : index
    %580 = vector.load %arg3[%c0_211, %c3_212, %c16_213, %c0_214] : memref<1x4x33x129xf32, #tpu.memory_space<vmem>>, vector<1x1x8x128xf32>
    %581 = vector.shape_cast %580 : vector<1x1x8x128xf32> to vector<8x128xf32>
    %582 = vector.broadcast %12 : f32 to vector<8x128xf32>
    %583 = arith.mulf %582, %581 : vector<8x128xf32>
    %584 = arith.addf %573, %583 : vector<8x128xf32>
    %585 = vector.broadcast %28 : f32 to vector<8x128xf32>
    %586 = arith.mulf %585, %581 : vector<8x128xf32>
    %587 = arith.addf %576, %586 : vector<8x128xf32>
    %588 = vector.broadcast %44 : f32 to vector<8x128xf32>
    %589 = arith.mulf %588, %581 : vector<8x128xf32>
    %590 = arith.addf %579, %589 : vector<8x128xf32>
    %c0_215 = arith.constant 0 : index
    %c3_216 = arith.constant 3 : index
    %c16_217 = arith.constant 16 : index
    %c1_218 = arith.constant 1 : index
    %591 = vector.load %arg3[%c0_215, %c3_216, %c16_217, %c1_218] : memref<1x4x33x129xf32, #tpu.memory_space<vmem>>, vector<1x1x8x128xf32>
    %592 = vector.shape_cast %591 : vector<1x1x8x128xf32> to vector<8x128xf32>
    %593 = vector.broadcast %13 : f32 to vector<8x128xf32>
    %594 = arith.mulf %593, %592 : vector<8x128xf32>
    %595 = arith.addf %584, %594 : vector<8x128xf32>
    %596 = vector.broadcast %29 : f32 to vector<8x128xf32>
    %597 = arith.mulf %596, %592 : vector<8x128xf32>
    %598 = arith.addf %587, %597 : vector<8x128xf32>
    %599 = vector.broadcast %45 : f32 to vector<8x128xf32>
    %600 = arith.mulf %599, %592 : vector<8x128xf32>
    %601 = arith.addf %590, %600 : vector<8x128xf32>
    %c0_219 = arith.constant 0 : index
    %c3_220 = arith.constant 3 : index
    %c17_221 = arith.constant 17 : index
    %c0_222 = arith.constant 0 : index
    %602 = vector.load %arg3[%c0_219, %c3_220, %c17_221, %c0_222] : memref<1x4x33x129xf32, #tpu.memory_space<vmem>>, vector<1x1x8x128xf32>
    %603 = vector.shape_cast %602 : vector<1x1x8x128xf32> to vector<8x128xf32>
    %604 = vector.broadcast %14 : f32 to vector<8x128xf32>
    %605 = arith.mulf %604, %603 : vector<8x128xf32>
    %606 = arith.addf %595, %605 : vector<8x128xf32>
    %607 = vector.broadcast %30 : f32 to vector<8x128xf32>
    %608 = arith.mulf %607, %603 : vector<8x128xf32>
    %609 = arith.addf %598, %608 : vector<8x128xf32>
    %610 = vector.broadcast %46 : f32 to vector<8x128xf32>
    %611 = arith.mulf %610, %603 : vector<8x128xf32>
    %612 = arith.addf %601, %611 : vector<8x128xf32>
    %c0_223 = arith.constant 0 : index
    %c3_224 = arith.constant 3 : index
    %c17_225 = arith.constant 17 : index
    %c1_226 = arith.constant 1 : index
    %613 = vector.load %arg3[%c0_223, %c3_224, %c17_225, %c1_226] : memref<1x4x33x129xf32, #tpu.memory_space<vmem>>, vector<1x1x8x128xf32>
    %614 = vector.shape_cast %613 : vector<1x1x8x128xf32> to vector<8x128xf32>
    %615 = vector.broadcast %15 : f32 to vector<8x128xf32>
    %616 = arith.mulf %615, %614 : vector<8x128xf32>
    %617 = arith.addf %606, %616 : vector<8x128xf32>
    %618 = vector.broadcast %31 : f32 to vector<8x128xf32>
    %619 = arith.mulf %618, %614 : vector<8x128xf32>
    %620 = arith.addf %609, %619 : vector<8x128xf32>
    %621 = vector.broadcast %47 : f32 to vector<8x128xf32>
    %622 = arith.mulf %621, %614 : vector<8x128xf32>
    %623 = arith.addf %612, %622 : vector<8x128xf32>
    %c0_227 = arith.constant 0 : index
    %c0_228 = arith.constant 0 : index
    %c16_229 = arith.constant 16 : index
    %c0_230 = arith.constant 0 : index
    %624 = vector.load %arg4[%c0_227, %c0_228, %c16_229, %c0_230] : memref<1x3x32x128xf32, #tpu.memory_space<vmem>>, vector<1x1x8x128xf32>
    %625 = vector.shape_cast %624 : vector<1x1x8x128xf32> to vector<8x128xf32>
    %626 = vector.shape_cast %617 : vector<8x128xf32> to vector<1x1x8x128xf32>
    tpu.vector_store %arg4[%c0_227, %c0_228, %c16_229, %c0_230], %626 {strides = array<i32>} : memref<1x3x32x128xf32, #tpu.memory_space<vmem>>, vector<1x1x8x128xf32>,
    %c0_231 = arith.constant 0 : index
    %c1_232 = arith.constant 1 : index
    %c16_233 = arith.constant 16 : index
    %c0_234 = arith.constant 0 : index
    %627 = vector.load %arg4[%c0_231, %c1_232, %c16_233, %c0_234] : memref<1x3x32x128xf32, #tpu.memory_space<vmem>>, vector<1x1x8x128xf32>
    %628 = vector.shape_cast %627 : vector<1x1x8x128xf32> to vector<8x128xf32>
    %629 = vector.shape_cast %620 : vector<8x128xf32> to vector<1x1x8x128xf32>
    tpu.vector_store %arg4[%c0_231, %c1_232, %c16_233, %c0_234], %629 {strides = array<i32>} : memref<1x3x32x128xf32, #tpu.memory_space<vmem>>, vector<1x1x8x128xf32>,
    %c0_235 = arith.constant 0 : index
    %c2_236 = arith.constant 2 : index
    %c16_237 = arith.constant 16 : index
    %c0_238 = arith.constant 0 : index
    %630 = vector.load %arg4[%c0_235, %c2_236, %c16_237, %c0_238] : memref<1x3x32x128xf32, #tpu.memory_space<vmem>>, vector<1x1x8x128xf32>
    %631 = vector.shape_cast %630 : vector<1x1x8x128xf32> to vector<8x128xf32>
    %632 = vector.shape_cast %623 : vector<8x128xf32> to vector<1x1x8x128xf32>
    tpu.vector_store %arg4[%c0_235, %c2_236, %c16_237, %c0_238], %632 {strides = array<i32>} : memref<1x3x32x128xf32, #tpu.memory_space<vmem>>, vector<1x1x8x128xf32>,
    %cst_239 = arith.constant 0.000000e+00 : f32
    %633 = vector.broadcast %cst_239 : f32 to vector<8x128xf32>
    %634 = vector.broadcast %48 : f32 to vector<8x128xf32>
    %635 = arith.addf %633, %634 : vector<8x128xf32>
    %cst_240 = arith.constant 0.000000e+00 : f32
    %636 = vector.broadcast %cst_240 : f32 to vector<8x128xf32>
    %637 = vector.broadcast %49 : f32 to vector<8x128xf32>
    %638 = arith.addf %636, %637 : vector<8x128xf32>
    %cst_241 = arith.constant 0.000000e+00 : f32
    %639 = vector.broadcast %cst_241 : f32 to vector<8x128xf32>
    %640 = vector.broadcast %50 : f32 to vector<8x128xf32>
    %641 = arith.addf %639, %640 : vector<8x128xf32>
    %c0_242 = arith.constant 0 : index
    %c0_243 = arith.constant 0 : index
    %c24_244 = arith.constant 24 : index
    %c0_245 = arith.constant 0 : index
    %642 = vector.load %arg3[%c0_242, %c0_243, %c24_244, %c0_245] : memref<1x4x33x129xf32, #tpu.memory_space<vmem>>, vector<1x1x8x128xf32>
    %643 = vector.shape_cast %642 : vector<1x1x8x128xf32> to vector<8x128xf32>
    %644 = vector.broadcast %0 : f32 to vector<8x128xf32>
    %645 = arith.mulf %644, %643 : vector<8x128xf32>
    %646 = arith.addf %635, %645 : vector<8x128xf32>
    %647 = vector.broadcast %16 : f32 to vector<8x128xf32>
    %648 = arith.mulf %647, %643 : vector<8x128xf32>
    %649 = arith.addf %638, %648 : vector<8x128xf32>
    %650 = vector.broadcast %32 : f32 to vector<8x128xf32>
    %651 = arith.mulf %650, %643 : vector<8x128xf32>
    %652 = arith.addf %641, %651 : vector<8x128xf32>
    %c0_246 = arith.constant 0 : index
    %c0_247 = arith.constant 0 : index
    %c24_248 = arith.constant 24 : index
    %c1_249 = arith.constant 1 : index
    %653 = vector.load %arg3[%c0_246, %c0_247, %c24_248, %c1_249] : memref<1x4x33x129xf32, #tpu.memory_space<vmem>>, vector<1x1x8x128xf32>
    %654 = vector.shape_cast %653 : vector<1x1x8x128xf32> to vector<8x128xf32>
    %655 = vector.broadcast %1 : f32 to vector<8x128xf32>
    %656 = arith.mulf %655, %654 : vector<8x128xf32>
    %657 = arith.addf %646, %656 : vector<8x128xf32>
    %658 = vector.broadcast %17 : f32 to vector<8x128xf32>
    %659 = arith.mulf %658, %654 : vector<8x128xf32>
    %660 = arith.addf %649, %659 : vector<8x128xf32>
    %661 = vector.broadcast %33 : f32 to vector<8x128xf32>
    %662 = arith.mulf %661, %654 : vector<8x128xf32>
    %663 = arith.addf %652, %662 : vector<8x128xf32>
    %c0_250 = arith.constant 0 : index
    %c0_251 = arith.constant 0 : index
    %c25_252 = arith.constant 25 : index
    %c0_253 = arith.constant 0 : index
    %664 = vector.load %arg3[%c0_250, %c0_251, %c25_252, %c0_253] : memref<1x4x33x129xf32, #tpu.memory_space<vmem>>, vector<1x1x8x128xf32>
    %665 = vector.shape_cast %664 : vector<1x1x8x128xf32> to vector<8x128xf32>
    %666 = vector.broadcast %2 : f32 to vector<8x128xf32>
    %667 = arith.mulf %666, %665 : vector<8x128xf32>
    %668 = arith.addf %657, %667 : vector<8x128xf32>
    %669 = vector.broadcast %18 : f32 to vector<8x128xf32>
    %670 = arith.mulf %669, %665 : vector<8x128xf32>
    %671 = arith.addf %660, %670 : vector<8x128xf32>
    %672 = vector.broadcast %34 : f32 to vector<8x128xf32>
    %673 = arith.mulf %672, %665 : vector<8x128xf32>
    %674 = arith.addf %663, %673 : vector<8x128xf32>
    %c0_254 = arith.constant 0 : index
    %c0_255 = arith.constant 0 : index
    %c25_256 = arith.constant 25 : index
    %c1_257 = arith.constant 1 : index
    %675 = vector.load %arg3[%c0_254, %c0_255, %c25_256, %c1_257] : memref<1x4x33x129xf32, #tpu.memory_space<vmem>>, vector<1x1x8x128xf32>
    %676 = vector.shape_cast %675 : vector<1x1x8x128xf32> to vector<8x128xf32>
    %677 = vector.broadcast %3 : f32 to vector<8x128xf32>
    %678 = arith.mulf %677, %676 : vector<8x128xf32>
    %679 = arith.addf %668, %678 : vector<8x128xf32>
    %680 = vector.broadcast %19 : f32 to vector<8x128xf32>
    %681 = arith.mulf %680, %676 : vector<8x128xf32>
    %682 = arith.addf %671, %681 : vector<8x128xf32>
    %683 = vector.broadcast %35 : f32 to vector<8x128xf32>
    %684 = arith.mulf %683, %676 : vector<8x128xf32>
    %685 = arith.addf %674, %684 : vector<8x128xf32>
    %c0_258 = arith.constant 0 : index
    %c1_259 = arith.constant 1 : index
    %c24_260 = arith.constant 24 : index
    %c0_261 = arith.constant 0 : index
    %686 = vector.load %arg3[%c0_258, %c1_259, %c24_260, %c0_261] : memref<1x4x33x129xf32, #tpu.memory_space<vmem>>, vector<1x1x8x128xf32>
    %687 = vector.shape_cast %686 : vector<1x1x8x128xf32> to vector<8x128xf32>
    %688 = vector.broadcast %4 : f32 to vector<8x128xf32>
    %689 = arith.mulf %688, %687 : vector<8x128xf32>
    %690 = arith.addf %679, %689 : vector<8x128xf32>
    %691 = vector.broadcast %20 : f32 to vector<8x128xf32>
    %692 = arith.mulf %691, %687 : vector<8x128xf32>
    %693 = arith.addf %682, %692 : vector<8x128xf32>
    %694 = vector.broadcast %36 : f32 to vector<8x128xf32>
    %695 = arith.mulf %694, %687 : vector<8x128xf32>
    %696 = arith.addf %685, %695 : vector<8x128xf32>
    %c0_262 = arith.constant 0 : index
    %c1_263 = arith.constant 1 : index
    %c24_264 = arith.constant 24 : index
    %c1_265 = arith.constant 1 : index
    %697 = vector.load %arg3[%c0_262, %c1_263, %c24_264, %c1_265] : memref<1x4x33x129xf32, #tpu.memory_space<vmem>>, vector<1x1x8x128xf32>
    %698 = vector.shape_cast %697 : vector<1x1x8x128xf32> to vector<8x128xf32>
    %699 = vector.broadcast %5 : f32 to vector<8x128xf32>
    %700 = arith.mulf %699, %698 : vector<8x128xf32>
    %701 = arith.addf %690, %700 : vector<8x128xf32>
    %702 = vector.broadcast %21 : f32 to vector<8x128xf32>
    %703 = arith.mulf %702, %698 : vector<8x128xf32>
    %704 = arith.addf %693, %703 : vector<8x128xf32>
    %705 = vector.broadcast %37 : f32 to vector<8x128xf32>
    %706 = arith.mulf %705, %698 : vector<8x128xf32>
    %707 = arith.addf %696, %706 : vector<8x128xf32>
    %c0_266 = arith.constant 0 : index
    %c1_267 = arith.constant 1 : index
    %c25_268 = arith.constant 25 : index
    %c0_269 = arith.constant 0 : index
    %708 = vector.load %arg3[%c0_266, %c1_267, %c25_268, %c0_269] : memref<1x4x33x129xf32, #tpu.memory_space<vmem>>, vector<1x1x8x128xf32>
    %709 = vector.shape_cast %708 : vector<1x1x8x128xf32> to vector<8x128xf32>
    %710 = vector.broadcast %6 : f32 to vector<8x128xf32>
    %711 = arith.mulf %710, %709 : vector<8x128xf32>
    %712 = arith.addf %701, %711 : vector<8x128xf32>
    %713 = vector.broadcast %22 : f32 to vector<8x128xf32>
    %714 = arith.mulf %713, %709 : vector<8x128xf32>
    %715 = arith.addf %704, %714 : vector<8x128xf32>
    %716 = vector.broadcast %38 : f32 to vector<8x128xf32>
    %717 = arith.mulf %716, %709 : vector<8x128xf32>
    %718 = arith.addf %707, %717 : vector<8x128xf32>
    %c0_270 = arith.constant 0 : index
    %c1_271 = arith.constant 1 : index
    %c25_272 = arith.constant 25 : index
    %c1_273 = arith.constant 1 : index
    %719 = vector.load %arg3[%c0_270, %c1_271, %c25_272, %c1_273] : memref<1x4x33x129xf32, #tpu.memory_space<vmem>>, vector<1x1x8x128xf32>
    %720 = vector.shape_cast %719 : vector<1x1x8x128xf32> to vector<8x128xf32>
    %721 = vector.broadcast %7 : f32 to vector<8x128xf32>
    %722 = arith.mulf %721, %720 : vector<8x128xf32>
    %723 = arith.addf %712, %722 : vector<8x128xf32>
    %724 = vector.broadcast %23 : f32 to vector<8x128xf32>
    %725 = arith.mulf %724, %720 : vector<8x128xf32>
    %726 = arith.addf %715, %725 : vector<8x128xf32>
    %727 = vector.broadcast %39 : f32 to vector<8x128xf32>
    %728 = arith.mulf %727, %720 : vector<8x128xf32>
    %729 = arith.addf %718, %728 : vector<8x128xf32>
    %c0_274 = arith.constant 0 : index
    %c2_275 = arith.constant 2 : index
    %c24_276 = arith.constant 24 : index
    %c0_277 = arith.constant 0 : index
    %730 = vector.load %arg3[%c0_274, %c2_275, %c24_276, %c0_277] : memref<1x4x33x129xf32, #tpu.memory_space<vmem>>, vector<1x1x8x128xf32>
    %731 = vector.shape_cast %730 : vector<1x1x8x128xf32> to vector<8x128xf32>
    %732 = vector.broadcast %8 : f32 to vector<8x128xf32>
    %733 = arith.mulf %732, %731 : vector<8x128xf32>
    %734 = arith.addf %723, %733 : vector<8x128xf32>
    %735 = vector.broadcast %24 : f32 to vector<8x128xf32>
    %736 = arith.mulf %735, %731 : vector<8x128xf32>
    %737 = arith.addf %726, %736 : vector<8x128xf32>
    %738 = vector.broadcast %40 : f32 to vector<8x128xf32>
    %739 = arith.mulf %738, %731 : vector<8x128xf32>
    %740 = arith.addf %729, %739 : vector<8x128xf32>
    %c0_278 = arith.constant 0 : index
    %c2_279 = arith.constant 2 : index
    %c24_280 = arith.constant 24 : index
    %c1_281 = arith.constant 1 : index
    %741 = vector.load %arg3[%c0_278, %c2_279, %c24_280, %c1_281] : memref<1x4x33x129xf32, #tpu.memory_space<vmem>>, vector<1x1x8x128xf32>
    %742 = vector.shape_cast %741 : vector<1x1x8x128xf32> to vector<8x128xf32>
    %743 = vector.broadcast %9 : f32 to vector<8x128xf32>
    %744 = arith.mulf %743, %742 : vector<8x128xf32>
    %745 = arith.addf %734, %744 : vector<8x128xf32>
    %746 = vector.broadcast %25 : f32 to vector<8x128xf32>
    %747 = arith.mulf %746, %742 : vector<8x128xf32>
    %748 = arith.addf %737, %747 : vector<8x128xf32>
    %749 = vector.broadcast %41 : f32 to vector<8x128xf32>
    %750 = arith.mulf %749, %742 : vector<8x128xf32>
    %751 = arith.addf %740, %750 : vector<8x128xf32>
    %c0_282 = arith.constant 0 : index
    %c2_283 = arith.constant 2 : index
    %c25_284 = arith.constant 25 : index
    %c0_285 = arith.constant 0 : index
    %752 = vector.load %arg3[%c0_282, %c2_283, %c25_284, %c0_285] : memref<1x4x33x129xf32, #tpu.memory_space<vmem>>, vector<1x1x8x128xf32>
    %753 = vector.shape_cast %752 : vector<1x1x8x128xf32> to vector<8x128xf32>
    %754 = vector.broadcast %10 : f32 to vector<8x128xf32>
    %755 = arith.mulf %754, %753 : vector<8x128xf32>
    %756 = arith.addf %745, %755 : vector<8x128xf32>
    %757 = vector.broadcast %26 : f32 to vector<8x128xf32>
    %758 = arith.mulf %757, %753 : vector<8x128xf32>
    %759 = arith.addf %748, %758 : vector<8x128xf32>
    %760 = vector.broadcast %42 : f32 to vector<8x128xf32>
    %761 = arith.mulf %760, %753 : vector<8x128xf32>
    %762 = arith.addf %751, %761 : vector<8x128xf32>
    %c0_286 = arith.constant 0 : index
    %c2_287 = arith.constant 2 : index
    %c25_288 = arith.constant 25 : index
    %c1_289 = arith.constant 1 : index
    %763 = vector.load %arg3[%c0_286, %c2_287, %c25_288, %c1_289] : memref<1x4x33x129xf32, #tpu.memory_space<vmem>>, vector<1x1x8x128xf32>
    %764 = vector.shape_cast %763 : vector<1x1x8x128xf32> to vector<8x128xf32>
    %765 = vector.broadcast %11 : f32 to vector<8x128xf32>
    %766 = arith.mulf %765, %764 : vector<8x128xf32>
    %767 = arith.addf %756, %766 : vector<8x128xf32>
    %768 = vector.broadcast %27 : f32 to vector<8x128xf32>
    %769 = arith.mulf %768, %764 : vector<8x128xf32>
    %770 = arith.addf %759, %769 : vector<8x128xf32>
    %771 = vector.broadcast %43 : f32 to vector<8x128xf32>
    %772 = arith.mulf %771, %764 : vector<8x128xf32>
    %773 = arith.addf %762, %772 : vector<8x128xf32>
    %c0_290 = arith.constant 0 : index
    %c3_291 = arith.constant 3 : index
    %c24_292 = arith.constant 24 : index
    %c0_293 = arith.constant 0 : index
    %774 = vector.load %arg3[%c0_290, %c3_291, %c24_292, %c0_293] : memref<1x4x33x129xf32, #tpu.memory_space<vmem>>, vector<1x1x8x128xf32>
    %775 = vector.shape_cast %774 : vector<1x1x8x128xf32> to vector<8x128xf32>
    %776 = vector.broadcast %12 : f32 to vector<8x128xf32>
    %777 = arith.mulf %776, %775 : vector<8x128xf32>
    %778 = arith.addf %767, %777 : vector<8x128xf32>
    %779 = vector.broadcast %28 : f32 to vector<8x128xf32>
    %780 = arith.mulf %779, %775 : vector<8x128xf32>
    %781 = arith.addf %770, %780 : vector<8x128xf32>
    %782 = vector.broadcast %44 : f32 to vector<8x128xf32>
    %783 = arith.mulf %782, %775 : vector<8x128xf32>
    %784 = arith.addf %773, %783 : vector<8x128xf32>
    %c0_294 = arith.constant 0 : index
    %c3_295 = arith.constant 3 : index
    %c24_296 = arith.constant 24 : index
    %c1_297 = arith.constant 1 : index
    %785 = vector.load %arg3[%c0_294, %c3_295, %c24_296, %c1_297] : memref<1x4x33x129xf32, #tpu.memory_space<vmem>>, vector<1x1x8x128xf32>
    %786 = vector.shape_cast %785 : vector<1x1x8x128xf32> to vector<8x128xf32>
    %787 = vector.broadcast %13 : f32 to vector<8x128xf32>
    %788 = arith.mulf %787, %786 : vector<8x128xf32>
    %789 = arith.addf %778, %788 : vector<8x128xf32>
    %790 = vector.broadcast %29 : f32 to vector<8x128xf32>
    %791 = arith.mulf %790, %786 : vector<8x128xf32>
    %792 = arith.addf %781, %791 : vector<8x128xf32>
    %793 = vector.broadcast %45 : f32 to vector<8x128xf32>
    %794 = arith.mulf %793, %786 : vector<8x128xf32>
    %795 = arith.addf %784, %794 : vector<8x128xf32>
    %c0_298 = arith.constant 0 : index
    %c3_299 = arith.constant 3 : index
    %c25_300 = arith.constant 25 : index
    %c0_301 = arith.constant 0 : index
    %796 = vector.load %arg3[%c0_298, %c3_299, %c25_300, %c0_301] : memref<1x4x33x129xf32, #tpu.memory_space<vmem>>, vector<1x1x8x128xf32>
    %797 = vector.shape_cast %796 : vector<1x1x8x128xf32> to vector<8x128xf32>
    %798 = vector.broadcast %14 : f32 to vector<8x128xf32>
    %799 = arith.mulf %798, %797 : vector<8x128xf32>
    %800 = arith.addf %789, %799 : vector<8x128xf32>
    %801 = vector.broadcast %30 : f32 to vector<8x128xf32>
    %802 = arith.mulf %801, %797 : vector<8x128xf32>
    %803 = arith.addf %792, %802 : vector<8x128xf32>
    %804 = vector.broadcast %46 : f32 to vector<8x128xf32>
    %805 = arith.mulf %804, %797 : vector<8x128xf32>
    %806 = arith.addf %795, %805 : vector<8x128xf32>
    %c0_302 = arith.constant 0 : index
    %c3_303 = arith.constant 3 : index
    %c25_304 = arith.constant 25 : index
    %c1_305 = arith.constant 1 : index
    %807 = vector.load %arg3[%c0_302, %c3_303, %c25_304, %c1_305] : memref<1x4x33x129xf32, #tpu.memory_space<vmem>>, vector<1x1x8x128xf32>
    %808 = vector.shape_cast %807 : vector<1x1x8x128xf32> to vector<8x128xf32>
    %809 = vector.broadcast %15 : f32 to vector<8x128xf32>
    %810 = arith.mulf %809, %808 : vector<8x128xf32>
    %811 = arith.addf %800, %810 : vector<8x128xf32>
    %812 = vector.broadcast %31 : f32 to vector<8x128xf32>
    %813 = arith.mulf %812, %808 : vector<8x128xf32>
    %814 = arith.addf %803, %813 : vector<8x128xf32>
    %815 = vector.broadcast %47 : f32 to vector<8x128xf32>
    %816 = arith.mulf %815, %808 : vector<8x128xf32>
    %817 = arith.addf %806, %816 : vector<8x128xf32>
    %c0_306 = arith.constant 0 : index
    %c0_307 = arith.constant 0 : index
    %c24_308 = arith.constant 24 : index
    %c0_309 = arith.constant 0 : index
    %818 = vector.load %arg4[%c0_306, %c0_307, %c24_308, %c0_309] : memref<1x3x32x128xf32, #tpu.memory_space<vmem>>, vector<1x1x8x128xf32>
    %819 = vector.shape_cast %818 : vector<1x1x8x128xf32> to vector<8x128xf32>
    %820 = vector.shape_cast %811 : vector<8x128xf32> to vector<1x1x8x128xf32>
    tpu.vector_store %arg4[%c0_306, %c0_307, %c24_308, %c0_309], %820 {strides = array<i32>} : memref<1x3x32x128xf32, #tpu.memory_space<vmem>>, vector<1x1x8x128xf32>,
    %c0_310 = arith.constant 0 : index
    %c1_311 = arith.constant 1 : index
    %c24_312 = arith.constant 24 : index
    %c0_313 = arith.constant 0 : index
    %821 = vector.load %arg4[%c0_310, %c1_311, %c24_312, %c0_313] : memref<1x3x32x128xf32, #tpu.memory_space<vmem>>, vector<1x1x8x128xf32>
    %822 = vector.shape_cast %821 : vector<1x1x8x128xf32> to vector<8x128xf32>
    %823 = vector.shape_cast %814 : vector<8x128xf32> to vector<1x1x8x128xf32>
    tpu.vector_store %arg4[%c0_310, %c1_311, %c24_312, %c0_313], %823 {strides = array<i32>} : memref<1x3x32x128xf32, #tpu.memory_space<vmem>>, vector<1x1x8x128xf32>,
    %c0_314 = arith.constant 0 : index
    %c2_315 = arith.constant 2 : index
    %c24_316 = arith.constant 24 : index
    %c0_317 = arith.constant 0 : index
    %824 = vector.load %arg4[%c0_314, %c2_315, %c24_316, %c0_317] : memref<1x3x32x128xf32, #tpu.memory_space<vmem>>, vector<1x1x8x128xf32>
    %825 = vector.shape_cast %824 : vector<1x1x8x128xf32> to vector<8x128xf32>
    %826 = vector.shape_cast %817 : vector<8x128xf32> to vector<1x1x8x128xf32>
    tpu.vector_store %arg4[%c0_314, %c2_315, %c24_316, %c0_317], %826 {strides = array<i32>} : memref<1x3x32x128xf32, #tpu.memory_space<vmem>>, vector<1x1x8x128xf32>,
    return
  }
  func.func @transform_0(%arg0: i32) -> i32 {
    %c0_i32 = arith.constant 0 : i32
    %c0_i32_0 = arith.constant 0 : i32
    return %c0_i32 : i32
  }
  func.func @transform_1(%arg0: i32) -> i32 {
    %c0_i32 = arith.constant 0 : i32
    %c0_i32_0 = arith.constant 0 : i32
    return %c0_i32 : i32
  }
  func.func @transform_2(%arg0: i32) -> (i32, i32, i32, i32) {
    %c0_i32 = arith.constant 0 : i32
    %c0_i32_0 = arith.constant 0 : i32
    %c0_i32_1 = arith.constant 0 : i32
    %c0_i32_2 = arith.constant 0 : i32
    return %arg0, %c0_i32, %c0_i32_0, %c0_i32_1 : i32, i32, i32, i32
  }
  func.func @transform_3(%arg0: i32) -> (i32, i32, i32, i32) {
    %c0_i32 = arith.constant 0 : i32
    %c0_i32_0 = arith.constant 0 : i32
    %c0_i32_1 = arith.constant 0 : i32
    %c0_i32_2 = arith.constant 0 : i32
    return %arg0, %c0_i32, %c0_i32_0, %c0_i32_1 : i32, i32, i32, i32
  }
}

</mosaic_0001>

<llo_original>
// kernel: tpu_custom_call.1
$region0: #{tpu_custom_call.1}
  #allocation0 [shape = 'u32[]', space=smem, size = 0x4, offset = 0x4, fixed_abs, tag = 'smem constant byte address 0x4 - core index']
  #allocation1 [shape = 'u32[144,128]{1,0:T(1,128)}', space=vmem, size = 0x12000, scoped, tag = 'internal scratch']
  %s0 = inlined_call_operand.vmem [shape: f32[48], index: 0, kind: input, shape index: {}]
  %s1 = inlined_call_operand.vmem [shape: f32[3], index: 1, kind: input, shape index: {}]
  %s2 = inlined_call_operand.vmem [shape: f32[2,4,33,129], index: 2, kind: input, shape index: {}]
  %s3 = inlined_call_operand.hbm [shape: f32[2,3,32,128], index: 3, kind: output, shape index: {}]
  %s4 = sld [smem:[#allocation0]]
  $region53: #{tpu_custom_call.1} parent=0
    _
  %s6 = ssub.s32 1, %s4
  %s7 = scalar_select 0, %s6, %s4
  $region1: #{tpu_custom_call.1} parent=0
    #allocation2 [shape = 'u8[512]{0}', space=smem, size = 0x200, scoped, tag = 'input window, operand 0, single buffered']
    #allocation3 [shape = 's32[2]{0}', space=sflag, size = 0x8, scoped, tag = 'scoped memory for tpu_custom_call.1']
    #allocation4 [shape = 's32[2]{0}', space=sflag, size = 0x8, scoped, tag = 'scoped memory for tpu_custom_call.1']
    #allocation5 [shape = 'u8[512]{0}', space=smem, size = 0x200, scoped, tag = 'input window, operand 1, single buffered']
    #allocation6 [shape = 's32[1]{0}', space=sflag, size = 0x4, scoped, tag = 'scoped memory for tpu_custom_call.1']
    #allocation7 [shape = 'u8[98304]{0}', space=vmem, size = 0x18000, scoped, tag = 'output window, operand 0']
    %8 = vsyncpa [#allocation4], 0
    %9 = vsyncpa [#allocation6], 0
    %10 = vsyncpa [#allocation3], 0
    %s11 = scalar_lea.sflag [#allocation3], 1
    %12 = vsyncpa %s11, 0
    loop: start=0, step=1, limit=4
    $region2: #{tpu_custom_call.1} parent=1 // loop_pre_header
      _
    $region3: #{tpu_custom_call.1} parent=1 // loop_header
      %s14 = sphi 0, %s18
      %p15 = scmp.ge.s32.totalorder %s14, 4
      %s22 = sphi 0, %s22
      %s24 = sphi 0, %s22
      %s25 = sphi 0, %s24
      %s39 = sphi 0, %s25
      %s43 = sphi 0, %s43
      %s45 = sphi 0, %s43
      %s46 = sphi 0, %s45
      %s60 = sphi 0, %s46
      %s66 = sphi 0, %s68
      %s69 = sphi 0, %s66
      %s70 = sphi 0, %s69
      %s86 = sphi 0, %s70
      %s92 = sphi 0, %s94
      %s95 = sphi 0, %s92
      %s96 = sphi 0, %s95
      %s112 = sphi 0, %s96
    $region4: #{tpu_custom_call.1} parent=1 // loop_header_branch
      %17 = sbr.rel (%p15) target = $region8
    $region5: #{tpu_custom_call.1} parent=1 // loop_body
      %s19 = ssub.s32 %s14, 1
      %s20 = ssub.s32 %s14, 2
      %s21 = sadd.s32 %s14, 1
      %s23 = sadd.s32 %s22, 1
      %p26 = scmp.eq.s32.totalorder %s14, 1
      %p27 = scmp.ne.s32.totalorder %s22, %s24
      %p28 = scmp.eq.s32.totalorder %s14, 0
      %p29 = por %p27, %p28
      %p30 = scmp.ne.s32.totalorder %s22, %s24
      %p31 = scmp.eq.s32.totalorder %s19, 1
      %p32 = por %p30, %p31
      %p33 = scmp.ne.s32.totalorder %s24, %s25
      %p34 = scmp.eq.s32.totalorder %s19, 0
      %p35 = por %p33, %p34
      %p36 = scmp.ne.s32.totalorder %s24, %s25
      %p37 = scmp.eq.s32.totalorder %s20, 1
      %p38 = por %p36, %p37
      %p40 = scmp.ne.s32.totalorder %s25, %s39
      %p41 = scmp.eq.s32.totalorder %s20, 0
      %p42 = por %p40, %p41
      %s44 = sadd.s32 %s43, 1
      %p47 = scmp.eq.s32.totalorder %s14, 1
      %p48 = scmp.ne.s32.totalorder %s43, %s45
      %p49 = scmp.eq.s32.totalorder %s14, 0
      %p50 = por %p48, %p49
      %p51 = scmp.ne.s32.totalorder %s43, %s45
      %p52 = scmp.eq.s32.totalorder %s19, 1
      %p53 = por %p51, %p52
      %p54 = scmp.ne.s32.totalorder %s45, %s46
      %p55 = scmp.eq.s32.totalorder %s19, 0
      %p56 = por %p54, %p55
      %p57 = scmp.ne.s32.totalorder %s45, %s46
      %p58 = scmp.eq.s32.totalorder %s20, 1
      %p59 = por %p57, %p58
      %p61 = scmp.ne.s32.totalorder %s46, %s60
      %p62 = scmp.eq.s32.totalorder %s20, 0
      %p63 = por %p61, %p62
      %s64 = ssub.s32 %s14, %s21
      %p65 = scmp.eq.s32.totalorder %s64, 0
      %s67 = sadd.s32 %s66, 1
      %s68 = scalar_select %p65, %s66, %s67
      %p71 = pneg %p65
      %p72 = scmp.eq.s32.totalorder %s14, 1
      %p73 = por %p71, %p72
      %p74 = scmp.ne.s32.totalorder %s66, %s69
      %p75 = scmp.eq.s32.totalorder %s14, 0
      %p76 = por %p74, %p75
      %p77 = scmp.ne.s32.totalorder %s66, %s69
      %p78 = scmp.eq.s32.totalorder %s19, 1
      %p79 = por %p77, %p78
      %p80 = scmp.ne.s32.totalorder %s69, %s70
      %p81 = scmp.eq.s32.totalorder %s19, 0
      %p82 = por %p80, %p81
      %p83 = scmp.ne.s32.totalorder %s69, %s70
      %p84 = scmp.eq.s32.totalorder %s20, 1
      %p85 = por %p83, %p84
      %p87 = scmp.ne.s32.totalorder %s70, %s86
      %p88 = scmp.eq.s32.totalorder %s20, 0
      %p89 = por %p87, %p88
      %s90 = ssub.s32 %s14, %s21
      %p91 = scmp.eq.s32.totalorder %s90, 0
      %s93 = sadd.s32 %s92, 1
      %s94 = scalar_select %p91, %s92, %s93
      %p97 = pneg %p91
      %p98 = scmp.eq.s32.totalorder %s14, 1
      %p99 = por %p97, %p98
      %p100 = scmp.ne.s32.totalorder %s92, %s95
      %p101 = scmp.eq.s32.totalorder %s14, 0
      %p102 = por %p100, %p101
      %p103 = scmp.ne.s32.totalorder %s92, %s95
      %p104 = scmp.eq.s32.totalorder %s19, 1
      %p105 = por %p103, %p104
      %p106 = scmp.ne.s32.totalorder %s95, %s96
      %p107 = scmp.eq.s32.totalorder %s19, 0
      %p108 = por %p106, %p107
      %p109 = scmp.ne.s32.totalorder %s95, %s96
      %p110 = scmp.eq.s32.totalorder %s20, 1
      %p111 = por %p109, %p110
      %p113 = scmp.ne.s32.totalorder %s96, %s112
      %p114 = scmp.eq.s32.totalorder %s20, 0
      %p115 = por %p113, %p114
      %p116 = scmp.le.s32.totalorder 1, %s14
      %p117 = scmp.lt.s32.totalorder %s14, 3
      %p118 = pnand %p116, %p117
      %p119 = pneg %p118
      // Predicated region
      $region9: #{tpu_custom_call.1} parent=5 // pred_check
        _
      $region10: #{tpu_custom_call.1} parent=5 // pred_check_branch
        %121 = sbr.rel (%p118) target = $region12
      $region11: #{tpu_custom_call.1} parent=5 // pred_region
        %s122 = ssub.s32 %s14, 1
        // Predicated region
        $region13: #{tpu_custom_call.1} parent=11 // pred_check
          %p123 = pneg %p35
        $region14: #{tpu_custom_call.1} parent=11 // pred_check_branch
          %125 = sbr.rel (%p123) target = $region16
        $region15: #{tpu_custom_call.1} parent=11 // pred_region
          %s127 = ssub.s32 16, 16
          %128 = vsyncadd [#allocation4], %s127
          %s130 = sshll.u32 %s0, 4
          %s131 = int_to_ptr.vmem [resolvable:$true] %s130
          %133 = dma.vmem_to_smem %s131, 16, [#allocation2], [#allocation4]
        $region16: #{tpu_custom_call.1} parent=11 // pred_fallthru
          _
        // Predicated region
        $region17: #{tpu_custom_call.1} parent=11 // pred_check
          %p134 = pneg %p56
        $region18: #{tpu_custom_call.1} parent=11 // pred_check_branch
          %136 = sbr.rel (%p134) target = $region20
        $region19: #{tpu_custom_call.1} parent=11 // pred_region
          %s138 = ssub.s32 16, 16
          %139 = vsyncadd [#allocation6], %s138
          %s141 = sshll.u32 %s1, 4
          %s142 = int_to_ptr.vmem [resolvable:$true] %s141
          %144 = dma.vmem_to_smem %s142, 16, [#allocation5], [#allocation6]
        $region20: #{tpu_custom_call.1} parent=11 // pred_fallthru
          _
      $region12: #{tpu_custom_call.1} parent=5 // pred_fallthru
        _
      %p145 = scmp.lt.s32.totalorder %s14, 2
      // Predicated region
      $region21: #{tpu_custom_call.1} parent=5 // pred_check
        %p146 = pneg %p145
      $region22: #{tpu_custom_call.1} parent=5 // pred_check_branch
        %148 = sbr.rel (%p146) target = $region24
      $region23: #{tpu_custom_call.1} parent=5 // pred_region
        // Predicated region
        $region25: #{tpu_custom_call.1} parent=23 // pred_check
          %p149 = pneg %p76
        $region26: #{tpu_custom_call.1} parent=23 // pred_check_branch
          %151 = sbr.rel (%p149) target = $region28
        $region27: #{tpu_custom_call.1} parent=23 // pred_region
          %p152 = scmp.lt.s32.totalorder %s14, 1
          %s153 = scalar_select %p152, %s14, 1
          %s154 = smul.addr %s153, 40
          %s155 = smul.addr %s154, 8
          %s156 = scalar_lea.vmem %s2, %s155
        $region28: #{tpu_custom_call.1} parent=23 // pred_fallthru
          _
      $region24: #{tpu_custom_call.1} parent=5 // pred_fallthru
        _
      %p157 = scmp.le.s32.totalorder 1, %s14
      %p158 = scmp.lt.s32.totalorder %s14, 3
      %p159 = pnand %p157, %p158
      %p160 = pneg %p159
      // Predicated region
      $region29: #{tpu_custom_call.1} parent=5 // pred_check
        _
      $region30: #{tpu_custom_call.1} parent=5 // pred_check_branch
        %162 = sbr.rel (%p159) target = $region32
      $region31: #{tpu_custom_call.1} parent=5 // pred_region
        %s163 = ssub.s32 %s14, 1
        // Predicated region
        $region33: #{tpu_custom_call.1} parent=31 // pred_check
          %p164 = pneg %p35
        $region34: #{tpu_custom_call.1} parent=31 // pred_check_branch
          %166 = sbr.rel (%p164) target = $region36
        $region35: #{tpu_custom_call.1} parent=31 // pred_region
          %167 = dma.done [#allocation4], 16
        $region36: #{tpu_custom_call.1} parent=31 // pred_fallthru
          _
        // Predicated region
        $region37: #{tpu_custom_call.1} parent=31 // pred_check
          %p168 = pneg %p56
        $region38: #{tpu_custom_call.1} parent=31 // pred_check_branch
          %170 = sbr.rel (%p168) target = $region40
        $region39: #{tpu_custom_call.1} parent=31 // pred_region
          %171 = dma.done [#allocation6], 16
        $region40: #{tpu_custom_call.1} parent=31 // pred_fallthru
          _
        %172 = sfence
        %p173 = pneg %p35
        %p174 = pneg %p32
        %p175 = pneg %p56
        %p176 = pneg %p53
        %p177 = scmp.lt.s32.totalorder %s19, 1
        %s178 = scalar_select %p177, %s19, 1
        %s179 = smul.addr %s178, 40
        %s180 = smul.addr %s179, 8
        %s181 = scalar_lea.vmem %s2, %s180
        %p182 = pneg %p82
        %p183 = pneg %p79
        %p184 = pneg %p108
        %p185 = pneg %p105
        %s186 = sand.u32 %s95, 1
        %s187 = scalar_lea.sflag [#allocation3], %s186
        %s188 = sand.u32 %s95, 1
        %s189 = smul.addr %s188, 96
        %s190 = scalar_lea.vmem [#allocation7], %s189
        %p191 = scmp.lt.s32.totalorder %s19, 1
        %s192 = scalar_select %p191, %s19, 1
        %s193 = smul.addr %s192, 40
        %s194 = smul.addr %s193, 8
        %s195 = scalar_lea.vmem %s2, %s194
        %s196 = sld [smem:[#allocation2]]
        %s197 = sld [smem:[#allocation2 + $0x1]]
        %s198 = sld [smem:[#allocation2 + $0x2]]
        %s199 = sld [smem:[#allocation2 + $0x3]]
        %s200 = sld [smem:[#allocation2 + $0x4]]
        %s201 = sld [smem:[#allocation2 + $0x5]]
        %s202 = sld [smem:[#allocation2 + $0x6]]
        %s203 = sld [smem:[#allocation2 + $0x7]]
        %s204 = sld [smem:[#allocation2 + $0x8]]
        %s205 = sld [smem:[#allocation2 + $0x9]]
        %s206 = sld [smem:[#allocation2 + $0xa]]
        %s207 = sld [smem:[#allocation2 + $0xb]]
        %s208 = sld [smem:[#allocation2 + $0xc]]
        %s209 = sld [smem:[#allocation2 + $0xd]]
        %s210 = sld [smem:[#allocation2 + $0xe]]
        %s211 = sld [smem:[#allocation2 + $0xf]]
        %s212 = sld [smem:[#allocation2 + $0x10]]
        %s213 = sld [smem:[#allocation2 + $0x11]]
        %s214 = sld [smem:[#allocation2 + $0x12]]
        %s215 = sld [smem:[#allocation2 + $0x13]]
        %s216 = sld [smem:[#allocation2 + $0x14]]
        %s217 = sld [smem:[#allocation2 + $0x15]]
        %s218 = sld [smem:[#allocation2 + $0x16]]
        %s219 = sld [smem:[#allocation2 + $0x17]]
        %s220 = sld [smem:[#allocation2 + $0x18]]
        %s221 = sld [smem:[#allocation2 + $0x19]]
        %s222 = sld [smem:[#allocation2 + $0x1a]]
        %s223 = sld [smem:[#allocation2 + $0x1b]]
        %s224 = sld [smem:[#allocation2 + $0x1c]]
        %s225 = sld [smem:[#allocation2 + $0x1d]]
        %s226 = sld [smem:[#allocation2 + $0x1e]]
        %s227 = sld [smem:[#allocation2 + $0x1f]]
        %s228 = sld [smem:[#allocation2 + $0x20]]
        %s229 = sld [smem:[#allocation2 + $0x21]]
        %s230 = sld [smem:[#allocation2 + $0x22]]
        %s231 = sld [smem:[#allocation2 + $0x23]]
        %s232 = sld [smem:[#allocation2 + $0x24]]
        %s233 = sld [smem:[#allocation2 + $0x25]]
        %s234 = sld [smem:[#allocation2 + $0x26]]
        %s235 = sld [smem:[#allocation2 + $0x27]]
        %s236 = sld [smem:[#allocation2 + $0x28]]
        %s237 = sld [smem:[#allocation2 + $0x29]]
        %s238 = sld [smem:[#allocation2 + $0x2a]]
        %s239 = sld [smem:[#allocation2 + $0x2b]]
        %s240 = sld [smem:[#allocation2 + $0x2c]]
        %s241 = sld [smem:[#allocation2 + $0x2d]]
        %s242 = sld [smem:[#allocation2 + $0x2e]]
        %s243 = sld [smem:[#allocation2 + $0x2f]]
        %s244 = sld [smem:[#allocation5]]
        %s245 = sld [smem:[#allocation5 + $0x1]]
        %s246 = sld [smem:[#allocation5 + $0x2]]
        %v247 = vstv %s244
        %v248 = vadd.f32 %v247, 0.0
        %v249 = vstv %s245
        %v250 = vadd.f32 %v249, 0.0
        %v251 = vstv %s246
        %v252 = vadd.f32 %v251, 0.0
        %v253 = vld [vmem:[%s195] sm:$0xff]
        %v254 = vstv %s196
        %v255 = vmul.f32 %v254, %v253
        %v256 = vadd.f32 %v248, %v255
        %v257 = vstv %s212
        %v258 = vmul.f32 %v257, %v253
        %v259 = vadd.f32 %v250, %v258
        %v260 = vstv %s228
        %v261 = vmul.f32 %v260, %v253
        %v262 = vadd.f32 %v252, %v261
        %v263 = vld [vmem:[%s195 + $0x8] sm:$0xff]
        %v264 = vstv %s197
        %v265 = vmul.f32 %v264, %v253
        %v266 = vmul.f32 %v264, %v263
        %269 = vrot.lane.b32.xlu0 %v265, 127
        %v270 = vpop.permute.xlu0 %269
        %271 = vrot.lane.b32.xlu0 %v266, 127
        %v272 = vpop.permute.xlu0 %271
        %vm273 = vcmask 1039360
        %v274 = vsel %vm273, %v270, %v272
        %v276 = vadd.f32 %v256, %v274
        %v277 = vstv %s213
        %v278 = vmul.f32 %v277, %v253
        %v279 = vmul.f32 %v277, %v263
        %282 = vrot.lane.b32.xlu0 %v278, 127
        %v283 = vpop.permute.xlu0 %282
        %284 = vrot.lane.b32.xlu0 %v279, 127
        %v285 = vpop.permute.xlu0 %284
        %v286 = vsel %vm273, %v283, %v285
        %v288 = vadd.f32 %v259, %v286
        %v289 = vstv %s229
        %v290 = vmul.f32 %v289, %v253
        %v291 = vmul.f32 %v289, %v263
        %294 = vrot.lane.b32.xlu0 %v290, 127
        %v295 = vpop.permute.xlu0 %294
        %296 = vrot.lane.b32.xlu0 %v291, 127
        %v297 = vpop.permute.xlu0 %296
        %v298 = vsel %vm273, %v295, %v297
        %v300 = vadd.f32 %v262, %v298
        %v301 = vld [vmem:[%s195] sm:$0xfe]
        %v302 = vld [vmem:[%s195 + $0x10] sm:$0x1]
        %v303 = vstv %s198
        %v304 = vmul.f32 %v303, %v301
        %v305 = vmul.f32 %v303, %v302
        %vm308 = vcmask 1046528
        %v309 = vrot.slane %v304, 1
        %v310 = vrot.slane %v305, 1
        %v311 = vsel %vm308, %v309, %v310
        %v313 = vadd.f32 %v276, %v311
        %v314 = vstv %s214
        %v315 = vmul.f32 %v314, %v301
        %v316 = vmul.f32 %v314, %v302
        %v319 = vrot.slane %v315, 1
        %v320 = vrot.slane %v316, 1
        %v321 = vsel %vm308, %v319, %v320
        %v323 = vadd.f32 %v288, %v321
        %v324 = vstv %s230
        %v325 = vmul.f32 %v324, %v301
        %v326 = vmul.f32 %v324, %v302
        %v329 = vrot.slane %v325, 1
        %v330 = vrot.slane %v326, 1
        %v331 = vsel %vm308, %v329, %v330
        %v333 = vadd.f32 %v300, %v331
        %v334 = vld [vmem:[%s195 + $0x8] sm:$0xfe]
        %v335 = vld [vmem:[%s195 + $0x18] sm:$0x1]
        %v336 = vstv %s199
        %v337 = vmul.f32 %v336, %v301
        %v338 = vmul.f32 %v336, %v334
        %v339 = vmul.f32 %v336, %v302
        %v340 = vmul.f32 %v336, %v335
        %v345 = vrot.slane %v337, 1
        %v346 = vrot.slane %v339, 1
        %v347 = vsel %vm308, %v345, %v346
        %v348 = vrot.slane %v338, 1
        %v349 = vrot.slane %v340, 1
        %v350 = vsel %vm308, %v348, %v349
        %351 = vrot.lane.b32.xlu0 %v347, 127
        %v352 = vpop.permute.xlu0 %351
        %353 = vrot.lane.b32.xlu0 %v350, 127
        %v354 = vpop.permute.xlu0 %353
        %v355 = vsel %vm273, %v352, %v354
        %v357 = vadd.f32 %v313, %v355
        %v358 = vstv %s215
        %v359 = vmul.f32 %v358, %v301
        %v360 = vmul.f32 %v358, %v334
        %v361 = vmul.f32 %v358, %v302
        %v362 = vmul.f32 %v358, %v335
        %v367 = vrot.slane %v359, 1
        %v368 = vrot.slane %v361, 1
        %v369 = vsel %vm308, %v367, %v368
        %v370 = vrot.slane %v360, 1
        %v371 = vrot.slane %v362, 1
        %v372 = vsel %vm308, %v370, %v371
        %373 = vrot.lane.b32.xlu0 %v369, 127
        %v374 = vpop.permute.xlu0 %373
        %375 = vrot.lane.b32.xlu0 %v372, 127
        %v376 = vpop.permute.xlu0 %375
        %v377 = vsel %vm273, %v374, %v376
        %v379 = vadd.f32 %v323, %v377
        %v380 = vstv %s231
        %v381 = vmul.f32 %v380, %v301
        %v382 = vmul.f32 %v380, %v334
        %v383 = vmul.f32 %v380, %v302
        %v384 = vmul.f32 %v380, %v335
        %v389 = vrot.slane %v381, 1
        %v390 = vrot.slane %v383, 1
        %v391 = vsel %vm308, %v389, %v390
        %v392 = vrot.slane %v382, 1
        %v393 = vrot.slane %v384, 1
        %v394 = vsel %vm308, %v392, %v393
        %395 = vrot.lane.b32.xlu0 %v391, 127
        %v396 = vpop.permute.xlu0 %395
        %397 = vrot.lane.b32.xlu0 %v394, 127
        %v398 = vpop.permute.xlu0 %397
        %v399 = vsel %vm273, %v396, %v398
        %v401 = vadd.f32 %v333, %v399
        %s402 = scalar_lea.vmem %s195, 80
        %v403 = vld [vmem:[%s402] sm:$0xff]
        %v404 = vstv %s200
        %v405 = vmul.f32 %v404, %v403
        %v406 = vadd.f32 %v357, %v405
        %v407 = vstv %s216
        %v408 = vmul.f32 %v407, %v403
        %v409 = vadd.f32 %v379, %v408
        %v410 = vstv %s232
        %v411 = vmul.f32 %v410, %v403
        %v412 = vadd.f32 %v401, %v411
        %v413 = vld [vmem:[%s402 + $0x8] sm:$0xff]
        %v414 = vstv %s201
        %v415 = vmul.f32 %v414, %v403
        %v416 = vmul.f32 %v414, %v413
        %419 = vrot.lane.b32.xlu0 %v415, 127
        %v420 = vpop.permute.xlu0 %419
        %421 = vrot.lane.b32.xlu0 %v416, 127
        %v422 = vpop.permute.xlu0 %421
        %v423 = vsel %vm273, %v420, %v422
        %v425 = vadd.f32 %v406, %v423
        %v426 = vstv %s217
        %v427 = vmul.f32 %v426, %v403
        %v428 = vmul.f32 %v426, %v413
        %431 = vrot.lane.b32.xlu0 %v427, 127
        %v432 = vpop.permute.xlu0 %431
        %433 = vrot.lane.b32.xlu0 %v428, 127
        %v434 = vpop.permute.xlu0 %433
        %v435 = vsel %vm273, %v432, %v434
        %v437 = vadd.f32 %v409, %v435
        %v438 = vstv %s233
        %v439 = vmul.f32 %v438, %v403
        %v440 = vmul.f32 %v438, %v413
        %443 = vrot.lane.b32.xlu0 %v439, 127
        %v444 = vpop.permute.xlu0 %443
        %445 = vrot.lane.b32.xlu0 %v440, 127
        %v446 = vpop.permute.xlu0 %445
        %v447 = vsel %vm273, %v444, %v446
        %v449 = vadd.f32 %v412, %v447
        %v450 = vld [vmem:[%s402] sm:$0xfe]
        %v451 = vld [vmem:[%s402 + $0x10] sm:$0x1]
        %v452 = vstv %s202
        %v453 = vmul.f32 %v452, %v450
        %v454 = vmul.f32 %v452, %v451
        %v457 = vrot.slane %v453, 1
        %v458 = vrot.slane %v454, 1
        %v459 = vsel %vm308, %v457, %v458
        %v461 = vadd.f32 %v425, %v459
        %v462 = vstv %s218
        %v463 = vmul.f32 %v462, %v450
        %v464 = vmul.f32 %v462, %v451
        %v467 = vrot.slane %v463, 1
        %v468 = vrot.slane %v464, 1
        %v469 = vsel %vm308, %v467, %v468
        %v471 = vadd.f32 %v437, %v469
        %v472 = vstv %s234
        %v473 = vmul.f32 %v472, %v450
        %v474 = vmul.f32 %v472, %v451
        %v477 = vrot.slane %v473, 1
        %v478 = vrot.slane %v474, 1
        %v479 = vsel %vm308, %v477, %v478
        %v481 = vadd.f32 %v449, %v479
        %v482 = vld [vmem:[%s402 + $0x8] sm:$0xfe]
        %v483 = vld [vmem:[%s402 + $0x18] sm:$0x1]
        %v484 = vstv %s203
        %v485 = vmul.f32 %v484, %v450
        %v486 = vmul.f32 %v484, %v482
        %v487 = vmul.f32 %v484, %v451
        %v488 = vmul.f32 %v484, %v483
        %v493 = vrot.slane %v485, 1
        %v494 = vrot.slane %v487, 1
        %v495 = vsel %vm308, %v493, %v494
        %v496 = vrot.slane %v486, 1
        %v497 = vrot.slane %v488, 1
        %v498 = vsel %vm308, %v496, %v497
        %499 = vrot.lane.b32.xlu0 %v495, 127
        %v500 = vpop.permute.xlu0 %499
        %501 = vrot.lane.b32.xlu0 %v498, 127
        %v502 = vpop.permute.xlu0 %501
        %v503 = vsel %vm273, %v500, %v502
        %v505 = vadd.f32 %v461, %v503
        %v506 = vstv %s219
        %v507 = vmul.f32 %v506, %v450
        %v508 = vmul.f32 %v506, %v482
        %v509 = vmul.f32 %v506, %v451
        %v510 = vmul.f32 %v506, %v483
        %v515 = vrot.slane %v507, 1
        %v516 = vrot.slane %v509, 1
        %v517 = vsel %vm308, %v515, %v516
        %v518 = vrot.slane %v508, 1
        %v519 = vrot.slane %v510, 1
        %v520 = vsel %vm308, %v518, %v519
        %521 = vrot.lane.b32.xlu0 %v517, 127
        %v522 = vpop.permute.xlu0 %521
        %523 = vrot.lane.b32.xlu0 %v520, 127
        %v524 = vpop.permute.xlu0 %523
        %v525 = vsel %vm273, %v522, %v524
        %v527 = vadd.f32 %v471, %v525
        %v528 = vstv %s235
        %v529 = vmul.f32 %v528, %v450
        %v530 = vmul.f32 %v528, %v482
        %v531 = vmul.f32 %v528, %v451
        %v532 = vmul.f32 %v528, %v483
        %v537 = vrot.slane %v529, 1
        %v538 = vrot.slane %v531, 1
        %v539 = vsel %vm308, %v537, %v538
        %v540 = vrot.slane %v530, 1
        %v541 = vrot.slane %v532, 1
        %v542 = vsel %vm308, %v540, %v541
        %543 = vrot.lane.b32.xlu0 %v539, 127
        %v544 = vpop.permute.xlu0 %543
        %545 = vrot.lane.b32.xlu0 %v542, 127
        %v546 = vpop.permute.xlu0 %545
        %v547 = vsel %vm273, %v544, %v546
        %v549 = vadd.f32 %v481, %v547
        %s550 = scalar_lea.vmem %s195, 160
        %v551 = vld [vmem:[%s550] sm:$0xff]
        %v552 = vstv %s204
        %v553 = vmul.f32 %v552, %v551
        %v554 = vadd.f32 %v505, %v553
        %v555 = vstv %s220
        %v556 = vmul.f32 %v555, %v551
        %v557 = vadd.f32 %v527, %v556
        %v558 = vstv %s236
        %v559 = vmul.f32 %v558, %v551
        %v560 = vadd.f32 %v549, %v559
        %v561 = vld [vmem:[%s550 + $0x8] sm:$0xff]
        %v562 = vstv %s205
        %v563 = vmul.f32 %v562, %v551
        %v564 = vmul.f32 %v562, %v561
        %567 = vrot.lane.b32.xlu0 %v563, 127
        %v568 = vpop.permute.xlu0 %567
        %569 = vrot.lane.b32.xlu0 %v564, 127
        %v570 = vpop.permute.xlu0 %569
        %v571 = vsel %vm273, %v568, %v570
        %v573 = vadd.f32 %v554, %v571
        %v574 = vstv %s221
        %v575 = vmul.f32 %v574, %v551
        %v576 = vmul.f32 %v574, %v561
        %579 = vrot.lane.b32.xlu0 %v575, 127
        %v580 = vpop.permute.xlu0 %579
        %581 = vrot.lane.b32.xlu0 %v576, 127
        %v582 = vpop.permute.xlu0 %581
        %v583 = vsel %vm273, %v580, %v582
        %v585 = vadd.f32 %v557, %v583
        %v586 = vstv %s237
        %v587 = vmul.f32 %v586, %v551
        %v588 = vmul.f32 %v586, %v561
        %591 = vrot.lane.b32.xlu0 %v587, 127
        %v592 = vpop.permute.xlu0 %591
        %593 = vrot.lane.b32.xlu0 %v588, 127
        %v594 = vpop.permute.xlu0 %593
        %v595 = vsel %vm273, %v592, %v594
        %v597 = vadd.f32 %v560, %v595
        %v598 = vld [vmem:[%s550] sm:$0xfe]
        %v599 = vld [vmem:[%s550 + $0x10] sm:$0x1]
        %v600 = vstv %s206
        %v601 = vmul.f32 %v600, %v598
        %v602 = vmul.f32 %v600, %v599
        %v605 = vrot.slane %v601, 1
        %v606 = vrot.slane %v602, 1
        %v607 = vsel %vm308, %v605, %v606
        %v609 = vadd.f32 %v573, %v607
        %v610 = vstv %s222
        %v611 = vmul.f32 %v610, %v598
        %v612 = vmul.f32 %v610, %v599
        %v615 = vrot.slane %v611, 1
        %v616 = vrot.slane %v612, 1
        %v617 = vsel %vm308, %v615, %v616
        %v619 = vadd.f32 %v585, %v617
        %v620 = vstv %s238
        %v621 = vmul.f32 %v620, %v598
        %v622 = vmul.f32 %v620, %v599
        %v625 = vrot.slane %v621, 1
        %v626 = vrot.slane %v622, 1
        %v627 = vsel %vm308, %v625, %v626
        %v629 = vadd.f32 %v597, %v627
        %v630 = vld [vmem:[%s550 + $0x8] sm:$0xfe]
        %v631 = vld [vmem:[%s550 + $0x18] sm:$0x1]
        %v632 = vstv %s207
        %v633 = vmul.f32 %v632, %v598
        %v634 = vmul.f32 %v632, %v630
        %v635 = vmul.f32 %v632, %v599
        %v636 = vmul.f32 %v632, %v631
        %v641 = vrot.slane %v633, 1
        %v642 = vrot.slane %v635, 1
        %v643 = vsel %vm308, %v641, %v642
        %v644 = vrot.slane %v634, 1
        %v645 = vrot.slane %v636, 1
        %v646 = vsel %vm308, %v644, %v645
        %647 = vrot.lane.b32.xlu0 %v643, 127
        %v648 = vpop.permute.xlu0 %647
        %649 = vrot.lane.b32.xlu0 %v646, 127
        %v650 = vpop.permute.xlu0 %649
        %v651 = vsel %vm273, %v648, %v650
        %v653 = vadd.f32 %v609, %v651
        %v654 = vstv %s223
        %v655 = vmul.f32 %v654, %v598
        %v656 = vmul.f32 %v654, %v630
        %v657 = vmul.f32 %v654, %v599
        %v658 = vmul.f32 %v654, %v631
        %v663 = vrot.slane %v655, 1
        %v664 = vrot.slane %v657, 1
        %v665 = vsel %vm308, %v663, %v664
        %v666 = vrot.slane %v656, 1
        %v667 = vrot.slane %v658, 1
        %v668 = vsel %vm308, %v666, %v667
        %669 = vrot.lane.b32.xlu0 %v665, 127
        %v670 = vpop.permute.xlu0 %669
        %671 = vrot.lane.b32.xlu0 %v668, 127
        %v672 = vpop.permute.xlu0 %671
        %v673 = vsel %vm273, %v670, %v672
        %v675 = vadd.f32 %v619, %v673
        %v676 = vstv %s239
        %v677 = vmul.f32 %v676, %v598
        %v678 = vmul.f32 %v676, %v630
        %v679 = vmul.f32 %v676, %v599
        %v680 = vmul.f32 %v676, %v631
        %v685 = vrot.slane %v677, 1
        %v686 = vrot.slane %v679, 1
        %v687 = vsel %vm308, %v685, %v686
        %v688 = vrot.slane %v678, 1
        %v689 = vrot.slane %v680, 1
        %v690 = vsel %vm308, %v688, %v689
        %691 = vrot.lane.b32.xlu0 %v687, 127
        %v692 = vpop.permute.xlu0 %691
        %693 = vrot.lane.b32.xlu0 %v690, 127
        %v694 = vpop.permute.xlu0 %693
        %v695 = vsel %vm273, %v692, %v694
        %v697 = vadd.f32 %v629, %v695
        %s698 = scalar_lea.vmem %s195, 240
        %v699 = vld [vmem:[%s698] sm:$0xff]
        %v700 = vstv %s208
        %v701 = vmul.f32 %v700, %v699
        %v702 = vadd.f32 %v653, %v701
        %v703 = vstv %s224
        %v704 = vmul.f32 %v703, %v699
        %v705 = vadd.f32 %v675, %v704
        %v706 = vstv %s240
        %v707 = vmul.f32 %v706, %v699
        %v708 = vadd.f32 %v697, %v707
        %v709 = vld [vmem:[%s698 + $0x8] sm:$0xff]
        %v710 = vstv %s209
        %v711 = vmul.f32 %v710, %v699
        %v712 = vmul.f32 %v710, %v709
        %715 = vrot.lane.b32.xlu0 %v711, 127
        %v716 = vpop.permute.xlu0 %715
        %717 = vrot.lane.b32.xlu0 %v712, 127
        %v718 = vpop.permute.xlu0 %717
        %v719 = vsel %vm273, %v716, %v718
        %v721 = vadd.f32 %v702, %v719
        %v722 = vstv %s225
        %v723 = vmul.f32 %v722, %v699
        %v724 = vmul.f32 %v722, %v709
        %727 = vrot.lane.b32.xlu0 %v723, 127
        %v728 = vpop.permute.xlu0 %727
        %729 = vrot.lane.b32.xlu0 %v724, 127
        %v730 = vpop.permute.xlu0 %729
        %v731 = vsel %vm273, %v728, %v730
        %v733 = vadd.f32 %v705, %v731
        %v734 = vstv %s241
        %v735 = vmul.f32 %v734, %v699
        %v736 = vmul.f32 %v734, %v709
        %739 = vrot.lane.b32.xlu0 %v735, 127
        %v740 = vpop.permute.xlu0 %739
        %741 = vrot.lane.b32.xlu0 %v736, 127
        %v742 = vpop.permute.xlu0 %741
        %v743 = vsel %vm273, %v740, %v742
        %v745 = vadd.f32 %v708, %v743
        %v746 = vld [vmem:[%s698] sm:$0xfe]
        %v747 = vld [vmem:[%s698 + $0x10] sm:$0x1]
        %v748 = vstv %s210
        %v749 = vmul.f32 %v748, %v746
        %v750 = vmul.f32 %v748, %v747
        %v753 = vrot.slane %v749, 1
        %v754 = vrot.slane %v750, 1
        %v755 = vsel %vm308, %v753, %v754
        %v757 = vadd.f32 %v721, %v755
        %v758 = vstv %s226
        %v759 = vmul.f32 %v758, %v746
        %v760 = vmul.f32 %v758, %v747
        %v763 = vrot.slane %v759, 1
        %v764 = vrot.slane %v760, 1
        %v765 = vsel %vm308, %v763, %v764
        %v767 = vadd.f32 %v733, %v765
        %v768 = vstv %s242
        %v769 = vmul.f32 %v768, %v746
        %v770 = vmul.f32 %v768, %v747
        %v773 = vrot.slane %v769, 1
        %v774 = vrot.slane %v770, 1
        %v775 = vsel %vm308, %v773, %v774
        %v777 = vadd.f32 %v745, %v775
        %v778 = vld [vmem:[%s698 + $0x8] sm:$0xfe]
        %v779 = vld [vmem:[%s698 + $0x18] sm:$0x1]
        %v780 = vstv %s211
        %v781 = vmul.f32 %v780, %v746
        %v782 = vmul.f32 %v780, %v778
        %v783 = vmul.f32 %v780, %v747
        %v784 = vmul.f32 %v780, %v779
        %v789 = vrot.slane %v781, 1
        %v790 = vrot.slane %v783, 1
        %v791 = vsel %vm308, %v789, %v790
        %v792 = vrot.slane %v782, 1
        %v793 = vrot.slane %v784, 1
        %v794 = vsel %vm308, %v792, %v793
        %795 = vrot.lane.b32.xlu0 %v791, 127
        %v796 = vpop.permute.xlu0 %795
        %797 = vrot.lane.b32.xlu0 %v794, 127
        %v798 = vpop.permute.xlu0 %797
        %v799 = vsel %vm273, %v796, %v798
        %v801 = vadd.f32 %v757, %v799
        %v802 = vstv %s227
        %v803 = vmul.f32 %v802, %v746
        %v804 = vmul.f32 %v802, %v778
        %v805 = vmul.f32 %v802, %v747
        %v806 = vmul.f32 %v802, %v779
        %v811 = vrot.slane %v803, 1
        %v812 = vrot.slane %v805, 1
        %v813 = vsel %vm308, %v811, %v812
        %v814 = vrot.slane %v804, 1
        %v815 = vrot.slane %v806, 1
        %v816 = vsel %vm308, %v814, %v815
        %817 = vrot.lane.b32.xlu0 %v813, 127
        %v818 = vpop.permute.xlu0 %817
        %819 = vrot.lane.b32.xlu0 %v816, 127
        %v820 = vpop.permute.xlu0 %819
        %v821 = vsel %vm273, %v818, %v820
        %v823 = vadd.f32 %v767, %v821
        %v824 = vstv %s243
        %v825 = vmul.f32 %v824, %v746
        %v826 = vmul.f32 %v824, %v778
        %v827 = vmul.f32 %v824, %v747
        %v828 = vmul.f32 %v824, %v779
        %v833 = vrot.slane %v825, 1
        %v834 = vrot.slane %v827, 1
        %v835 = vsel %vm308, %v833, %v834
        %v836 = vrot.slane %v826, 1
        %v837 = vrot.slane %v828, 1
        %v838 = vsel %vm308, %v836, %v837
        %839 = vrot.lane.b32.xlu0 %v835, 127
        %v840 = vpop.permute.xlu0 %839
        %841 = vrot.lane.b32.xlu0 %v838, 127
        %v842 = vpop.permute.xlu0 %841
        %v843 = vsel %vm273, %v840, %v842
        %v845 = vadd.f32 %v777, %v843
        %846 = vst [vmem:[%s190] sm:$0xff] %v801
        %s847 = scalar_lea.vmem %s190, 32 [#allocation7]
        %848 = vst [vmem:[%s847] sm:$0xff] %v823
        %s849 = scalar_lea.vmem %s190, 64 [#allocation7]
        %850 = vst [vmem:[%s849] sm:$0xff] %v845
        %v851 = vld [vmem:[%s195 + $0x10] sm:$0xff]
        %v852 = vmul.f32 %v254, %v851
        %v853 = vadd.f32 %v248, %v852
        %v854 = vmul.f32 %v257, %v851
        %v855 = vadd.f32 %v250, %v854
        %v856 = vmul.f32 %v260, %v851
        %v857 = vadd.f32 %v252, %v856
        %v858 = vld [vmem:[%s195 + $0x18] sm:$0xff]
        %v859 = vmul.f32 %v264, %v851
        %v860 = vmul.f32 %v264, %v858
        %863 = vrot.lane.b32.xlu0 %v859, 127
        %v864 = vpop.permute.xlu0 %863
        %865 = vrot.lane.b32.xlu0 %v860, 127
        %v866 = vpop.permute.xlu0 %865
        %v867 = vsel %vm273, %v864, %v866
        %v869 = vadd.f32 %v853, %v867
        %v870 = vmul.f32 %v277, %v851
        %v871 = vmul.f32 %v277, %v858
        %874 = vrot.lane.b32.xlu0 %v870, 127
        %v875 = vpop.permute.xlu0 %874
        %876 = vrot.lane.b32.xlu0 %v871, 127
        %v877 = vpop.permute.xlu0 %876
        %v878 = vsel %vm273, %v875, %v877
        %v880 = vadd.f32 %v855, %v878
        %v881 = vmul.f32 %v289, %v851
        %v882 = vmul.f32 %v289, %v858
        %885 = vrot.lane.b32.xlu0 %v881, 127
        %v886 = vpop.permute.xlu0 %885
        %887 = vrot.lane.b32.xlu0 %v882, 127
        %v888 = vpop.permute.xlu0 %887
        %v889 = vsel %vm273, %v886, %v888
        %v891 = vadd.f32 %v857, %v889
        %v892 = vld [vmem:[%s195 + $0x10] sm:$0xfe]
        %v893 = vld [vmem:[%s195 + $0x20] sm:$0x1]
        %v894 = vmul.f32 %v303, %v892
        %v895 = vmul.f32 %v303, %v893
        %v898 = vrot.slane %v894, 1
        %v899 = vrot.slane %v895, 1
        %v900 = vsel %vm308, %v898, %v899
        %v902 = vadd.f32 %v869, %v900
        %v903 = vmul.f32 %v314, %v892
        %v904 = vmul.f32 %v314, %v893
        %v907 = vrot.slane %v903, 1
        %v908 = vrot.slane %v904, 1
        %v909 = vsel %vm308, %v907, %v908
        %v911 = vadd.f32 %v880, %v909
        %v912 = vmul.f32 %v324, %v892
        %v913 = vmul.f32 %v324, %v893
        %v916 = vrot.slane %v912, 1
        %v917 = vrot.slane %v913, 1
        %v918 = vsel %vm308, %v916, %v917
        %v920 = vadd.f32 %v891, %v918
        %v921 = vld [vmem:[%s195 + $0x18] sm:$0xfe]
        %v922 = vld [vmem:[%s195 + $0x28] sm:$0x1]
        %v923 = vmul.f32 %v336, %v892
        %v924 = vmul.f32 %v336, %v921
        %v925 = vmul.f32 %v336, %v893
        %v926 = vmul.f32 %v336, %v922
        %v931 = vrot.slane %v923, 1
        %v932 = vrot.slane %v925, 1
        %v933 = vsel %vm308, %v931, %v932
        %v934 = vrot.slane %v924, 1
        %v935 = vrot.slane %v926, 1
        %v936 = vsel %vm308, %v934, %v935
        %937 = vrot.lane.b32.xlu0 %v933, 127
        %v938 = vpop.permute.xlu0 %937
        %939 = vrot.lane.b32.xlu0 %v936, 127
        %v940 = vpop.permute.xlu0 %939
        %v941 = vsel %vm273, %v938, %v940
        %v943 = vadd.f32 %v902, %v941
        %v944 = vmul.f32 %v358, %v892
        %v945 = vmul.f32 %v358, %v921
        %v946 = vmul.f32 %v358, %v893
        %v947 = vmul.f32 %v358, %v922
        %v952 = vrot.slane %v944, 1
        %v953 = vrot.slane %v946, 1
        %v954 = vsel %vm308, %v952, %v953
        %v955 = vrot.slane %v945, 1
        %v956 = vrot.slane %v947, 1
        %v957 = vsel %vm308, %v955, %v956
        %958 = vrot.lane.b32.xlu0 %v954, 127
        %v959 = vpop.permute.xlu0 %958
        %960 = vrot.lane.b32.xlu0 %v957, 127
        %v961 = vpop.permute.xlu0 %960
        %v962 = vsel %vm273, %v959, %v961
        %v964 = vadd.f32 %v911, %v962
        %v965 = vmul.f32 %v380, %v892
        %v966 = vmul.f32 %v380, %v921
        %v967 = vmul.f32 %v380, %v893
        %v968 = vmul.f32 %v380, %v922
        %v973 = vrot.slane %v965, 1
        %v974 = vrot.slane %v967, 1
        %v975 = vsel %vm308, %v973, %v974
        %v976 = vrot.slane %v966, 1
        %v977 = vrot.slane %v968, 1
        %v978 = vsel %vm308, %v976, %v977
        %979 = vrot.lane.b32.xlu0 %v975, 127
        %v980 = vpop.permute.xlu0 %979
        %981 = vrot.lane.b32.xlu0 %v978, 127
        %v982 = vpop.permute.xlu0 %981
        %v983 = vsel %vm273, %v980, %v982
        %v985 = vadd.f32 %v920, %v983
        %v986 = vld [vmem:[%s402 + $0x10] sm:$0xff]
        %v987 = vmul.f32 %v404, %v986
        %v988 = vadd.f32 %v943, %v987
        %v989 = vmul.f32 %v407, %v986
        %v990 = vadd.f32 %v964, %v989
        %v991 = vmul.f32 %v410, %v986
        %v992 = vadd.f32 %v985, %v991
        %v993 = vld [vmem:[%s402 + $0x18] sm:$0xff]
        %v994 = vmul.f32 %v414, %v986
        %v995 = vmul.f32 %v414, %v993
        %998 = vrot.lane.b32.xlu0 %v994, 127
        %v999 = vpop.permute.xlu0 %998
        %1000 = vrot.lane.b32.xlu0 %v995, 127
        %v1001 = vpop.permute.xlu0 %1000
        %v1002 = vsel %vm273, %v999, %v1001
        %v1004 = vadd.f32 %v988, %v1002
        %v1005 = vmul.f32 %v426, %v986
        %v1006 = vmul.f32 %v426, %v993
        %1009 = vrot.lane.b32.xlu0 %v1005, 127
        %v1010 = vpop.permute.xlu0 %1009
        %1011 = vrot.lane.b32.xlu0 %v1006, 127
        %v1012 = vpop.permute.xlu0 %1011
        %v1013 = vsel %vm273, %v1010, %v1012
        %v1015 = vadd.f32 %v990, %v1013
        %v1016 = vmul.f32 %v438, %v986
        %v1017 = vmul.f32 %v438, %v993
        %1020 = vrot.lane.b32.xlu0 %v1016, 127
        %v1021 = vpop.permute.xlu0 %1020
        %1022 = vrot.lane.b32.xlu0 %v1017, 127
        %v1023 = vpop.permute.xlu0 %1022
        %v1024 = vsel %vm273, %v1021, %v1023
        %v1026 = vadd.f32 %v992, %v1024
        %v1027 = vld [vmem:[%s402 + $0x10] sm:$0xfe]
        %v1028 = vld [vmem:[%s402 + $0x20] sm:$0x1]
        %v1029 = vmul.f32 %v452, %v1027
        %v1030 = vmul.f32 %v452, %v1028
        %v1033 = vrot.slane %v1029, 1
        %v1034 = vrot.slane %v1030, 1
        %v1035 = vsel %vm308, %v1033, %v1034
        %v1037 = vadd.f32 %v1004, %v1035
        %v1038 = vmul.f32 %v462, %v1027
        %v1039 = vmul.f32 %v462, %v1028
        %v1042 = vrot.slane %v1038, 1
        %v1043 = vrot.slane %v1039, 1
        %v1044 = vsel %vm308, %v1042, %v1043
        %v1046 = vadd.f32 %v1015, %v1044
        %v1047 = vmul.f32 %v472, %v1027
        %v1048 = vmul.f32 %v472, %v1028
        %v1051 = vrot.slane %v1047, 1
        %v1052 = vrot.slane %v1048, 1
        %v1053 = vsel %vm308, %v1051, %v1052
        %v1055 = vadd.f32 %v1026, %v1053
        %v1056 = vld [vmem:[%s402 + $0x18] sm:$0xfe]
        %v1057 = vld [vmem:[%s402 + $0x28] sm:$0x1]
        %v1058 = vmul.f32 %v484, %v1027
        %v1059 = vmul.f32 %v484, %v1056
        %v1060 = vmul.f32 %v484, %v1028
        %v1061 = vmul.f32 %v484, %v1057
        %v1066 = vrot.slane %v1058, 1
        %v1067 = vrot.slane %v1060, 1
        %v1068 = vsel %vm308, %v1066, %v1067
        %v1069 = vrot.slane %v1059, 1
        %v1070 = vrot.slane %v1061, 1
        %v1071 = vsel %vm308, %v1069, %v1070
        %1072 = vrot.lane.b32.xlu0 %v1068, 127
        %v1073 = vpop.permute.xlu0 %1072
        %1074 = vrot.lane.b32.xlu0 %v1071, 127
        %v1075 = vpop.permute.xlu0 %1074
        %v1076 = vsel %vm273, %v1073, %v1075
        %v1078 = vadd.f32 %v1037, %v1076
        %v1079 = vmul.f32 %v506, %v1027
        %v1080 = vmul.f32 %v506, %v1056
        %v1081 = vmul.f32 %v506, %v1028
        %v1082 = vmul.f32 %v506, %v1057
        %v1087 = vrot.slane %v1079, 1
        %v1088 = vrot.slane %v1081, 1
        %v1089 = vsel %vm308, %v1087, %v1088
        %v1090 = vrot.slane %v1080, 1
        %v1091 = vrot.slane %v1082, 1
        %v1092 = vsel %vm308, %v1090, %v1091
        %1093 = vrot.lane.b32.xlu0 %v1089, 127
        %v1094 = vpop.permute.xlu0 %1093
        %1095 = vrot.lane.b32.xlu0 %v1092, 127
        %v1096 = vpop.permute.xlu0 %1095
        %v1097 = vsel %vm273, %v1094, %v1096
        %v1099 = vadd.f32 %v1046, %v1097
        %v1100 = vmul.f32 %v528, %v1027
        %v1101 = vmul.f32 %v528, %v1056
        %v1102 = vmul.f32 %v528, %v1028
        %v1103 = vmul.f32 %v528, %v1057
        %v1108 = vrot.slane %v1100, 1
        %v1109 = vrot.slane %v1102, 1
        %v1110 = vsel %vm308, %v1108, %v1109
        %v1111 = vrot.slane %v1101, 1
        %v1112 = vrot.slane %v1103, 1
        %v1113 = vsel %vm308, %v1111, %v1112
        %1114 = vrot.lane.b32.xlu0 %v1110, 127
        %v1115 = vpop.permute.xlu0 %1114
        %1116 = vrot.lane.b32.xlu0 %v1113, 127
        %v1117 = vpop.permute.xlu0 %1116
        %v1118 = vsel %vm273, %v1115, %v1117
        %v1120 = vadd.f32 %v1055, %v1118
        %v1121 = vld [vmem:[%s550 + $0x10] sm:$0xff]
        %v1122 = vmul.f32 %v552, %v1121
        %v1123 = vadd.f32 %v1078, %v1122
        %v1124 = vmul.f32 %v555, %v1121
        %v1125 = vadd.f32 %v1099, %v1124
        %v1126 = vmul.f32 %v558, %v1121
        %v1127 = vadd.f32 %v1120, %v1126
        %v1128 = vld [vmem:[%s550 + $0x18] sm:$0xff]
        %v1129 = vmul.f32 %v562, %v1121
        %v1130 = vmul.f32 %v562, %v1128
        %1133 = vrot.lane.b32.xlu0 %v1129, 127
        %v1134 = vpop.permute.xlu0 %1133
        %1135 = vrot.lane.b32.xlu0 %v1130, 127
        %v1136 = vpop.permute.xlu0 %1135
        %v1137 = vsel %vm273, %v1134, %v1136
        %v1139 = vadd.f32 %v1123, %v1137
        %v1140 = vmul.f32 %v574, %v1121
        %v1141 = vmul.f32 %v574, %v1128
        %1144 = vrot.lane.b32.xlu0 %v1140, 127
        %v1145 = vpop.permute.xlu0 %1144
        %1146 = vrot.lane.b32.xlu0 %v1141, 127
        %v1147 = vpop.permute.xlu0 %1146
        %v1148 = vsel %vm273, %v1145, %v1147
        %v1150 = vadd.f32 %v1125, %v1148
        %v1151 = vmul.f32 %v586, %v1121
        %v1152 = vmul.f32 %v586, %v1128
        %1155 = vrot.lane.b32.xlu0 %v1151, 127
        %v1156 = vpop.permute.xlu0 %1155
        %1157 = vrot.lane.b32.xlu0 %v1152, 127
        %v1158 = vpop.permute.xlu0 %1157
        %v1159 = vsel %vm273, %v1156, %v1158
        %v1161 = vadd.f32 %v1127, %v1159
        %v1162 = vld [vmem:[%s550 + $0x10] sm:$0xfe]
        %v1163 = vld [vmem:[%s550 + $0x20] sm:$0x1]
        %v1164 = vmul.f32 %v600, %v1162
        %v1165 = vmul.f32 %v600, %v1163
        %v1168 = vrot.slane %v1164, 1
        %v1169 = vrot.slane %v1165, 1
        %v1170 = vsel %vm308, %v1168, %v1169
        %v1172 = vadd.f32 %v1139, %v1170
        %v1173 = vmul.f32 %v610, %v1162
        %v1174 = vmul.f32 %v610, %v1163
        %v1177 = vrot.slane %v1173, 1
        %v1178 = vrot.slane %v1174, 1
        %v1179 = vsel %vm308, %v1177, %v1178
        %v1181 = vadd.f32 %v1150, %v1179
        %v1182 = vmul.f32 %v620, %v1162
        %v1183 = vmul.f32 %v620, %v1163
        %v1186 = vrot.slane %v1182, 1
        %v1187 = vrot.slane %v1183, 1
        %v1188 = vsel %vm308, %v1186, %v1187
        %v1190 = vadd.f32 %v1161, %v1188
        %v1191 = vld [vmem:[%s550 + $0x18] sm:$0xfe]
        %v1192 = vld [vmem:[%s550 + $0x28] sm:$0x1]
        %v1193 = vmul.f32 %v632, %v1162
        %v1194 = vmul.f32 %v632, %v1191
        %v1195 = vmul.f32 %v632, %v1163
        %v1196 = vmul.f32 %v632, %v1192
        %v1201 = vrot.slane %v1193, 1
        %v1202 = vrot.slane %v1195, 1
        %v1203 = vsel %vm308, %v1201, %v1202
        %v1204 = vrot.slane %v1194, 1
        %v1205 = vrot.slane %v1196, 1
        %v1206 = vsel %vm308, %v1204, %v1205
        %1207 = vrot.lane.b32.xlu0 %v1203, 127
        %v1208 = vpop.permute.xlu0 %1207
        %1209 = vrot.lane.b32.xlu0 %v1206, 127
        %v1210 = vpop.permute.xlu0 %1209
        %v1211 = vsel %vm273, %v1208, %v1210
        %v1213 = vadd.f32 %v1172, %v1211
        %v1214 = vmul.f32 %v654, %v1162
        %v1215 = vmul.f32 %v654, %v1191
        %v1216 = vmul.f32 %v654, %v1163
        %v1217 = vmul.f32 %v654, %v1192
        %v1222 = vrot.slane %v1214, 1
        %v1223 = vrot.slane %v1216, 1
        %v1224 = vsel %vm308, %v1222, %v1223
        %v1225 = vrot.slane %v1215, 1
        %v1226 = vrot.slane %v1217, 1
        %v1227 = vsel %vm308, %v1225, %v1226
        %1228 = vrot.lane.b32.xlu0 %v1224, 127
        %v1229 = vpop.permute.xlu0 %1228
        %1230 = vrot.lane.b32.xlu0 %v1227, 127
        %v1231 = vpop.permute.xlu0 %1230
        %v1232 = vsel %vm273, %v1229, %v1231
        %v1234 = vadd.f32 %v1181, %v1232
        %v1235 = vmul.f32 %v676, %v1162
        %v1236 = vmul.f32 %v676, %v1191
        %v1237 = vmul.f32 %v676, %v1163
        %v1238 = vmul.f32 %v676, %v1192
        %v1243 = vrot.slane %v1235, 1
        %v1244 = vrot.slane %v1237, 1
        %v1245 = vsel %vm308, %v1243, %v1244
        %v1246 = vrot.slane %v1236, 1
        %v1247 = vrot.slane %v1238, 1
        %v1248 = vsel %vm308, %v1246, %v1247
        %1249 = vrot.lane.b32.xlu0 %v1245, 127
        %v1250 = vpop.permute.xlu0 %1249
        %1251 = vrot.lane.b32.xlu0 %v1248, 127
        %v1252 = vpop.permute.xlu0 %1251
        %v1253 = vsel %vm273, %v1250, %v1252
        %v1255 = vadd.f32 %v1190, %v1253
        %v1256 = vld [vmem:[%s698 + $0x10] sm:$0xff]
        %v1257 = vmul.f32 %v700, %v1256
        %v1258 = vadd.f32 %v1213, %v1257
        %v1259 = vmul.f32 %v703, %v1256
        %v1260 = vadd.f32 %v1234, %v1259
        %v1261 = vmul.f32 %v706, %v1256
        %v1262 = vadd.f32 %v1255, %v1261
        %v1263 = vld [vmem:[%s698 + $0x18] sm:$0xff]
        %v1264 = vmul.f32 %v710, %v1256
        %v1265 = vmul.f32 %v710, %v1263
        %1268 = vrot.lane.b32.xlu0 %v1264, 127
        %v1269 = vpop.permute.xlu0 %1268
        %1270 = vrot.lane.b32.xlu0 %v1265, 127
        %v1271 = vpop.permute.xlu0 %1270
        %v1272 = vsel %vm273, %v1269, %v1271
        %v1274 = vadd.f32 %v1258, %v1272
        %v1275 = vmul.f32 %v722, %v1256
        %v1276 = vmul.f32 %v722, %v1263
        %1279 = vrot.lane.b32.xlu0 %v1275, 127
        %v1280 = vpop.permute.xlu0 %1279
        %1281 = vrot.lane.b32.xlu0 %v1276, 127
        %v1282 = vpop.permute.xlu0 %1281
        %v1283 = vsel %vm273, %v1280, %v1282
        %v1285 = vadd.f32 %v1260, %v1283
        %v1286 = vmul.f32 %v734, %v1256
        %v1287 = vmul.f32 %v734, %v1263
        %1290 = vrot.lane.b32.xlu0 %v1286, 127
        %v1291 = vpop.permute.xlu0 %1290
        %1292 = vrot.lane.b32.xlu0 %v1287, 127
        %v1293 = vpop.permute.xlu0 %1292
        %v1294 = vsel %vm273, %v1291, %v1293
        %v1296 = vadd.f32 %v1262, %v1294
        %v1297 = vld [vmem:[%s698 + $0x10] sm:$0xfe]
        %v1298 = vld [vmem:[%s698 + $0x20] sm:$0x1]
        %v1299 = vmul.f32 %v748, %v1297
        %v1300 = vmul.f32 %v748, %v1298
        %v1303 = vrot.slane %v1299, 1
        %v1304 = vrot.slane %v1300, 1
        %v1305 = vsel %vm308, %v1303, %v1304
        %v1307 = vadd.f32 %v1274, %v1305
        %v1308 = vmul.f32 %v758, %v1297
        %v1309 = vmul.f32 %v758, %v1298
        %v1312 = vrot.slane %v1308, 1
        %v1313 = vrot.slane %v1309, 1
        %v1314 = vsel %vm308, %v1312, %v1313
        %v1316 = vadd.f32 %v1285, %v1314
        %v1317 = vmul.f32 %v768, %v1297
        %v1318 = vmul.f32 %v768, %v1298
        %v1321 = vrot.slane %v1317, 1
        %v1322 = vrot.slane %v1318, 1
        %v1323 = vsel %vm308, %v1321, %v1322
        %v1325 = vadd.f32 %v1296, %v1323
        %v1326 = vld [vmem:[%s698 + $0x18] sm:$0xfe]
        %v1327 = vld [vmem:[%s698 + $0x28] sm:$0x1]
        %v1328 = vmul.f32 %v780, %v1297
        %v1329 = vmul.f32 %v780, %v1326
        %v1330 = vmul.f32 %v780, %v1298
        %v1331 = vmul.f32 %v780, %v1327
        %v1336 = vrot.slane %v1328, 1
        %v1337 = vrot.slane %v1330, 1
        %v1338 = vsel %vm308, %v1336, %v1337
        %v1339 = vrot.slane %v1329, 1
        %v1340 = vrot.slane %v1331, 1
        %v1341 = vsel %vm308, %v1339, %v1340
        %1342 = vrot.lane.b32.xlu0 %v1338, 127
        %v1343 = vpop.permute.xlu0 %1342
        %1344 = vrot.lane.b32.xlu0 %v1341, 127
        %v1345 = vpop.permute.xlu0 %1344
        %v1346 = vsel %vm273, %v1343, %v1345
        %v1348 = vadd.f32 %v1307, %v1346
        %v1349 = vmul.f32 %v802, %v1297
        %v1350 = vmul.f32 %v802, %v1326
        %v1351 = vmul.f32 %v802, %v1298
        %v1352 = vmul.f32 %v802, %v1327
        %v1357 = vrot.slane %v1349, 1
        %v1358 = vrot.slane %v1351, 1
        %v1359 = vsel %vm308, %v1357, %v1358
        %v1360 = vrot.slane %v1350, 1
        %v1361 = vrot.slane %v1352, 1
        %v1362 = vsel %vm308, %v1360, %v1361
        %1363 = vrot.lane.b32.xlu0 %v1359, 127
        %v1364 = vpop.permute.xlu0 %1363
        %1365 = vrot.lane.b32.xlu0 %v1362, 127
        %v1366 = vpop.permute.xlu0 %1365
        %v1367 = vsel %vm273, %v1364, %v1366
        %v1369 = vadd.f32 %v1316, %v1367
        %v1370 = vmul.f32 %v824, %v1297
        %v1371 = vmul.f32 %v824, %v1326
        %v1372 = vmul.f32 %v824, %v1298
        %v1373 = vmul.f32 %v824, %v1327
        %v1378 = vrot.slane %v1370, 1
        %v1379 = vrot.slane %v1372, 1
        %v1380 = vsel %vm308, %v1378, %v1379
        %v1381 = vrot.slane %v1371, 1
        %v1382 = vrot.slane %v1373, 1
        %v1383 = vsel %vm308, %v1381, %v1382
        %1384 = vrot.lane.b32.xlu0 %v1380, 127
        %v1385 = vpop.permute.xlu0 %1384
        %1386 = vrot.lane.b32.xlu0 %v1383, 127
        %v1387 = vpop.permute.xlu0 %1386
        %v1388 = vsel %vm273, %v1385, %v1387
        %v1390 = vadd.f32 %v1325, %v1388
        %1391 = vst [vmem:[%s190 + $0x8] sm:$0xff] %v1348
        %1392 = vst [vmem:[%s847 + $0x8] sm:$0xff] %v1369
        %1393 = vst [vmem:[%s849 + $0x8] sm:$0xff] %v1390
        %v1394 = vld [vmem:[%s195 + $0x20] sm:$0xff]
        %v1395 = vmul.f32 %v254, %v1394
        %v1396 = vadd.f32 %v248, %v1395
        %v1397 = vmul.f32 %v257, %v1394
        %v1398 = vadd.f32 %v250, %v1397
        %v1399 = vmul.f32 %v260, %v1394
        %v1400 = vadd.f32 %v252, %v1399
        %v1401 = vld [vmem:[%s195 + $0x28] sm:$0xff]
        %v1402 = vmul.f32 %v264, %v1394
        %v1403 = vmul.f32 %v264, %v1401
        %1406 = vrot.lane.b32.xlu0 %v1402, 127
        %v1407 = vpop.permute.xlu0 %1406
        %1408 = vrot.lane.b32.xlu0 %v1403, 127
        %v1409 = vpop.permute.xlu0 %1408
        %v1410 = vsel %vm273, %v1407, %v1409
        %v1412 = vadd.f32 %v1396, %v1410
        %v1413 = vmul.f32 %v277, %v1394
        %v1414 = vmul.f32 %v277, %v1401
        %1417 = vrot.lane.b32.xlu0 %v1413, 127
        %v1418 = vpop.permute.xlu0 %1417
        %1419 = vrot.lane.b32.xlu0 %v1414, 127
        %v1420 = vpop.permute.xlu0 %1419
        %v1421 = vsel %vm273, %v1418, %v1420
        %v1423 = vadd.f32 %v1398, %v1421
        %v1424 = vmul.f32 %v289, %v1394
        %v1425 = vmul.f32 %v289, %v1401
        %1428 = vrot.lane.b32.xlu0 %v1424, 127
        %v1429 = vpop.permute.xlu0 %1428
        %1430 = vrot.lane.b32.xlu0 %v1425, 127
        %v1431 = vpop.permute.xlu0 %1430
        %v1432 = vsel %vm273, %v1429, %v1431
        %v1434 = vadd.f32 %v1400, %v1432
        %v1435 = vld [vmem:[%s195 + $0x20] sm:$0xfe]
        %v1436 = vld [vmem:[%s195 + $0x30] sm:$0x1]
        %v1437 = vmul.f32 %v303, %v1435
        %v1438 = vmul.f32 %v303, %v1436
        %v1441 = vrot.slane %v1437, 1
        %v1442 = vrot.slane %v1438, 1
        %v1443 = vsel %vm308, %v1441, %v1442
        %v1445 = vadd.f32 %v1412, %v1443
        %v1446 = vmul.f32 %v314, %v1435
        %v1447 = vmul.f32 %v314, %v1436
        %v1450 = vrot.slane %v1446, 1
        %v1451 = vrot.slane %v1447, 1
        %v1452 = vsel %vm308, %v1450, %v1451
        %v1454 = vadd.f32 %v1423, %v1452
        %v1455 = vmul.f32 %v324, %v1435
        %v1456 = vmul.f32 %v324, %v1436
        %v1459 = vrot.slane %v1455, 1
        %v1460 = vrot.slane %v1456, 1
        %v1461 = vsel %vm308, %v1459, %v1460
        %v1463 = vadd.f32 %v1434, %v1461
        %v1464 = vld [vmem:[%s195 + $0x28] sm:$0xfe]
        %v1465 = vld [vmem:[%s195 + $0x38] sm:$0x1]
        %v1466 = vmul.f32 %v336, %v1435
        %v1467 = vmul.f32 %v336, %v1464
        %v1468 = vmul.f32 %v336, %v1436
        %v1469 = vmul.f32 %v336, %v1465
        %v1474 = vrot.slane %v1466, 1
        %v1475 = vrot.slane %v1468, 1
        %v1476 = vsel %vm308, %v1474, %v1475
        %v1477 = vrot.slane %v1467, 1
        %v1478 = vrot.slane %v1469, 1
        %v1479 = vsel %vm308, %v1477, %v1478
        %1480 = vrot.lane.b32.xlu0 %v1476, 127
        %v1481 = vpop.permute.xlu0 %1480
        %1482 = vrot.lane.b32.xlu0 %v1479, 127
        %v1483 = vpop.permute.xlu0 %1482
        %v1484 = vsel %vm273, %v1481, %v1483
        %v1486 = vadd.f32 %v1445, %v1484
        %v1487 = vmul.f32 %v358, %v1435
        %v1488 = vmul.f32 %v358, %v1464
        %v1489 = vmul.f32 %v358, %v1436
        %v1490 = vmul.f32 %v358, %v1465
        %v1495 = vrot.slane %v1487, 1
        %v1496 = vrot.slane %v1489, 1
        %v1497 = vsel %vm308, %v1495, %v1496
        %v1498 = vrot.slane %v1488, 1
        %v1499 = vrot.slane %v1490, 1
        %v1500 = vsel %vm308, %v1498, %v1499
        %1501 = vrot.lane.b32.xlu0 %v1497, 127
        %v1502 = vpop.permute.xlu0 %1501
        %1503 = vrot.lane.b32.xlu0 %v1500, 127
        %v1504 = vpop.permute.xlu0 %1503
        %v1505 = vsel %vm273, %v1502, %v1504
        %v1507 = vadd.f32 %v1454, %v1505
        %v1508 = vmul.f32 %v380, %v1435
        %v1509 = vmul.f32 %v380, %v1464
        %v1510 = vmul.f32 %v380, %v1436
        %v1511 = vmul.f32 %v380, %v1465
        %v1516 = vrot.slane %v1508, 1
        %v1517 = vrot.slane %v1510, 1
        %v1518 = vsel %vm308, %v1516, %v1517
        %v1519 = vrot.slane %v1509, 1
        %v1520 = vrot.slane %v1511, 1
        %v1521 = vsel %vm308, %v1519, %v1520
        %1522 = vrot.lane.b32.xlu0 %v1518, 127
        %v1523 = vpop.permute.xlu0 %1522
        %1524 = vrot.lane.b32.xlu0 %v1521, 127
        %v1525 = vpop.permute.xlu0 %1524
        %v1526 = vsel %vm273, %v1523, %v1525
        %v1528 = vadd.f32 %v1463, %v1526
        %v1529 = vld [vmem:[%s402 + $0x20] sm:$0xff]
        %v1530 = vmul.f32 %v404, %v1529
        %v1531 = vadd.f32 %v1486, %v1530
        %v1532 = vmul.f32 %v407, %v1529
        %v1533 = vadd.f32 %v1507, %v1532
        %v1534 = vmul.f32 %v410, %v1529
        %v1535 = vadd.f32 %v1528, %v1534
        %v1536 = vld [vmem:[%s402 + $0x28] sm:$0xff]
        %v1537 = vmul.f32 %v414, %v1529
        %v1538 = vmul.f32 %v414, %v1536
        %1541 = vrot.lane.b32.xlu0 %v1537, 127
        %v1542 = vpop.permute.xlu0 %1541
        %1543 = vrot.lane.b32.xlu0 %v1538, 127
        %v1544 = vpop.permute.xlu0 %1543
        %v1545 = vsel %vm273, %v1542, %v1544
        %v1547 = vadd.f32 %v1531, %v1545
        %v1548 = vmul.f32 %v426, %v1529
        %v1549 = vmul.f32 %v426, %v1536
        %1552 = vrot.lane.b32.xlu0 %v1548, 127
        %v1553 = vpop.permute.xlu0 %1552
        %1554 = vrot.lane.b32.xlu0 %v1549, 127
        %v1555 = vpop.permute.xlu0 %1554
        %v1556 = vsel %vm273, %v1553, %v1555
        %v1558 = vadd.f32 %v1533, %v1556
        %v1559 = vmul.f32 %v438, %v1529
        %v1560 = vmul.f32 %v438, %v1536
        %1563 = vrot.lane.b32.xlu0 %v1559, 127
        %v1564 = vpop.permute.xlu0 %1563
        %1565 = vrot.lane.b32.xlu0 %v1560, 127
        %v1566 = vpop.permute.xlu0 %1565
        %v1567 = vsel %vm273, %v1564, %v1566
        %v1569 = vadd.f32 %v1535, %v1567
        %v1570 = vld [vmem:[%s402 + $0x20] sm:$0xfe]
        %v1571 = vld [vmem:[%s402 + $0x30] sm:$0x1]
        %v1572 = vmul.f32 %v452, %v1570
        %v1573 = vmul.f32 %v452, %v1571
        %v1576 = vrot.slane %v1572, 1
        %v1577 = vrot.slane %v1573, 1
        %v1578 = vsel %vm308, %v1576, %v1577
        %v1580 = vadd.f32 %v1547, %v1578
        %v1581 = vmul.f32 %v462, %v1570
        %v1582 = vmul.f32 %v462, %v1571
        %v1585 = vrot.slane %v1581, 1
        %v1586 = vrot.slane %v1582, 1
        %v1587 = vsel %vm308, %v1585, %v1586
        %v1589 = vadd.f32 %v1558, %v1587
        %v1590 = vmul.f32 %v472, %v1570
        %v1591 = vmul.f32 %v472, %v1571
        %v1594 = vrot.slane %v1590, 1
        %v1595 = vrot.slane %v1591, 1
        %v1596 = vsel %vm308, %v1594, %v1595
        %v1598 = vadd.f32 %v1569, %v1596
        %v1599 = vld [vmem:[%s402 + $0x28] sm:$0xfe]
        %v1600 = vld [vmem:[%s402 + $0x38] sm:$0x1]
        %v1601 = vmul.f32 %v484, %v1570
        %v1602 = vmul.f32 %v484, %v1599
        %v1603 = vmul.f32 %v484, %v1571
        %v1604 = vmul.f32 %v484, %v1600
        %v1609 = vrot.slane %v1601, 1
        %v1610 = vrot.slane %v1603, 1
        %v1611 = vsel %vm308, %v1609, %v1610
        %v1612 = vrot.slane %v1602, 1
        %v1613 = vrot.slane %v1604, 1
        %v1614 = vsel %vm308, %v1612, %v1613
        %1615 = vrot.lane.b32.xlu0 %v1611, 127
        %v1616 = vpop.permute.xlu0 %1615
        %1617 = vrot.lane.b32.xlu0 %v1614, 127
        %v1618 = vpop.permute.xlu0 %1617
        %v1619 = vsel %vm273, %v1616, %v1618
        %v1621 = vadd.f32 %v1580, %v1619
        %v1622 = vmul.f32 %v506, %v1570
        %v1623 = vmul.f32 %v506, %v1599
        %v1624 = vmul.f32 %v506, %v1571
        %v1625 = vmul.f32 %v506, %v1600
        %v1630 = vrot.slane %v1622, 1
        %v1631 = vrot.slane %v1624, 1
        %v1632 = vsel %vm308, %v1630, %v1631
        %v1633 = vrot.slane %v1623, 1
        %v1634 = vrot.slane %v1625, 1
        %v1635 = vsel %vm308, %v1633, %v1634
        %1636 = vrot.lane.b32.xlu0 %v1632, 127
        %v1637 = vpop.permute.xlu0 %1636
        %1638 = vrot.lane.b32.xlu0 %v1635, 127
        %v1639 = vpop.permute.xlu0 %1638
        %v1640 = vsel %vm273, %v1637, %v1639
        %v1642 = vadd.f32 %v1589, %v1640
        %v1643 = vmul.f32 %v528, %v1570
        %v1644 = vmul.f32 %v528, %v1599
        %v1645 = vmul.f32 %v528, %v1571
        %v1646 = vmul.f32 %v528, %v1600
        %v1651 = vrot.slane %v1643, 1
        %v1652 = vrot.slane %v1645, 1
        %v1653 = vsel %vm308, %v1651, %v1652
        %v1654 = vrot.slane %v1644, 1
        %v1655 = vrot.slane %v1646, 1
        %v1656 = vsel %vm308, %v1654, %v1655
        %1657 = vrot.lane.b32.xlu0 %v1653, 127
        %v1658 = vpop.permute.xlu0 %1657
        %1659 = vrot.lane.b32.xlu0 %v1656, 127
        %v1660 = vpop.permute.xlu0 %1659
        %v1661 = vsel %vm273, %v1658, %v1660
        %v1663 = vadd.f32 %v1598, %v1661
        %v1664 = vld [vmem:[%s550 + $0x20] sm:$0xff]
        %v1665 = vmul.f32 %v552, %v1664
        %v1666 = vadd.f32 %v1621, %v1665
        %v1667 = vmul.f32 %v555, %v1664
        %v1668 = vadd.f32 %v1642, %v1667
        %v1669 = vmul.f32 %v558, %v1664
        %v1670 = vadd.f32 %v1663, %v1669
        %v1671 = vld [vmem:[%s550 + $0x28] sm:$0xff]
        %v1672 = vmul.f32 %v562, %v1664
        %v1673 = vmul.f32 %v562, %v1671
        %1676 = vrot.lane.b32.xlu0 %v1672, 127
        %v1677 = vpop.permute.xlu0 %1676
        %1678 = vrot.lane.b32.xlu0 %v1673, 127
        %v1679 = vpop.permute.xlu0 %1678
        %v1680 = vsel %vm273, %v1677, %v1679
        %v1682 = vadd.f32 %v1666, %v1680
        %v1683 = vmul.f32 %v574, %v1664
        %v1684 = vmul.f32 %v574, %v1671
        %1687 = vrot.lane.b32.xlu0 %v1683, 127
        %v1688 = vpop.permute.xlu0 %1687
        %1689 = vrot.lane.b32.xlu0 %v1684, 127
        %v1690 = vpop.permute.xlu0 %1689
        %v1691 = vsel %vm273, %v1688, %v1690
        %v1693 = vadd.f32 %v1668, %v1691
        %v1694 = vmul.f32 %v586, %v1664
        %v1695 = vmul.f32 %v586, %v1671
        %1698 = vrot.lane.b32.xlu0 %v1694, 127
        %v1699 = vpop.permute.xlu0 %1698
        %1700 = vrot.lane.b32.xlu0 %v1695, 127
        %v1701 = vpop.permute.xlu0 %1700
        %v1702 = vsel %vm273, %v1699, %v1701
        %v1704 = vadd.f32 %v1670, %v1702
        %v1705 = vld [vmem:[%s550 + $0x20] sm:$0xfe]
        %v1706 = vld [vmem:[%s550 + $0x30] sm:$0x1]
        %v1707 = vmul.f32 %v600, %v1705
        %v1708 = vmul.f32 %v600, %v1706
        %v1711 = vrot.slane %v1707, 1
        %v1712 = vrot.slane %v1708, 1
        %v1713 = vsel %vm308, %v1711, %v1712
        %v1715 = vadd.f32 %v1682, %v1713
        %v1716 = vmul.f32 %v610, %v1705
        %v1717 = vmul.f32 %v610, %v1706
        %v1720 = vrot.slane %v1716, 1
        %v1721 = vrot.slane %v1717, 1
        %v1722 = vsel %vm308, %v1720, %v1721
        %v1724 = vadd.f32 %v1693, %v1722
        %v1725 = vmul.f32 %v620, %v1705
        %v1726 = vmul.f32 %v620, %v1706
        %v1729 = vrot.slane %v1725, 1
        %v1730 = vrot.slane %v1726, 1
        %v1731 = vsel %vm308, %v1729, %v1730
        %v1733 = vadd.f32 %v1704, %v1731
        %v1734 = vld [vmem:[%s550 + $0x28] sm:$0xfe]
        %v1735 = vld [vmem:[%s550 + $0x38] sm:$0x1]
        %v1736 = vmul.f32 %v632, %v1705
        %v1737 = vmul.f32 %v632, %v1734
        %v1738 = vmul.f32 %v632, %v1706
        %v1739 = vmul.f32 %v632, %v1735
        %v1744 = vrot.slane %v1736, 1
        %v1745 = vrot.slane %v1738, 1
        %v1746 = vsel %vm308, %v1744, %v1745
        %v1747 = vrot.slane %v1737, 1
        %v1748 = vrot.slane %v1739, 1
        %v1749 = vsel %vm308, %v1747, %v1748
        %1750 = vrot.lane.b32.xlu0 %v1746, 127
        %v1751 = vpop.permute.xlu0 %1750
        %1752 = vrot.lane.b32.xlu0 %v1749, 127
        %v1753 = vpop.permute.xlu0 %1752
        %v1754 = vsel %vm273, %v1751, %v1753
        %v1756 = vadd.f32 %v1715, %v1754
        %v1757 = vmul.f32 %v654, %v1705
        %v1758 = vmul.f32 %v654, %v1734
        %v1759 = vmul.f32 %v654, %v1706
        %v1760 = vmul.f32 %v654, %v1735
        %v1765 = vrot.slane %v1757, 1
        %v1766 = vrot.slane %v1759, 1
        %v1767 = vsel %vm308, %v1765, %v1766
        %v1768 = vrot.slane %v1758, 1
        %v1769 = vrot.slane %v1760, 1
        %v1770 = vsel %vm308, %v1768, %v1769
        %1771 = vrot.lane.b32.xlu0 %v1767, 127
        %v1772 = vpop.permute.xlu0 %1771
        %1773 = vrot.lane.b32.xlu0 %v1770, 127
        %v1774 = vpop.permute.xlu0 %1773
        %v1775 = vsel %vm273, %v1772, %v1774
        %v1777 = vadd.f32 %v1724, %v1775
        %v1778 = vmul.f32 %v676, %v1705
        %v1779 = vmul.f32 %v676, %v1734
        %v1780 = vmul.f32 %v676, %v1706
        %v1781 = vmul.f32 %v676, %v1735
        %v1786 = vrot.slane %v1778, 1
        %v1787 = vrot.slane %v1780, 1
        %v1788 = vsel %vm308, %v1786, %v1787
        %v1789 = vrot.slane %v1779, 1
        %v1790 = vrot.slane %v1781, 1
        %v1791 = vsel %vm308, %v1789, %v1790
        %1792 = vrot.lane.b32.xlu0 %v1788, 127
        %v1793 = vpop.permute.xlu0 %1792
        %1794 = vrot.lane.b32.xlu0 %v1791, 127
        %v1795 = vpop.permute.xlu0 %1794
        %v1796 = vsel %vm273, %v1793, %v1795
        %v1798 = vadd.f32 %v1733, %v1796
        %v1799 = vld [vmem:[%s698 + $0x20] sm:$0xff]
        %v1800 = vmul.f32 %v700, %v1799
        %v1801 = vadd.f32 %v1756, %v1800
        %v1802 = vmul.f32 %v703, %v1799
        %v1803 = vadd.f32 %v1777, %v1802
        %v1804 = vmul.f32 %v706, %v1799
        %v1805 = vadd.f32 %v1798, %v1804
        %v1806 = vld [vmem:[%s698 + $0x28] sm:$0xff]
        %v1807 = vmul.f32 %v710, %v1799
        %v1808 = vmul.f32 %v710, %v1806
        %1811 = vrot.lane.b32.xlu0 %v1807, 127
        %v1812 = vpop.permute.xlu0 %1811
        %1813 = vrot.lane.b32.xlu0 %v1808, 127
        %v1814 = vpop.permute.xlu0 %1813
        %v1815 = vsel %vm273, %v1812, %v1814
        %v1817 = vadd.f32 %v1801, %v1815
        %v1818 = vmul.f32 %v722, %v1799
        %v1819 = vmul.f32 %v722, %v1806
        %1822 = vrot.lane.b32.xlu0 %v1818, 127
        %v1823 = vpop.permute.xlu0 %1822
        %1824 = vrot.lane.b32.xlu0 %v1819, 127
        %v1825 = vpop.permute.xlu0 %1824
        %v1826 = vsel %vm273, %v1823, %v1825
        %v1828 = vadd.f32 %v1803, %v1826
        %v1829 = vmul.f32 %v734, %v1799
        %v1830 = vmul.f32 %v734, %v1806
        %1833 = vrot.lane.b32.xlu0 %v1829, 127
        %v1834 = vpop.permute.xlu0 %1833
        %1835 = vrot.lane.b32.xlu0 %v1830, 127
        %v1836 = vpop.permute.xlu0 %1835
        %v1837 = vsel %vm273, %v1834, %v1836
        %v1839 = vadd.f32 %v1805, %v1837
        %v1840 = vld [vmem:[%s698 + $0x20] sm:$0xfe]
        %v1841 = vld [vmem:[%s698 + $0x30] sm:$0x1]
        %v1842 = vmul.f32 %v748, %v1840
        %v1843 = vmul.f32 %v748, %v1841
        %v1846 = vrot.slane %v1842, 1
        %v1847 = vrot.slane %v1843, 1
        %v1848 = vsel %vm308, %v1846, %v1847
        %v1850 = vadd.f32 %v1817, %v1848
        %v1851 = vmul.f32 %v758, %v1840
        %v1852 = vmul.f32 %v758, %v1841
        %v1855 = vrot.slane %v1851, 1
        %v1856 = vrot.slane %v1852, 1
        %v1857 = vsel %vm308, %v1855, %v1856
        %v1859 = vadd.f32 %v1828, %v1857
        %v1860 = vmul.f32 %v768, %v1840
        %v1861 = vmul.f32 %v768, %v1841
        %v1864 = vrot.slane %v1860, 1
        %v1865 = vrot.slane %v1861, 1
        %v1866 = vsel %vm308, %v1864, %v1865
        %v1868 = vadd.f32 %v1839, %v1866
        %v1869 = vld [vmem:[%s698 + $0x28] sm:$0xfe]
        %v1870 = vld [vmem:[%s698 + $0x38] sm:$0x1]
        %v1871 = vmul.f32 %v780, %v1840
        %v1872 = vmul.f32 %v780, %v1869
        %v1873 = vmul.f32 %v780, %v1841
        %v1874 = vmul.f32 %v780, %v1870
        %v1879 = vrot.slane %v1871, 1
        %v1880 = vrot.slane %v1873, 1
        %v1881 = vsel %vm308, %v1879, %v1880
        %v1882 = vrot.slane %v1872, 1
        %v1883 = vrot.slane %v1874, 1
        %v1884 = vsel %vm308, %v1882, %v1883
        %1885 = vrot.lane.b32.xlu0 %v1881, 127
        %v1886 = vpop.permute.xlu0 %1885
        %1887 = vrot.lane.b32.xlu0 %v1884, 127
        %v1888 = vpop.permute.xlu0 %1887
        %v1889 = vsel %vm273, %v1886, %v1888
        %v1891 = vadd.f32 %v1850, %v1889
        %v1892 = vmul.f32 %v802, %v1840
        %v1893 = vmul.f32 %v802, %v1869
        %v1894 = vmul.f32 %v802, %v1841
        %v1895 = vmul.f32 %v802, %v1870
        %v1900 = vrot.slane %v1892, 1
        %v1901 = vrot.slane %v1894, 1
        %v1902 = vsel %vm308, %v1900, %v1901
        %v1903 = vrot.slane %v1893, 1
        %v1904 = vrot.slane %v1895, 1
        %v1905 = vsel %vm308, %v1903, %v1904
        %1906 = vrot.lane.b32.xlu0 %v1902, 127
        %v1907 = vpop.permute.xlu0 %1906
        %1908 = vrot.lane.b32.xlu0 %v1905, 127
        %v1909 = vpop.permute.xlu0 %1908
        %v1910 = vsel %vm273, %v1907, %v1909
        %v1912 = vadd.f32 %v1859, %v1910
        %v1913 = vmul.f32 %v824, %v1840
        %v1914 = vmul.f32 %v824, %v1869
        %v1915 = vmul.f32 %v824, %v1841
        %v1916 = vmul.f32 %v824, %v1870
        %v1921 = vrot.slane %v1913, 1
        %v1922 = vrot.slane %v1915, 1
        %v1923 = vsel %vm308, %v1921, %v1922
        %v1924 = vrot.slane %v1914, 1
        %v1925 = vrot.slane %v1916, 1
        %v1926 = vsel %vm308, %v1924, %v1925
        %1927 = vrot.lane.b32.xlu0 %v1923, 127
        %v1928 = vpop.permute.xlu0 %1927
        %1929 = vrot.lane.b32.xlu0 %v1926, 127
        %v1930 = vpop.permute.xlu0 %1929
        %v1931 = vsel %vm273, %v1928, %v1930
        %v1933 = vadd.f32 %v1868, %v1931
        %1934 = vst [vmem:[%s190 + $0x10] sm:$0xff] %v1891
        %1935 = vst [vmem:[%s847 + $0x10] sm:$0xff] %v1912
        %1936 = vst [vmem:[%s849 + $0x10] sm:$0xff] %v1933
        %v1937 = vld [vmem:[%s195 + $0x30] sm:$0xff]
        %v1938 = vmul.f32 %v254, %v1937
        %v1939 = vadd.f32 %v248, %v1938
        %v1940 = vmul.f32 %v257, %v1937
        %v1941 = vadd.f32 %v250, %v1940
        %v1942 = vmul.f32 %v260, %v1937
        %v1943 = vadd.f32 %v252, %v1942
        %v1944 = vld [vmem:[%s195 + $0x38] sm:$0xff]
        %v1945 = vmul.f32 %v264, %v1937
        %v1946 = vmul.f32 %v264, %v1944
        %1949 = vrot.lane.b32.xlu0 %v1945, 127
        %v1950 = vpop.permute.xlu0 %1949
        %1951 = vrot.lane.b32.xlu0 %v1946, 127
        %v1952 = vpop.permute.xlu0 %1951
        %v1953 = vsel %vm273, %v1950, %v1952
        %v1955 = vadd.f32 %v1939, %v1953
        %v1956 = vmul.f32 %v277, %v1937
        %v1957 = vmul.f32 %v277, %v1944
        %1960 = vrot.lane.b32.xlu0 %v1956, 127
        %v1961 = vpop.permute.xlu0 %1960
        %1962 = vrot.lane.b32.xlu0 %v1957, 127
        %v1963 = vpop.permute.xlu0 %1962
        %v1964 = vsel %vm273, %v1961, %v1963
        %v1966 = vadd.f32 %v1941, %v1964
        %v1967 = vmul.f32 %v289, %v1937
        %v1968 = vmul.f32 %v289, %v1944
        %1971 = vrot.lane.b32.xlu0 %v1967, 127
        %v1972 = vpop.permute.xlu0 %1971
        %1973 = vrot.lane.b32.xlu0 %v1968, 127
        %v1974 = vpop.permute.xlu0 %1973
        %v1975 = vsel %vm273, %v1972, %v1974
        %v1977 = vadd.f32 %v1943, %v1975
        %v1978 = vld [vmem:[%s195 + $0x30] sm:$0xfe]
        %v1979 = vld [vmem:[%s195 + $0x40] sm:$0x1]
        %v1980 = vmul.f32 %v303, %v1978
        %v1981 = vmul.f32 %v303, %v1979
        %v1984 = vrot.slane %v1980, 1
        %v1985 = vrot.slane %v1981, 1
        %v1986 = vsel %vm308, %v1984, %v1985
        %v1988 = vadd.f32 %v1955, %v1986
        %v1989 = vmul.f32 %v314, %v1978
        %v1990 = vmul.f32 %v314, %v1979
        %v1993 = vrot.slane %v1989, 1
        %v1994 = vrot.slane %v1990, 1
        %v1995 = vsel %vm308, %v1993, %v1994
        %v1997 = vadd.f32 %v1966, %v1995
        %v1998 = vmul.f32 %v324, %v1978
        %v1999 = vmul.f32 %v324, %v1979
        %v2002 = vrot.slane %v1998, 1
        %v2003 = vrot.slane %v1999, 1
        %v2004 = vsel %vm308, %v2002, %v2003
        %v2006 = vadd.f32 %v1977, %v2004
        %v2007 = vld [vmem:[%s195 + $0x38] sm:$0xfe]
        %v2008 = vld [vmem:[%s195 + $0x48] sm:$0x1]
        %v2009 = vmul.f32 %v336, %v1978
        %v2010 = vmul.f32 %v336, %v2007
        %v2011 = vmul.f32 %v336, %v1979
        %v2012 = vmul.f32 %v336, %v2008
        %v2017 = vrot.slane %v2009, 1
        %v2018 = vrot.slane %v2011, 1
        %v2019 = vsel %vm308, %v2017, %v2018
        %v2020 = vrot.slane %v2010, 1
        %v2021 = vrot.slane %v2012, 1
        %v2022 = vsel %vm308, %v2020, %v2021
        %2023 = vrot.lane.b32.xlu0 %v2019, 127
        %v2024 = vpop.permute.xlu0 %2023
        %2025 = vrot.lane.b32.xlu0 %v2022, 127
        %v2026 = vpop.permute.xlu0 %2025
        %v2027 = vsel %vm273, %v2024, %v2026
        %v2029 = vadd.f32 %v1988, %v2027
        %v2030 = vmul.f32 %v358, %v1978
        %v2031 = vmul.f32 %v358, %v2007
        %v2032 = vmul.f32 %v358, %v1979
        %v2033 = vmul.f32 %v358, %v2008
        %v2038 = vrot.slane %v2030, 1
        %v2039 = vrot.slane %v2032, 1
        %v2040 = vsel %vm308, %v2038, %v2039
        %v2041 = vrot.slane %v2031, 1
        %v2042 = vrot.slane %v2033, 1
        %v2043 = vsel %vm308, %v2041, %v2042
        %2044 = vrot.lane.b32.xlu0 %v2040, 127
        %v2045 = vpop.permute.xlu0 %2044
        %2046 = vrot.lane.b32.xlu0 %v2043, 127
        %v2047 = vpop.permute.xlu0 %2046
        %v2048 = vsel %vm273, %v2045, %v2047
        %v2050 = vadd.f32 %v1997, %v2048
        %v2051 = vmul.f32 %v380, %v1978
        %v2052 = vmul.f32 %v380, %v2007
        %v2053 = vmul.f32 %v380, %v1979
        %v2054 = vmul.f32 %v380, %v2008
        %v2059 = vrot.slane %v2051, 1
        %v2060 = vrot.slane %v2053, 1
        %v2061 = vsel %vm308, %v2059, %v2060
        %v2062 = vrot.slane %v2052, 1
        %v2063 = vrot.slane %v2054, 1
        %v2064 = vsel %vm308, %v2062, %v2063
        %2065 = vrot.lane.b32.xlu0 %v2061, 127
        %v2066 = vpop.permute.xlu0 %2065
        %2067 = vrot.lane.b32.xlu0 %v2064, 127
        %v2068 = vpop.permute.xlu0 %2067
        %v2069 = vsel %vm273, %v2066, %v2068
        %v2071 = vadd.f32 %v2006, %v2069
        %v2072 = vld [vmem:[%s402 + $0x30] sm:$0xff]
        %v2073 = vmul.f32 %v404, %v2072
        %v2074 = vadd.f32 %v2029, %v2073
        %v2075 = vmul.f32 %v407, %v2072
        %v2076 = vadd.f32 %v2050, %v2075
        %v2077 = vmul.f32 %v410, %v2072
        %v2078 = vadd.f32 %v2071, %v2077
        %v2079 = vld [vmem:[%s402 + $0x38] sm:$0xff]
        %v2080 = vmul.f32 %v414, %v2072
        %v2081 = vmul.f32 %v414, %v2079
        %2084 = vrot.lane.b32.xlu0 %v2080, 127
        %v2085 = vpop.permute.xlu0 %2084
        %2086 = vrot.lane.b32.xlu0 %v2081, 127
        %v2087 = vpop.permute.xlu0 %2086
        %v2088 = vsel %vm273, %v2085, %v2087
        %v2090 = vadd.f32 %v2074, %v2088
        %v2091 = vmul.f32 %v426, %v2072
        %v2092 = vmul.f32 %v426, %v2079
        %2095 = vrot.lane.b32.xlu0 %v2091, 127
        %v2096 = vpop.permute.xlu0 %2095
        %2097 = vrot.lane.b32.xlu0 %v2092, 127
        %v2098 = vpop.permute.xlu0 %2097
        %v2099 = vsel %vm273, %v2096, %v2098
        %v2101 = vadd.f32 %v2076, %v2099
        %v2102 = vmul.f32 %v438, %v2072
        %v2103 = vmul.f32 %v438, %v2079
        %2106 = vrot.lane.b32.xlu0 %v2102, 127
        %v2107 = vpop.permute.xlu0 %2106
        %2108 = vrot.lane.b32.xlu0 %v2103, 127
        %v2109 = vpop.permute.xlu0 %2108
        %v2110 = vsel %vm273, %v2107, %v2109
        %v2112 = vadd.f32 %v2078, %v2110
        %v2113 = vld [vmem:[%s402 + $0x30] sm:$0xfe]
        %v2114 = vld [vmem:[%s402 + $0x40] sm:$0x1]
        %v2115 = vmul.f32 %v452, %v2113
        %v2116 = vmul.f32 %v452, %v2114
        %v2119 = vrot.slane %v2115, 1
        %v2120 = vrot.slane %v2116, 1
        %v2121 = vsel %vm308, %v2119, %v2120
        %v2123 = vadd.f32 %v2090, %v2121
        %v2124 = vmul.f32 %v462, %v2113
        %v2125 = vmul.f32 %v462, %v2114
        %v2128 = vrot.slane %v2124, 1
        %v2129 = vrot.slane %v2125, 1
        %v2130 = vsel %vm308, %v2128, %v2129
        %v2132 = vadd.f32 %v2101, %v2130
        %v2133 = vmul.f32 %v472, %v2113
        %v2134 = vmul.f32 %v472, %v2114
        %v2137 = vrot.slane %v2133, 1
        %v2138 = vrot.slane %v2134, 1
        %v2139 = vsel %vm308, %v2137, %v2138
        %v2141 = vadd.f32 %v2112, %v2139
        %v2142 = vld [vmem:[%s402 + $0x38] sm:$0xfe]
        %v2143 = vld [vmem:[%s402 + $0x48] sm:$0x1]
        %v2144 = vmul.f32 %v484, %v2113
        %v2145 = vmul.f32 %v484, %v2142
        %v2146 = vmul.f32 %v484, %v2114
        %v2147 = vmul.f32 %v484, %v2143
        %v2152 = vrot.slane %v2144, 1
        %v2153 = vrot.slane %v2146, 1
        %v2154 = vsel %vm308, %v2152, %v2153
        %v2155 = vrot.slane %v2145, 1
        %v2156 = vrot.slane %v2147, 1
        %v2157 = vsel %vm308, %v2155, %v2156
        %2158 = vrot.lane.b32.xlu0 %v2154, 127
        %v2159 = vpop.permute.xlu0 %2158
        %2160 = vrot.lane.b32.xlu0 %v2157, 127
        %v2161 = vpop.permute.xlu0 %2160
        %v2162 = vsel %vm273, %v2159, %v2161
        %v2164 = vadd.f32 %v2123, %v2162
        %v2165 = vmul.f32 %v506, %v2113
        %v2166 = vmul.f32 %v506, %v2142
        %v2167 = vmul.f32 %v506, %v2114
        %v2168 = vmul.f32 %v506, %v2143
        %v2173 = vrot.slane %v2165, 1
        %v2174 = vrot.slane %v2167, 1
        %v2175 = vsel %vm308, %v2173, %v2174
        %v2176 = vrot.slane %v2166, 1
        %v2177 = vrot.slane %v2168, 1
        %v2178 = vsel %vm308, %v2176, %v2177
        %2179 = vrot.lane.b32.xlu0 %v2175, 127
        %v2180 = vpop.permute.xlu0 %2179
        %2181 = vrot.lane.b32.xlu0 %v2178, 127
        %v2182 = vpop.permute.xlu0 %2181
        %v2183 = vsel %vm273, %v2180, %v2182
        %v2185 = vadd.f32 %v2132, %v2183
        %v2186 = vmul.f32 %v528, %v2113
        %v2187 = vmul.f32 %v528, %v2142
        %v2188 = vmul.f32 %v528, %v2114
        %v2189 = vmul.f32 %v528, %v2143
        %v2194 = vrot.slane %v2186, 1
        %v2195 = vrot.slane %v2188, 1
        %v2196 = vsel %vm308, %v2194, %v2195
        %v2197 = vrot.slane %v2187, 1
        %v2198 = vrot.slane %v2189, 1
        %v2199 = vsel %vm308, %v2197, %v2198
        %2200 = vrot.lane.b32.xlu0 %v2196, 127
        %v2201 = vpop.permute.xlu0 %2200
        %2202 = vrot.lane.b32.xlu0 %v2199, 127
        %v2203 = vpop.permute.xlu0 %2202
        %v2204 = vsel %vm273, %v2201, %v2203
        %v2206 = vadd.f32 %v2141, %v2204
        %v2207 = vld [vmem:[%s550 + $0x30] sm:$0xff]
        %v2208 = vmul.f32 %v552, %v2207
        %v2209 = vadd.f32 %v2164, %v2208
        %v2210 = vmul.f32 %v555, %v2207
        %v2211 = vadd.f32 %v2185, %v2210
        %v2212 = vmul.f32 %v558, %v2207
        %v2213 = vadd.f32 %v2206, %v2212
        %v2214 = vld [vmem:[%s550 + $0x38] sm:$0xff]
        %v2215 = vmul.f32 %v562, %v2207
        %v2216 = vmul.f32 %v562, %v2214
        %2219 = vrot.lane.b32.xlu0 %v2215, 127
        %v2220 = vpop.permute.xlu0 %2219
        %2221 = vrot.lane.b32.xlu0 %v2216, 127
        %v2222 = vpop.permute.xlu0 %2221
        %v2223 = vsel %vm273, %v2220, %v2222
        %v2225 = vadd.f32 %v2209, %v2223
        %v2226 = vmul.f32 %v574, %v2207
        %v2227 = vmul.f32 %v574, %v2214
        %2230 = vrot.lane.b32.xlu0 %v2226, 127
        %v2231 = vpop.permute.xlu0 %2230
        %2232 = vrot.lane.b32.xlu0 %v2227, 127
        %v2233 = vpop.permute.xlu0 %2232
        %v2234 = vsel %vm273, %v2231, %v2233
        %v2236 = vadd.f32 %v2211, %v2234
        %v2237 = vmul.f32 %v586, %v2207
        %v2238 = vmul.f32 %v586, %v2214
        %2241 = vrot.lane.b32.xlu0 %v2237, 127
        %v2242 = vpop.permute.xlu0 %2241
        %2243 = vrot.lane.b32.xlu0 %v2238, 127
        %v2244 = vpop.permute.xlu0 %2243
        %v2245 = vsel %vm273, %v2242, %v2244
        %v2247 = vadd.f32 %v2213, %v2245
        %v2248 = vld [vmem:[%s550 + $0x30] sm:$0xfe]
        %v2249 = vld [vmem:[%s550 + $0x40] sm:$0x1]
        %v2250 = vmul.f32 %v600, %v2248
        %v2251 = vmul.f32 %v600, %v2249
        %v2254 = vrot.slane %v2250, 1
        %v2255 = vrot.slane %v2251, 1
        %v2256 = vsel %vm308, %v2254, %v2255
        %v2258 = vadd.f32 %v2225, %v2256
        %v2259 = vmul.f32 %v610, %v2248
        %v2260 = vmul.f32 %v610, %v2249
        %v2263 = vrot.slane %v2259, 1
        %v2264 = vrot.slane %v2260, 1
        %v2265 = vsel %vm308, %v2263, %v2264
        %v2267 = vadd.f32 %v2236, %v2265
        %v2268 = vmul.f32 %v620, %v2248
        %v2269 = vmul.f32 %v620, %v2249
        %v2272 = vrot.slane %v2268, 1
        %v2273 = vrot.slane %v2269, 1
        %v2274 = vsel %vm308, %v2272, %v2273
        %v2276 = vadd.f32 %v2247, %v2274
        %v2277 = vld [vmem:[%s550 + $0x38] sm:$0xfe]
        %v2278 = vld [vmem:[%s550 + $0x48] sm:$0x1]
        %v2279 = vmul.f32 %v632, %v2248
        %v2280 = vmul.f32 %v632, %v2277
        %v2281 = vmul.f32 %v632, %v2249
        %v2282 = vmul.f32 %v632, %v2278
        %v2287 = vrot.slane %v2279, 1
        %v2288 = vrot.slane %v2281, 1
        %v2289 = vsel %vm308, %v2287, %v2288
        %v2290 = vrot.slane %v2280, 1
        %v2291 = vrot.slane %v2282, 1
        %v2292 = vsel %vm308, %v2290, %v2291
        %2293 = vrot.lane.b32.xlu0 %v2289, 127
        %v2294 = vpop.permute.xlu0 %2293
        %2295 = vrot.lane.b32.xlu0 %v2292, 127
        %v2296 = vpop.permute.xlu0 %2295
        %v2297 = vsel %vm273, %v2294, %v2296
        %v2299 = vadd.f32 %v2258, %v2297
        %v2300 = vmul.f32 %v654, %v2248
        %v2301 = vmul.f32 %v654, %v2277
        %v2302 = vmul.f32 %v654, %v2249
        %v2303 = vmul.f32 %v654, %v2278
        %v2308 = vrot.slane %v2300, 1
        %v2309 = vrot.slane %v2302, 1
        %v2310 = vsel %vm308, %v2308, %v2309
        %v2311 = vrot.slane %v2301, 1
        %v2312 = vrot.slane %v2303, 1
        %v2313 = vsel %vm308, %v2311, %v2312
        %2314 = vrot.lane.b32.xlu0 %v2310, 127
        %v2315 = vpop.permute.xlu0 %2314
        %2316 = vrot.lane.b32.xlu0 %v2313, 127
        %v2317 = vpop.permute.xlu0 %2316
        %v2318 = vsel %vm273, %v2315, %v2317
        %v2320 = vadd.f32 %v2267, %v2318
        %v2321 = vmul.f32 %v676, %v2248
        %v2322 = vmul.f32 %v676, %v2277
        %v2323 = vmul.f32 %v676, %v2249
        %v2324 = vmul.f32 %v676, %v2278
        %v2329 = vrot.slane %v2321, 1
        %v2330 = vrot.slane %v2323, 1
        %v2331 = vsel %vm308, %v2329, %v2330
        %v2332 = vrot.slane %v2322, 1
        %v2333 = vrot.slane %v2324, 1
        %v2334 = vsel %vm308, %v2332, %v2333
        %2335 = vrot.lane.b32.xlu0 %v2331, 127
        %v2336 = vpop.permute.xlu0 %2335
        %2337 = vrot.lane.b32.xlu0 %v2334, 127
        %v2338 = vpop.permute.xlu0 %2337
        %v2339 = vsel %vm273, %v2336, %v2338
        %v2341 = vadd.f32 %v2276, %v2339
        %v2342 = vld [vmem:[%s698 + $0x30] sm:$0xff]
        %v2343 = vmul.f32 %v700, %v2342
        %v2344 = vadd.f32 %v2299, %v2343
        %v2345 = vmul.f32 %v703, %v2342
        %v2346 = vadd.f32 %v2320, %v2345
        %v2347 = vmul.f32 %v706, %v2342
        %v2348 = vadd.f32 %v2341, %v2347
        %v2349 = vld [vmem:[%s698 + $0x38] sm:$0xff]
        %v2350 = vmul.f32 %v710, %v2342
        %v2351 = vmul.f32 %v710, %v2349
        %2354 = vrot.lane.b32.xlu0 %v2350, 127
        %v2355 = vpop.permute.xlu0 %2354
        %2356 = vrot.lane.b32.xlu0 %v2351, 127
        %v2357 = vpop.permute.xlu0 %2356
        %v2358 = vsel %vm273, %v2355, %v2357
        %v2360 = vadd.f32 %v2344, %v2358
        %v2361 = vmul.f32 %v722, %v2342
        %v2362 = vmul.f32 %v722, %v2349
        %2365 = vrot.lane.b32.xlu0 %v2361, 127
        %v2366 = vpop.permute.xlu0 %2365
        %2367 = vrot.lane.b32.xlu0 %v2362, 127
        %v2368 = vpop.permute.xlu0 %2367
        %v2369 = vsel %vm273, %v2366, %v2368
        %v2371 = vadd.f32 %v2346, %v2369
        %v2372 = vmul.f32 %v734, %v2342
        %v2373 = vmul.f32 %v734, %v2349
        %2376 = vrot.lane.b32.xlu0 %v2372, 127
        %v2377 = vpop.permute.xlu0 %2376
        %2378 = vrot.lane.b32.xlu0 %v2373, 127
        %v2379 = vpop.permute.xlu0 %2378
        %v2380 = vsel %vm273, %v2377, %v2379
        %v2382 = vadd.f32 %v2348, %v2380
        %v2383 = vld [vmem:[%s698 + $0x30] sm:$0xfe]
        %v2384 = vld [vmem:[%s698 + $0x40] sm:$0x1]
        %v2385 = vmul.f32 %v748, %v2383
        %v2386 = vmul.f32 %v748, %v2384
        %v2389 = vrot.slane %v2385, 1
        %v2390 = vrot.slane %v2386, 1
        %v2391 = vsel %vm308, %v2389, %v2390
        %v2393 = vadd.f32 %v2360, %v2391
        %v2394 = vmul.f32 %v758, %v2383
        %v2395 = vmul.f32 %v758, %v2384
        %v2398 = vrot.slane %v2394, 1
        %v2399 = vrot.slane %v2395, 1
        %v2400 = vsel %vm308, %v2398, %v2399
        %v2402 = vadd.f32 %v2371, %v2400
        %v2403 = vmul.f32 %v768, %v2383
        %v2404 = vmul.f32 %v768, %v2384
        %v2407 = vrot.slane %v2403, 1
        %v2408 = vrot.slane %v2404, 1
        %v2409 = vsel %vm308, %v2407, %v2408
        %v2411 = vadd.f32 %v2382, %v2409
        %v2412 = vld [vmem:[%s698 + $0x38] sm:$0xfe]
        %v2413 = vld [vmem:[%s698 + $0x48] sm:$0x1]
        %v2414 = vmul.f32 %v780, %v2383
        %v2415 = vmul.f32 %v780, %v2412
        %v2416 = vmul.f32 %v780, %v2384
        %v2417 = vmul.f32 %v780, %v2413
        %v2422 = vrot.slane %v2414, 1
        %v2423 = vrot.slane %v2416, 1
        %v2424 = vsel %vm308, %v2422, %v2423
        %v2425 = vrot.slane %v2415, 1
        %v2426 = vrot.slane %v2417, 1
        %v2427 = vsel %vm308, %v2425, %v2426
        %2428 = vrot.lane.b32.xlu0 %v2424, 127
        %v2429 = vpop.permute.xlu0 %2428
        %2430 = vrot.lane.b32.xlu0 %v2427, 127
        %v2431 = vpop.permute.xlu0 %2430
        %v2432 = vsel %vm273, %v2429, %v2431
        %v2434 = vadd.f32 %v2393, %v2432
        %v2435 = vmul.f32 %v802, %v2383
        %v2436 = vmul.f32 %v802, %v2412
        %v2437 = vmul.f32 %v802, %v2384
        %v2438 = vmul.f32 %v802, %v2413
        %v2443 = vrot.slane %v2435, 1
        %v2444 = vrot.slane %v2437, 1
        %v2445 = vsel %vm308, %v2443, %v2444
        %v2446 = vrot.slane %v2436, 1
        %v2447 = vrot.slane %v2438, 1
        %v2448 = vsel %vm308, %v2446, %v2447
        %2449 = vrot.lane.b32.xlu0 %v2445, 127
        %v2450 = vpop.permute.xlu0 %2449
        %2451 = vrot.lane.b32.xlu0 %v2448, 127
        %v2452 = vpop.permute.xlu0 %2451
        %v2453 = vsel %vm273, %v2450, %v2452
        %v2455 = vadd.f32 %v2402, %v2453
        %v2456 = vmul.f32 %v824, %v2383
        %v2457 = vmul.f32 %v824, %v2412
        %v2458 = vmul.f32 %v824, %v2384
        %v2459 = vmul.f32 %v824, %v2413
        %v2464 = vrot.slane %v2456, 1
        %v2465 = vrot.slane %v2458, 1
        %v2466 = vsel %vm308, %v2464, %v2465
        %v2467 = vrot.slane %v2457, 1
        %v2468 = vrot.slane %v2459, 1
        %v2469 = vsel %vm308, %v2467, %v2468
        %2470 = vrot.lane.b32.xlu0 %v2466, 127
        %v2471 = vpop.permute.xlu0 %2470
        %2472 = vrot.lane.b32.xlu0 %v2469, 127
        %v2473 = vpop.permute.xlu0 %2472
        %v2474 = vsel %vm273, %v2471, %v2473
        %v2476 = vadd.f32 %v2411, %v2474
        %2477 = vst [vmem:[%s190 + $0x18] sm:$0xff] %v2434
        %2478 = vst [vmem:[%s847 + $0x18] sm:$0xff] %v2455
        %2479 = vst [vmem:[%s849 + $0x18] sm:$0xff] %v2476
        %s2480 = sand.u32 %s95, 1
        %s2481 = scalar_lea.sflag [#allocation3], %s2480
        %s2482 = sand.u32 %s95, 1
        %s2483 = smul.addr %s2482, 96
        %s2484 = scalar_lea.vmem [#allocation7], %s2483
        // Predicated region
        $region41: #{tpu_custom_call.1} parent=31 // pred_check
          %p2485 = pneg %p105
        $region42: #{tpu_custom_call.1} parent=31 // pred_check_branch
          %2487 = sbr.rel (%p2485) target = $region44
        $region43: #{tpu_custom_call.1} parent=31 // pred_region
          %s2489 = ssub.s32 1536, 1536
          %2490 = vsyncadd %s2481, %s2489
          %s2491 = smul.addr %s19, 12
          %s2492 = smul.addr %s2491, 128
          %s2493 = scalar_lea.hbm %s3, %s2492
          %s2494 = sshll.u32 %s2484, 4
          %s2495 = int_to_ptr.vmem [resolvable:$true] %s2494
          %2500 = dma.vmem_to_hbm [thread:$0]  %s2495, 1536, %s2493, %s2481, 128, 128, 8
        $region44: #{tpu_custom_call.1} parent=31 // pred_fallthru
          _
      $region32: #{tpu_custom_call.1} parent=5 // pred_fallthru
        _
      %p2501 = scmp.le.s32.totalorder 2, %s14
      // Predicated region
      $region45: #{tpu_custom_call.1} parent=5 // pred_check
        %p2502 = pneg %p2501
      $region46: #{tpu_custom_call.1} parent=5 // pred_check_branch
        %2504 = sbr.rel (%p2502) target = $region48
      $region47: #{tpu_custom_call.1} parent=5 // pred_region
        %s2505 = ssub.s32 %s14, 2
        // Predicated region
        $region49: #{tpu_custom_call.1} parent=47 // pred_check
          %p2506 = pneg %p111
        $region50: #{tpu_custom_call.1} parent=47 // pred_check_branch
          %2508 = sbr.rel (%p2506) target = $region52
        $region51: #{tpu_custom_call.1} parent=47 // pred_region
          %s2509 = sand.u32 %s96, 1
          %s2510 = scalar_lea.sflag [#allocation3], %s2509
          %s2511 = sand.u32 %s96, 1
          %s2512 = smul.addr %s2511, 96
          %s2513 = scalar_lea.vmem [#allocation7], %s2512
          %2514 = dma.done %s2510, 1536
        $region52: #{tpu_custom_call.1} parent=47 // pred_fallthru
          _
      $region48: #{tpu_custom_call.1} parent=5 // pred_fallthru
        _
    $region6: #{tpu_custom_call.1} parent=1 // loop_footer
      %s18 = sadd.s32 1, %s14
    $region7: #{tpu_custom_call.1} parent=1 // loop_footer_branch
      %13 = sbr.rel target = $region3
    $region8: #{tpu_custom_call.1} parent=1 // loop_exit
      _
    %2515 = vsyncpa [#allocation3], 1
    %s2516 = scalar_lea.sflag [#allocation3], 1
    %2517 = vsyncpa %s2516, 1
    %2518 = vsyncpa [#allocation4], 1
    %s2519 = scalar_lea.sflag [#allocation4], 1
    %2520 = vsyncpa %s2519, 1
    %2521 = vsyncpa [#allocation6], 1

</llo_original>
